<compile_context>
chip_gen: v7x
topology: tpu7x:2x2x1
jax: 0.10.0
libtpu: 0.0.40
codegen_flags: <defaults>
</compile_context>

<pallas_src>
import jax
import jax.numpy as jnp
from jax import lax
from jax.experimental import pallas as pl
from jax.experimental.pallas import tpu as pltpu

# ---- Hyper-parameters (small, consistent with EEGNet(C=4, F1=4, D=2)) -------
C_EEG = 4                      # EEG channels ("H" axis of NCHW)
F1 = 4
D = 2
F2 = D * F1                    # 8
K1 = 128                       # kernel_size=(1, 128) -> module default
PAD1 = K1 // 2                 # 64
T = 128                        # time samples
K2 = 16                        # conv2d_2 temporal kernel
PAD2 = K2 // 2                 # 8
EPS = 1e-5
N = 2                          # batch

P = T + 2 * PAD1               # 256  zero-padded time length fed to stage 1
W1_FULL = P - K1 + 1           # 129  conv2d_1 output width
TT = 128                       # trimmed conv1 width actually consumed (= W2*4)
W2 = W1_FULL // 4              # 32   after avg_pool_1
W2P = W2 + 2 * PAD2            # 48   after conv2d_2 zero padding
W3 = W2P - K2 + 1              # 33   after conv2d_2 / conv2d_3
W4 = W3 // 8                   # 4    after avg_pool_2
FK, FS = 3, 7                  # final_pool = AvgPool2d(3, 7)  -> single window


# ----------------------------- Pallas kernel ---------------------------------
def eegnet_kernel(x_ref, a_ref, sh2_ref, b_ref, sh3_ref, cfin_ref, o_ref):
    f32 = jnp.float32
    # stage 1: conv1 + depthwise + BN1 + BN2 as ONE K=1024 matmul, then ELU.
    h2 = jnp.dot(x_ref[...], a_ref[...], preferred_element_type=f32)
    h2 = h2 + sh2_ref[...]
    h2 = jnp.where(h2 > 0, h2, jnp.exp(jnp.minimum(h2, 0.0)) - 1.0)   # ELU
    # dropout_1: identity (eval)

    # stage 2: avg_pool_1 + pad + conv2 + conv3 + BN3 as ONE K=1024 matmul, ELU.
    h5 = jnp.dot(h2, b_ref[...], preferred_element_type=f32)
    h5 = h5 + sh3_ref[...]
    h5 = jnp.where(h5 > 0, h5, jnp.exp(jnp.minimum(h5, 0.0)) - 1.0)   # ELU
    # dropout_2: identity (eval)

    # stage 3: avg_pool_2 + final AvgPool2d(3,7) as one matmul -> (NB, 1).
    o_ref[...] = jnp.dot(h5, cfin_ref[...], preferred_element_type=f32)


def eegnet_pallas(x_nchw, ops):
    """x_nchw: (N, 1, C_EEG, T).  ops: dict of folded operators."""
    n = x_nchw.shape[0]
    x_pad = jnp.pad(x_nchw[:, 0, :, :], ((0, 0), (0, 0), (PAD1, PAD1)))  # (N,C,P)
    x_flat = x_pad.reshape(n, C_EEG * P)                                 # (N,1024)

    nb = min(n, 128)                       # batch tile = MXU rows per grid step
    n_pad = pl.cdiv(n, nb) * nb
    if n_pad != n:
        x_flat = jnp.pad(x_flat, ((0, n_pad - n), (0, 0)))

    fa = F2 * TT           # 1024  stage-1 feature width
    fb = F2 * W3           # 264   stage-2 feature width
    in_specs = [
        pl.BlockSpec((nb, C_EEG * P), lambda b: (b, 0)),   # x  (batch tile rows)
        pl.BlockSpec((C_EEG * P, fa), lambda b: (0, 0)),   # A
        pl.BlockSpec((1, fa), lambda b: (0, 0)),           # sh2
        pl.BlockSpec((fa, fb), lambda b: (0, 0)),          # B
        pl.BlockSpec((1, fb), lambda b: (0, 0)),           # sh3
        pl.BlockSpec((fb, 1), lambda b: (0, 0)),           # cfin
    ]
    out_specs = pl.BlockSpec((nb, 1), lambda b: (b, 0))

    out = pl.pallas_call(
        eegnet_kernel,
        out_shape=jax.ShapeDtypeStruct((n_pad, 1), jnp.float32),
        grid_spec=pltpu.PrefetchScalarGridSpec(
            num_scalar_prefetch=0,
            grid=(n_pad // nb,),
            in_specs=in_specs,
            out_specs=out_specs,
        ),
        compiler_params=pltpu.CompilerParams(
            dimension_semantics=("parallel",),          # v7x: shard tiles on 2 TCs
            vmem_limit_bytes=32 * 1024 * 1024),
    )(x_flat, ops["A"], ops["sh2"], ops["B"], ops["sh3"], ops["cfin"])

    return out[:n]      # (N, 1): matches the module's trailing .squeeze(2)


# ------------------------- parameters & folding ------------------------------
def make_raw_params(key):
    f32 = jnp.float32
    ks = jax.random.split(key, 24)
    nrm = lambda k, s, sc: sc * jax.random.normal(k, s, f32)
    p = {}
    p["w1"] = nrm(ks[0], (F1, 1, 1, K1), 0.1)
    p["b1"] = nrm(ks[1], (F1,), 0.1)
    p["g1"] = 1.0 + nrm(ks[2], (F1,), 0.1)
    p["bt1"] = nrm(ks[3], (F1,), 0.1)
    p["m1"] = nrm(ks[4], (F1,), 0.1)
    p["v1"] = jax.random.uniform(ks[5], (F1,), f32, 0.5, 1.5)
    p["wd"] = nrm(ks[6], (F2, F1, C_EEG, 1), 0.2)
    p["bd"] = nrm(ks[7], (F2,), 0.1)
    p["g2"] = 1.0 + nrm(ks[8], (F2,), 0.1)
    p["bt2"] = nrm(ks[9], (F2,), 0.1)
    p["m2"] = nrm(ks[10], (F2,), 0.1)
    p["v2"] = jax.random.uniform(ks[11], (F2,), f32, 0.5, 1.5)
    p["w2"] = nrm(ks[12], (F2, F2, 1, K2), 0.2)
    p["b2"] = nrm(ks[13], (F2,), 0.1)
    p["w3"] = nrm(ks[14], (F2, F2, 1, 1), 0.2)
    p["b3"] = nrm(ks[15], (F2,), 0.1)
    p["g3"] = 1.0 + nrm(ks[16], (F2,), 0.1)
    p["bt3"] = nrm(ks[17], (F2,), 0.1)
    p["m3"] = nrm(ks[18], (F2,), 0.1)
    p["v3"] = jax.random.uniform(ks[19], (F2,), f32, 0.5, 1.5)
    return p, ks[20]


def fold_params(p):
    """Fold the whole eval-mode network into 3 operators + 2 shifts (glue)."""
    f32 = jnp.float32
    hp = lax.Precision.HIGHEST
    s1 = p["g1"] / jnp.sqrt(p["v1"] + EPS)
    s2 = p["g2"] / jnp.sqrt(p["v2"] + EPS)
    s3 = p["g3"] / jnp.sqrt(p["v3"] + EPS)
    q1 = s1 * (p["b1"] - p["m1"]) + p["bt1"]

    # ---- stage 1 operator A: (C*P, F2*TT) -----------------------------------
    # conv2d_1 Toeplitz (time trimmed to TT=128 columns; column 129 is never
    # consumed by avg_pool_1), composed with the (C,1) depthwise channel mix
    # and BN1/BN2 scales.
    w1m = p["w1"][:, 0, 0, :]                                       # (F1, K1)
    pidx = jnp.arange(P)[:, None]
    tidx = jnp.arange(TT)[None, :]
    kk = pidx - tidx
    valid = (kk >= 0) & (kk < K1)
    wt = jnp.where(valid[None], w1m[:, jnp.clip(kk, 0, K1 - 1)], 0.0)  # (F1,P,TT)
    wd0 = p["wd"][:, :, :, 0]                                       # (F2, F1, C)
    wd_eff = (jnp.transpose(wd0, (1, 0, 2))
              * s1[:, None, None] * s2[None, :, None])              # (F1, F2, C)
    A = jnp.einsum("gfc,gpt->cpft", wd_eff, wt,
                   precision=hp).reshape(C_EEG * P, F2 * TT)
    r2 = jnp.einsum("gfc,f->g", wd0, q1) + p["bd"]
    sh2 = (r2 - p["m2"]) * s2 + p["bt2"]                            # (F2,)
    sh2_flat = jnp.broadcast_to(sh2[:, None], (F2, TT)).reshape(1, F2 * TT)

    # ---- stage 2 operator B: (F2*TT, F2*W3) ---------------------------------
    # avg_pool_1 (1,4) + conv2d_2 zero padding, block-diagonal over F2.
    rr = jnp.arange(TT)[:, None]
    cc = jnp.arange(W2P)[None, :]
    p1 = jnp.where((cc >= PAD2) & (cc < PAD2 + W2) & (rr // 4 == cc - PAD2),
                   0.25, 0.0).astype(f32)                           # (TT, W2P)
    p1_bd = jnp.einsum("tu,fg->ftgu", p1,
                       jnp.eye(F2, dtype=f32)).reshape(F2 * TT, F2 * W2P)
    # conv2d_2 (1,16) fused with conv2d_3 (1x1) and BN3 (all linear).
    w2m = p["w2"][:, :, 0, :]                                       # (g, f, K2)
    w3m = p["w3"][:, :, 0, 0]                                       # (g2, g)
    w3_eff = w3m * s3[:, None]
    w23 = jnp.einsum("ag,gfk->afk", w3_eff, w2m, precision=hp)      # (g2, f, K2)
    uu = jnp.arange(W2P)[:, None]
    tt = jnp.arange(W3)[None, :]
    kk2 = uu - tt
    valid2 = (kk2 >= 0) & (kk2 < K2)
    c23 = jnp.transpose(w23[:, :, jnp.clip(kk2, 0, K2 - 1)], (1, 2, 0, 3))
    c23 = jnp.where(valid2[None, :, None, :], c23, 0.0).reshape(F2 * W2P, F2 * W3)
    B = jnp.matmul(p1_bd, c23, precision=hp)                        # (F2*TT, F2*W3)
    sh3 = (w3m @ p["b2"] + p["b3"] - p["m3"]) * s3 + p["bt3"]       # (F2,)
    sh3_flat = jnp.broadcast_to(sh3[:, None], (F2, W3)).reshape(1, F2 * W3)

    # ---- stage 3 operator cfin: (F2*W3, 1) ----------------------------------
    # avg_pool_2 (1,8) composed with final AvgPool2d(3,7): a single 3x3 window
    # at the origin of the (F2=8, W4=4) map.
    tt3 = jnp.arange(W3)[:, None]
    jj = jnp.arange(W4)[None, :]
    p2 = jnp.where(tt3 // 8 == jj, 1.0 / 8.0, 0.0).astype(f32)      # (W3, W4)
    gg = jnp.arange(F2)[:, None]
    jj2 = jnp.arange(W4)[None, :]
    fin = jnp.where((gg < FK) & (jj2 < FK), 1.0 / (FK * FK), 0.0).astype(f32)
    cfin = jnp.einsum("gj,tj->gt", fin, p2).reshape(F2 * W3, 1)

    return dict(A=A, sh2=sh2_flat, B=B, sh3=sh3_flat, cfin=cfin)


# -------------------------- pure-JAX reference -------------------------------
def reference_forward(x, p):
    dn = ("NCHW", "OIHW", "NCHW")
    hp = lax.Precision.HIGHEST

    def bn(y, g, b, m, v):
        s = g / jnp.sqrt(v + EPS)
        return (y - m[None, :, None, None]) * s[None, :, None, None] + b[None, :, None, None]

    def elu(y):
        return jnp.where(y > 0, y, jnp.expm1(y))

    def avgpool_w(y, k):
        n_, c_, h_, w_ = y.shape
        wp = w_ // k
        return y[..., :wp * k].reshape(n_, c_, h_, wp, k).mean(-1)

    y = lax.conv_general_dilated(x, p["w1"], (1, 1), ((0, 0), (PAD1, PAD1)),
                                 dimension_numbers=dn, precision=hp)
    y = y + p["b1"][None, :, None, None]
    y = bn(y, p["g1"], p["bt1"], p["m1"], p["v1"])
    y = lax.conv_general_dilated(y, p["wd"], (1, 1), ((0, 0), (0, 0)),
                                 dimension_numbers=dn, precision=hp)
    y = y + p["bd"][None, :, None, None]
    y = bn(y, p["g2"], p["bt2"], p["m2"], p["v2"])
    y = elu(y)
    y = avgpool_w(y, 4)
    y = lax.conv_general_dilated(y, p["w2"], (1, 1), ((0, 0), (PAD2, PAD2)),
                                 dimension_numbers=dn, precision=hp)
    y = y + p["b2"][None, :, None, None]
    y = lax.conv_general_dilated(y, p["w3"], (1, 1), ((0, 0), (0, 0)),
                                 dimension_numbers=dn, precision=hp)
    y = y + p["b3"][None, :, None, None]
    y = bn(y, p["g3"], p["bt3"], p["m3"], p["v3"])
    y = elu(y)
    y = avgpool_w(y, 8)
    y = y[:, :, 0, :]                                    # squeeze(2)
    y = lax.reduce_window(y, 0.0, lax.add, (1, FK, FK), (1, FS, FS), "VALID") / (FK * FK)
    if y.shape[2] == 1:                                  # trailing .squeeze(2)
        y = y[:, :, 0]
    return y


# ----------------------------------- main -------------------------------------
if __name__ == "__main__":
    raw, xkey = make_raw_params(jax.random.PRNGKey(0))
    x = jax.random.normal(xkey, (N, 1, C_EEG, T), jnp.float32)

    ops = fold_params(raw)
    out = eegnet_pallas(x, ops)
    out = jax.block_until_ready(out)

    ref = reference_forward(x, raw)
    assert out.shape == ref.shape, (out.shape, ref.shape)
    if not bool(jnp.allclose(out, ref, atol=1e-2, rtol=1e-2)):
        raise SystemExit(
            f"mismatch: max abs err = {float(jnp.max(jnp.abs(out - ref)))}")
    print("KERNEL_OK")
</pallas_src>

<mosaic_0001>
module attributes {stable_mosaic.version = 11 : i64} {
  func.func @eegnet_kernel(%arg0: i32, %arg1: memref<2x1024xf32, #tpu.memory_space<vmem>>, %arg2: memref<1024x1024xf32, #tpu.memory_space<vmem>>, %arg3: memref<1x1024xf32, #tpu.memory_space<vmem>>, %arg4: memref<1024x264xf32, #tpu.memory_space<vmem>>, %arg5: memref<1x264xf32, #tpu.memory_space<vmem>>, %arg6: memref<264x1xf32, #tpu.memory_space<vmem>>, %arg7: memref<2x1xf32, #tpu.memory_space<vmem>>) attributes {dimension_semantics = [#tpu.dimension_semantics<parallel>], iteration_bounds = array<i64: 1>, scalar_prefetch = 0 : i64, scratch_operands = 0 : i64, tpu.core_type = #tpu.core_type<tc>, window_params = [{transform_indices = @transform_0, window_bounds = array<i64: 2, 1024>}, {pipeline_mode = #tpu.pipeline_mode<synchronous>, transform_indices = @transform_1, window_bounds = array<i64: 1024, 1024>}, {pipeline_mode = #tpu.pipeline_mode<synchronous>, transform_indices = @transform_2, window_bounds = array<i64: 1, 1024>}, {pipeline_mode = #tpu.pipeline_mode<synchronous>, transform_indices = @transform_3, window_bounds = array<i64: 1024, 264>}, {pipeline_mode = #tpu.pipeline_mode<synchronous>, transform_indices = @transform_4, window_bounds = array<i64: 1, 264>}, {pipeline_mode = #tpu.pipeline_mode<synchronous>, transform_indices = @transform_5, window_bounds = array<i64: 264, 1>}, {transform_indices = @transform_6, window_bounds = array<i64: 2, 1>}]} {
    %c0 = arith.constant 0 : index
    %c0_0 = arith.constant 0 : index
    %0 = vector.load %arg1[%c0, %c0_0] : memref<2x1024xf32, #tpu.memory_space<vmem>>, vector<2x1024xf32>
    %c0_1 = arith.constant 0 : index
    %c0_2 = arith.constant 0 : index
    %1 = vector.load %arg2[%c0_1, %c0_2] : memref<1024x1024xf32, #tpu.memory_space<vmem>>, vector<1024x1024xf32>
    %cst = arith.constant dense<0.000000e+00> : vector<2x1024xf32>
    %2 = tpu.matmul %0, %1, %cst {dimension_numbers = #tpu.dot_dimension_numbers<[1], [0], [0], [1], [0, 0, 1, 1], [], []>} : vector<2x1024xf32>, vector<1024x1024xf32>, vector<2x1024xf32> -> vector<2x1024xf32>
    %c0_3 = arith.constant 0 : index
    %c0_4 = arith.constant 0 : index
    %3 = vector.load %arg3[%c0_3, %c0_4] : memref<1x1024xf32, #tpu.memory_space<vmem>>, vector<1x1024xf32>
    %4 = vector.broadcast %3 : vector<1x1024xf32> to vector<2x1024xf32>
    %5 = arith.addf %2, %4 : vector<2x1024xf32>
    %cst_5 = arith.constant 0.000000e+00 : f32
    %6 = vector.broadcast %cst_5 : f32 to vector<2x1024xf32>
    %7 = arith.cmpf ogt, %5, %6 : vector<2x1024xf32>
    %cst_6 = arith.constant 0.000000e+00 : f32
    %8 = vector.broadcast %cst_6 : f32 to vector<2x1024xf32>
    %9 = arith.minimumf %5, %8 : vector<2x1024xf32>
    %10 = math.exp %9 : vector<2x1024xf32>
    %cst_7 = arith.constant 1.000000e+00 : f32
    %11 = vector.broadcast %cst_7 : f32 to vector<2x1024xf32>
    %12 = arith.subf %10, %11 : vector<2x1024xf32>
    %13 = arith.select %7, %5, %12 : vector<2x1024xi1>, vector<2x1024xf32>
    %c0_8 = arith.constant 0 : index
    %c0_9 = arith.constant 0 : index
    %14 = vector.load %arg4[%c0_8, %c0_9] : memref<1024x264xf32, #tpu.memory_space<vmem>>, vector<1024x264xf32>
    %cst_10 = arith.constant dense<0.000000e+00> : vector<2x264xf32>
    %15 = tpu.matmul %13, %14, %cst_10 {dimension_numbers = #tpu.dot_dimension_numbers<[1], [0], [0], [1], [0, 0, 1, 1], [], []>} : vector<2x1024xf32>, vector<1024x264xf32>, vector<2x264xf32> -> vector<2x264xf32>
    %c0_11 = arith.constant 0 : index
    %c0_12 = arith.constant 0 : index
    %16 = vector.load %arg5[%c0_11, %c0_12] : memref<1x264xf32, #tpu.memory_space<vmem>>, vector<1x264xf32>
    %17 = vector.broadcast %16 : vector<1x264xf32> to vector<2x264xf32>
    %18 = arith.addf %15, %17 : vector<2x264xf32>
    %cst_13 = arith.constant 0.000000e+00 : f32
    %19 = vector.broadcast %cst_13 : f32 to vector<2x264xf32>
    %20 = arith.cmpf ogt, %18, %19 : vector<2x264xf32>
    %cst_14 = arith.constant 0.000000e+00 : f32
    %21 = vector.broadcast %cst_14 : f32 to vector<2x264xf32>
    %22 = arith.minimumf %18, %21 : vector<2x264xf32>
    %23 = math.exp %22 : vector<2x264xf32>
    %cst_15 = arith.constant 1.000000e+00 : f32
    %24 = vector.broadcast %cst_15 : f32 to vector<2x264xf32>
    %25 = arith.subf %23, %24 : vector<2x264xf32>
    %26 = arith.select %20, %18, %25 : vector<2x264xi1>, vector<2x264xf32>
    %c0_16 = arith.constant 0 : index
    %c0_17 = arith.constant 0 : index
    %27 = vector.load %arg6[%c0_16, %c0_17] : memref<264x1xf32, #tpu.memory_space<vmem>>, vector<264x1xf32>
    %cst_18 = arith.constant dense<0.000000e+00> : vector<2x1xf32>
    %28 = tpu.matmul %26, %27, %cst_18 {dimension_numbers = #tpu.dot_dimension_numbers<[1], [0], [0], [1], [0, 0, 1, 1], [], []>} : vector<2x264xf32>, vector<264x1xf32>, vector<2x1xf32> -> vector<2x1xf32>
    %c0_19 = arith.constant 0 : index
    %c0_20 = arith.constant 0 : index
    %29 = vector.load %arg7[%c0_19, %c0_20] : memref<2x1xf32, #tpu.memory_space<vmem>>, vector<2x1xf32>
    tpu.vector_store %arg7[%c0_19, %c0_20], %28 {strides = array<i32>} : memref<2x1xf32, #tpu.memory_space<vmem>>, vector<2x1xf32>,
    return
  }
  func.func @transform_0(%arg0: i32) -> (i32, i32) {
    %c0_i32 = arith.constant 0 : i32
    %c0_i32_0 = arith.constant 0 : i32
    return %arg0, %c0_i32 : i32, i32
  }
  func.func @transform_1(%arg0: i32) -> (i32, i32) {
    %c0_i32 = arith.constant 0 : i32
    %c0_i32_0 = arith.constant 0 : i32
    %c0_i32_1 = arith.constant 0 : i32
    return %c0_i32, %c0_i32_0 : i32, i32
  }
  func.func @transform_2(%arg0: i32) -> (i32, i32) {
    %c0_i32 = arith.constant 0 : i32
    %c0_i32_0 = arith.constant 0 : i32
    %c0_i32_1 = arith.constant 0 : i32
    return %c0_i32, %c0_i32_0 : i32, i32
  }
  func.func @transform_3(%arg0: i32) -> (i32, i32) {
    %c0_i32 = arith.constant 0 : i32
    %c0_i32_0 = arith.constant 0 : i32
    %c0_i32_1 = arith.constant 0 : i32
    return %c0_i32, %c0_i32_0 : i32, i32
  }
  func.func @transform_4(%arg0: i32) -> (i32, i32) {
    %c0_i32 = arith.constant 0 : i32
    %c0_i32_0 = arith.constant 0 : i32
    %c0_i32_1 = arith.constant 0 : i32
    return %c0_i32, %c0_i32_0 : i32, i32
  }
  func.func @transform_5(%arg0: i32) -> (i32, i32) {
    %c0_i32 = arith.constant 0 : i32
    %c0_i32_0 = arith.constant 0 : i32
    %c0_i32_1 = arith.constant 0 : i32
    return %c0_i32, %c0_i32_0 : i32, i32
  }
  func.func @transform_6(%arg0: i32) -> (i32, i32) {
    %c0_i32 = arith.constant 0 : i32
    %c0_i32_0 = arith.constant 0 : i32
    return %arg0, %c0_i32 : i32, i32
  }
}

</mosaic_0001>

<llo_original>
// kernel: tpu_custom_call.1
$region0: #{tpu_custom_call.1}
  #allocation0 [shape = 'u32[]', space=smem, size = 0x4, offset = 0x4, fixed_abs, tag = 'smem constant byte address 0x4 - core index']
  #allocation1 [shape = 'u32[144,128]{1,0:T(1,128)}', space=vmem, size = 0x12000, scoped, tag = 'internal scratch']
  %s0 = inlined_call_operand.vmem [shape: f32[2,1024], index: 0, kind: input, shape index: {}]
  %s1 = inlined_call_operand.hbm [shape: f32[1024,1024], index: 1, kind: input, shape index: {}]
  %s2 = inlined_call_operand.vmem [shape: f32[1,1024], index: 2, kind: input, shape index: {}]
  %s3 = inlined_call_operand.vmem [shape: f32[1024,264], index: 3, kind: input, shape index: {}]
  %s4 = inlined_call_operand.vmem [shape: f32[1,264], index: 4, kind: input, shape index: {}]
  %s5 = inlined_call_operand.vmem [shape: f32[264,1], index: 5, kind: input, shape index: {}]
  %s6 = inlined_call_operand.vmem [shape: f32[2,1], index: 6, kind: output, shape index: {}]
  %s7 = sld [smem:[#allocation0]]
  $region38: #{tpu_custom_call.1} parent=0
    _
  %s9 = ssub.s32 1, %s7
  %s10 = scalar_select 0, %s9, %s7
  $region1: #{tpu_custom_call.1} parent=0
    #allocation2 [shape = 'u8[4194304]{0}', space=vmem, size = 0x400000, scoped, tag = 'input window, operand 1, single buffered']
    #allocation3 [shape = 's32[1]{0}', space=sflag, size = 0x4, scoped, tag = 'scoped memory for tpu_custom_call.1']
    %11 = vsyncpa [#allocation3], 0
    // Predicated region
    $region2: #{tpu_custom_call.1} parent=1 // pred_check
      _
    $region3: #{tpu_custom_call.1} parent=1 // pred_check_branch
      %13 = sbr.rel (0) target = $region5
    $region4: #{tpu_custom_call.1} parent=1 // pred_region
      _
    $region5: #{tpu_custom_call.1} parent=1 // pred_fallthru
      _
    // Predicated region
    $region6: #{tpu_custom_call.1} parent=1 // pred_check
      _
    $region7: #{tpu_custom_call.1} parent=1 // pred_check_branch
      %15 = sbr.rel (0) target = $region9
    $region8: #{tpu_custom_call.1} parent=1 // pred_region
      %s17 = ssub.s32 131072, 131072
      %18 = vsyncadd [#allocation3], %s17
      %s19 = sshll.u32 [#allocation2], 4
      %s20 = int_to_ptr.vmem [resolvable:$true] %s19
      %25 = dma.hbm_to_vmem [thread:$0]  %s1, 131072, %s20, [#allocation3], 1024, 1024, 64
    $region9: #{tpu_custom_call.1} parent=1 // pred_fallthru
      _
    // Predicated region
    $region10: #{tpu_custom_call.1} parent=1 // pred_check
      _
    $region11: #{tpu_custom_call.1} parent=1 // pred_check_branch
      %27 = sbr.rel (0) target = $region13
    $region12: #{tpu_custom_call.1} parent=1 // pred_region
      _
    $region13: #{tpu_custom_call.1} parent=1 // pred_fallthru
      _
    // Predicated region
    $region14: #{tpu_custom_call.1} parent=1 // pred_check
      _
    $region15: #{tpu_custom_call.1} parent=1 // pred_check_branch
      %29 = sbr.rel (0) target = $region17
    $region16: #{tpu_custom_call.1} parent=1 // pred_region
      _
    $region17: #{tpu_custom_call.1} parent=1 // pred_fallthru
      _
    // Predicated region
    $region18: #{tpu_custom_call.1} parent=1 // pred_check
      _
    $region19: #{tpu_custom_call.1} parent=1 // pred_check_branch
      %31 = sbr.rel (0) target = $region21
    $region20: #{tpu_custom_call.1} parent=1 // pred_region
      _
    $region21: #{tpu_custom_call.1} parent=1 // pred_fallthru
      _
    // Predicated region
    $region22: #{tpu_custom_call.1} parent=1 // pred_check
      _
    $region23: #{tpu_custom_call.1} parent=1 // pred_check_branch
      %33 = sbr.rel (0) target = $region25
    $region24: #{tpu_custom_call.1} parent=1 // pred_region
      _
    $region25: #{tpu_custom_call.1} parent=1 // pred_fallthru
      _
    // Predicated region
    $region26: #{tpu_custom_call.1} parent=1 // pred_check
      _
    $region27: #{tpu_custom_call.1} parent=1 // pred_check_branch
      %35 = sbr.rel (0) target = $region29
    $region28: #{tpu_custom_call.1} parent=1 // pred_region
      %36 = dma.done [#allocation3], 131072
    $region29: #{tpu_custom_call.1} parent=1 // pred_fallthru
      _
    %v37 = vld [vmem:[%s0] sm:$0xff]
    %v38 = vld [vmem:[%s0 + $0x8] sm:$0xff]
    %v39 = vld [vmem:[#allocation2] sm:$0xff]
    %v40 = vld [vmem:[#allocation2 + $0x8] sm:$0xff]
    %v41 = vld [vmem:[#allocation2 + $0x10] sm:$0xff]
    %v42 = vld [vmem:[#allocation2 + $0x18] sm:$0xff]
    %v43 = vld [vmem:[#allocation2 + $0x20] sm:$0xff]
    %v44 = vld [vmem:[#allocation2 + $0x28] sm:$0xff]
    %v45 = vld [vmem:[#allocation2 + $0x30] sm:$0xff]
    %v46 = vld [vmem:[#allocation2 + $0x38] sm:$0xff]
    %v47 = vld [vmem:[#allocation2 + $0x40] sm:$0xff]
    %v48 = vld [vmem:[#allocation2 + $0x48] sm:$0xff]
    %v49 = vld [vmem:[#allocation2 + $0x50] sm:$0xff]
    %v50 = vld [vmem:[#allocation2 + $0x58] sm:$0xff]
    %v51 = vld [vmem:[#allocation2 + $0x60] sm:$0xff]
    %v52 = vld [vmem:[#allocation2 + $0x68] sm:$0xff]
    %v53 = vld [vmem:[#allocation2 + $0x70] sm:$0xff]
    %v54 = vld [vmem:[#allocation2 + $0x78] sm:$0xff]
    %v55 = vld [vmem:[#allocation2 + $0x80] sm:$0xff]
    %v56 = vld [vmem:[#allocation2 + $0x88] sm:$0xff]
    %v57 = vld [vmem:[#allocation2 + $0x90] sm:$0xff]
    %v58 = vld [vmem:[#allocation2 + $0x98] sm:$0xff]
    %v59 = vld [vmem:[#allocation2 + $0xa0] sm:$0xff]
    %v60 = vld [vmem:[#allocation2 + $0xa8] sm:$0xff]
    %v61 = vld [vmem:[#allocation2 + $0xb0] sm:$0xff]
    %v62 = vld [vmem:[#allocation2 + $0xb8] sm:$0xff]
    %v63 = vld [vmem:[#allocation2 + $0xc0] sm:$0xff]
    %v64 = vld [vmem:[#allocation2 + $0xc8] sm:$0xff]
    %v65 = vld [vmem:[#allocation2 + $0xd0] sm:$0xff]
    %v66 = vld [vmem:[#allocation2 + $0xd8] sm:$0xff]
    %v67 = vld [vmem:[#allocation2 + $0xe0] sm:$0xff]
    %v68 = vld [vmem:[#allocation2 + $0xe8] sm:$0xff]
    %v69 = vld [vmem:[#allocation2 + $0xf0] sm:$0xff]
    %v70 = vld [vmem:[#allocation2 + $0xf8] sm:$0xff]
    %v71 = vld [vmem:[#allocation2 + $0x100] sm:$0xff]
    %v72 = vld [vmem:[#allocation2 + $0x108] sm:$0xff]
    %v73 = vld [vmem:[#allocation2 + $0x110] sm:$0xff]
    %v74 = vld [vmem:[#allocation2 + $0x118] sm:$0xff]
    %v75 = vld [vmem:[#allocation2 + $0x120] sm:$0xff]
    %v76 = vld [vmem:[#allocation2 + $0x128] sm:$0xff]
    %v77 = vld [vmem:[#allocation2 + $0x130] sm:$0xff]
    %v78 = vld [vmem:[#allocation2 + $0x138] sm:$0xff]
    %v79 = vld [vmem:[#allocation2 + $0x140] sm:$0xff]
    %v80 = vld [vmem:[#allocation2 + $0x148] sm:$0xff]
    %v81 = vld [vmem:[#allocation2 + $0x150] sm:$0xff]
    %v82 = vld [vmem:[#allocation2 + $0x158] sm:$0xff]
    %v83 = vld [vmem:[#allocation2 + $0x160] sm:$0xff]
    %v84 = vld [vmem:[#allocation2 + $0x168] sm:$0xff]
    %v85 = vld [vmem:[#allocation2 + $0x170] sm:$0xff]
    %v86 = vld [vmem:[#allocation2 + $0x178] sm:$0xff]
    %v87 = vld [vmem:[#allocation2 + $0x180] sm:$0xff]
    %v88 = vld [vmem:[#allocation2 + $0x188] sm:$0xff]
    %v89 = vld [vmem:[#allocation2 + $0x190] sm:$0xff]
    %v90 = vld [vmem:[#allocation2 + $0x198] sm:$0xff]
    %v91 = vld [vmem:[#allocation2 + $0x1a0] sm:$0xff]
    %v92 = vld [vmem:[#allocation2 + $0x1a8] sm:$0xff]
    %v93 = vld [vmem:[#allocation2 + $0x1b0] sm:$0xff]
    %v94 = vld [vmem:[#allocation2 + $0x1b8] sm:$0xff]
    %v95 = vld [vmem:[#allocation2 + $0x1c0] sm:$0xff]
    %v96 = vld [vmem:[#allocation2 + $0x1c8] sm:$0xff]
    %v97 = vld [vmem:[#allocation2 + $0x1d0] sm:$0xff]
    %v98 = vld [vmem:[#allocation2 + $0x1d8] sm:$0xff]
    %v99 = vld [vmem:[#allocation2 + $0x1e0] sm:$0xff]
    %v100 = vld [vmem:[#allocation2 + $0x1e8] sm:$0xff]
    %v101 = vld [vmem:[#allocation2 + $0x1f0] sm:$0xff]
    %v102 = vld [vmem:[#allocation2 + $0x1f8] sm:$0xff]
    %v103 = vld [vmem:[#allocation2 + $0x200] sm:$0xff]
    %v104 = vld [vmem:[#allocation2 + $0x208] sm:$0xff]
    %v105 = vld [vmem:[#allocation2 + $0x210] sm:$0xff]
    %v106 = vld [vmem:[#allocation2 + $0x218] sm:$0xff]
    %v107 = vld [vmem:[#allocation2 + $0x220] sm:$0xff]
    %v108 = vld [vmem:[#allocation2 + $0x228] sm:$0xff]
    %v109 = vld [vmem:[#allocation2 + $0x230] sm:$0xff]
    %v110 = vld [vmem:[#allocation2 + $0x238] sm:$0xff]
    %v111 = vld [vmem:[#allocation2 + $0x240] sm:$0xff]
    %v112 = vld [vmem:[#allocation2 + $0x248] sm:$0xff]
    %v113 = vld [vmem:[#allocation2 + $0x250] sm:$0xff]
    %v114 = vld [vmem:[#allocation2 + $0x258] sm:$0xff]
    %v115 = vld [vmem:[#allocation2 + $0x260] sm:$0xff]
    %v116 = vld [vmem:[#allocation2 + $0x268] sm:$0xff]
    %v117 = vld [vmem:[#allocation2 + $0x270] sm:$0xff]
    %v118 = vld [vmem:[#allocation2 + $0x278] sm:$0xff]
    %v119 = vld [vmem:[#allocation2 + $0x280] sm:$0xff]
    %v120 = vld [vmem:[#allocation2 + $0x288] sm:$0xff]
    %v121 = vld [vmem:[#allocation2 + $0x290] sm:$0xff]
    %v122 = vld [vmem:[#allocation2 + $0x298] sm:$0xff]
    %v123 = vld [vmem:[#allocation2 + $0x2a0] sm:$0xff]
    %v124 = vld [vmem:[#allocation2 + $0x2a8] sm:$0xff]
    %v125 = vld [vmem:[#allocation2 + $0x2b0] sm:$0xff]
    %v126 = vld [vmem:[#allocation2 + $0x2b8] sm:$0xff]
    %v127 = vld [vmem:[#allocation2 + $0x2c0] sm:$0xff]
    %v128 = vld [vmem:[#allocation2 + $0x2c8] sm:$0xff]
    %v129 = vld [vmem:[#allocation2 + $0x2d0] sm:$0xff]
    %v130 = vld [vmem:[#allocation2 + $0x2d8] sm:$0xff]
    %v131 = vld [vmem:[#allocation2 + $0x2e0] sm:$0xff]
    %v132 = vld [vmem:[#allocation2 + $0x2e8] sm:$0xff]
    %v133 = vld [vmem:[#allocation2 + $0x2f0] sm:$0xff]
    %v134 = vld [vmem:[#allocation2 + $0x2f8] sm:$0xff]
    %v135 = vld [vmem:[#allocation2 + $0x300] sm:$0xff]
    %v136 = vld [vmem:[#allocation2 + $0x308] sm:$0xff]
    %v137 = vld [vmem:[#allocation2 + $0x310] sm:$0xff]
    %v138 = vld [vmem:[#allocation2 + $0x318] sm:$0xff]
    %v139 = vld [vmem:[#allocation2 + $0x320] sm:$0xff]
    %v140 = vld [vmem:[#allocation2 + $0x328] sm:$0xff]
    %v141 = vld [vmem:[#allocation2 + $0x330] sm:$0xff]
    %v142 = vld [vmem:[#allocation2 + $0x338] sm:$0xff]
    %v143 = vld [vmem:[#allocation2 + $0x340] sm:$0xff]
    %v144 = vld [vmem:[#allocation2 + $0x348] sm:$0xff]
    %v145 = vld [vmem:[#allocation2 + $0x350] sm:$0xff]
    %v146 = vld [vmem:[#allocation2 + $0x358] sm:$0xff]
    %v147 = vld [vmem:[#allocation2 + $0x360] sm:$0xff]
    %v148 = vld [vmem:[#allocation2 + $0x368] sm:$0xff]
    %v149 = vld [vmem:[#allocation2 + $0x370] sm:$0xff]
    %v150 = vld [vmem:[#allocation2 + $0x378] sm:$0xff]
    %v151 = vld [vmem:[#allocation2 + $0x380] sm:$0xff]
    %v152 = vld [vmem:[#allocation2 + $0x388] sm:$0xff]
    %v153 = vld [vmem:[#allocation2 + $0x390] sm:$0xff]
    %v154 = vld [vmem:[#allocation2 + $0x398] sm:$0xff]
    %v155 = vld [vmem:[#allocation2 + $0x3a0] sm:$0xff]
    %v156 = vld [vmem:[#allocation2 + $0x3a8] sm:$0xff]
    %v157 = vld [vmem:[#allocation2 + $0x3b0] sm:$0xff]
    %v158 = vld [vmem:[#allocation2 + $0x3b8] sm:$0xff]
    %v159 = vld [vmem:[#allocation2 + $0x3c0] sm:$0xff]
    %v160 = vld [vmem:[#allocation2 + $0x3c8] sm:$0xff]
    %v161 = vld [vmem:[#allocation2 + $0x3d0] sm:$0xff]
    %v162 = vld [vmem:[#allocation2 + $0x3d8] sm:$0xff]
    %v163 = vld [vmem:[#allocation2 + $0x3e0] sm:$0xff]
    %v164 = vld [vmem:[#allocation2 + $0x3e8] sm:$0xff]
    %v165 = vld [vmem:[#allocation2 + $0x3f0] sm:$0xff]
    %v166 = vld [vmem:[#allocation2 + $0x3f8] sm:$0xff]
    %v167 = vld [vmem:[#allocation2 + $0x400] sm:$0xff]
    %v168 = vld [vmem:[#allocation2 + $0x408] sm:$0xff]
    %v169 = vld [vmem:[#allocation2 + $0x410] sm:$0xff]
    %v170 = vld [vmem:[#allocation2 + $0x418] sm:$0xff]
    %v171 = vld [vmem:[#allocation2 + $0x420] sm:$0xff]
    %v172 = vld [vmem:[#allocation2 + $0x428] sm:$0xff]
    %v173 = vld [vmem:[#allocation2 + $0x430] sm:$0xff]
    %v174 = vld [vmem:[#allocation2 + $0x438] sm:$0xff]
    %v175 = vld [vmem:[#allocation2 + $0x440] sm:$0xff]
    %v176 = vld [vmem:[#allocation2 + $0x448] sm:$0xff]
    %v177 = vld [vmem:[#allocation2 + $0x450] sm:$0xff]
    %v178 = vld [vmem:[#allocation2 + $0x458] sm:$0xff]
    %v179 = vld [vmem:[#allocation2 + $0x460] sm:$0xff]
    %v180 = vld [vmem:[#allocation2 + $0x468] sm:$0xff]
    %v181 = vld [vmem:[#allocation2 + $0x470] sm:$0xff]
    %v182 = vld [vmem:[#allocation2 + $0x478] sm:$0xff]
    %v183 = vld [vmem:[#allocation2 + $0x480] sm:$0xff]
    %v184 = vld [vmem:[#allocation2 + $0x488] sm:$0xff]
    %v185 = vld [vmem:[#allocation2 + $0x490] sm:$0xff]
    %v186 = vld [vmem:[#allocation2 + $0x498] sm:$0xff]
    %v187 = vld [vmem:[#allocation2 + $0x4a0] sm:$0xff]
    %v188 = vld [vmem:[#allocation2 + $0x4a8] sm:$0xff]
    %v189 = vld [vmem:[#allocation2 + $0x4b0] sm:$0xff]
    %v190 = vld [vmem:[#allocation2 + $0x4b8] sm:$0xff]
    %v191 = vld [vmem:[#allocation2 + $0x4c0] sm:$0xff]
    %v192 = vld [vmem:[#allocation2 + $0x4c8] sm:$0xff]
    %v193 = vld [vmem:[#allocation2 + $0x4d0] sm:$0xff]
    %v194 = vld [vmem:[#allocation2 + $0x4d8] sm:$0xff]
    %v195 = vld [vmem:[#allocation2 + $0x4e0] sm:$0xff]
    %v196 = vld [vmem:[#allocation2 + $0x4e8] sm:$0xff]
    %v197 = vld [vmem:[#allocation2 + $0x4f0] sm:$0xff]
    %v198 = vld [vmem:[#allocation2 + $0x4f8] sm:$0xff]
    %v199 = vld [vmem:[#allocation2 + $0x500] sm:$0xff]
    %v200 = vld [vmem:[#allocation2 + $0x508] sm:$0xff]
    %v201 = vld [vmem:[#allocation2 + $0x510] sm:$0xff]
    %v202 = vld [vmem:[#allocation2 + $0x518] sm:$0xff]
    %v203 = vld [vmem:[#allocation2 + $0x520] sm:$0xff]
    %v204 = vld [vmem:[#allocation2 + $0x528] sm:$0xff]
    %v205 = vld [vmem:[#allocation2 + $0x530] sm:$0xff]
    %v206 = vld [vmem:[#allocation2 + $0x538] sm:$0xff]
    %v207 = vld [vmem:[#allocation2 + $0x540] sm:$0xff]
    %v208 = vld [vmem:[#allocation2 + $0x548] sm:$0xff]
    %v209 = vld [vmem:[#allocation2 + $0x550] sm:$0xff]
    %v210 = vld [vmem:[#allocation2 + $0x558] sm:$0xff]
    %v211 = vld [vmem:[#allocation2 + $0x560] sm:$0xff]
    %v212 = vld [vmem:[#allocation2 + $0x568] sm:$0xff]
    %v213 = vld [vmem:[#allocation2 + $0x570] sm:$0xff]
    %v214 = vld [vmem:[#allocation2 + $0x578] sm:$0xff]
    %v215 = vld [vmem:[#allocation2 + $0x580] sm:$0xff]
    %v216 = vld [vmem:[#allocation2 + $0x588] sm:$0xff]
    %v217 = vld [vmem:[#allocation2 + $0x590] sm:$0xff]
    %v218 = vld [vmem:[#allocation2 + $0x598] sm:$0xff]
    %v219 = vld [vmem:[#allocation2 + $0x5a0] sm:$0xff]
    %v220 = vld [vmem:[#allocation2 + $0x5a8] sm:$0xff]
    %v221 = vld [vmem:[#allocation2 + $0x5b0] sm:$0xff]
    %v222 = vld [vmem:[#allocation2 + $0x5b8] sm:$0xff]
    %v223 = vld [vmem:[#allocation2 + $0x5c0] sm:$0xff]
    %v224 = vld [vmem:[#allocation2 + $0x5c8] sm:$0xff]
    %v225 = vld [vmem:[#allocation2 + $0x5d0] sm:$0xff]
    %v226 = vld [vmem:[#allocation2 + $0x5d8] sm:$0xff]
    %v227 = vld [vmem:[#allocation2 + $0x5e0] sm:$0xff]
    %v228 = vld [vmem:[#allocation2 + $0x5e8] sm:$0xff]
    %v229 = vld [vmem:[#allocation2 + $0x5f0] sm:$0xff]
    %v230 = vld [vmem:[#allocation2 + $0x5f8] sm:$0xff]
    %v231 = vld [vmem:[#allocation2 + $0x600] sm:$0xff]
    %v232 = vld [vmem:[#allocation2 + $0x608] sm:$0xff]
    %v233 = vld [vmem:[#allocation2 + $0x610] sm:$0xff]
    %v234 = vld [vmem:[#allocation2 + $0x618] sm:$0xff]
    %v235 = vld [vmem:[#allocation2 + $0x620] sm:$0xff]
    %v236 = vld [vmem:[#allocation2 + $0x628] sm:$0xff]
    %v237 = vld [vmem:[#allocation2 + $0x630] sm:$0xff]
    %v238 = vld [vmem:[#allocation2 + $0x638] sm:$0xff]
    %v239 = vld [vmem:[#allocation2 + $0x640] sm:$0xff]
    %v240 = vld [vmem:[#allocation2 + $0x648] sm:$0xff]
    %v241 = vld [vmem:[#allocation2 + $0x650] sm:$0xff]
    %v242 = vld [vmem:[#allocation2 + $0x658] sm:$0xff]
    %v243 = vld [vmem:[#allocation2 + $0x660] sm:$0xff]
    %v244 = vld [vmem:[#allocation2 + $0x668] sm:$0xff]
    %v245 = vld [vmem:[#allocation2 + $0x670] sm:$0xff]
    %v246 = vld [vmem:[#allocation2 + $0x678] sm:$0xff]
    %v247 = vld [vmem:[#allocation2 + $0x680] sm:$0xff]
    %v248 = vld [vmem:[#allocation2 + $0x688] sm:$0xff]
    %v249 = vld [vmem:[#allocation2 + $0x690] sm:$0xff]
    %v250 = vld [vmem:[#allocation2 + $0x698] sm:$0xff]
    %v251 = vld [vmem:[#allocation2 + $0x6a0] sm:$0xff]
    %v252 = vld [vmem:[#allocation2 + $0x6a8] sm:$0xff]
    %v253 = vld [vmem:[#allocation2 + $0x6b0] sm:$0xff]
    %v254 = vld [vmem:[#allocation2 + $0x6b8] sm:$0xff]
    %v255 = vld [vmem:[#allocation2 + $0x6c0] sm:$0xff]
    %v256 = vld [vmem:[#allocation2 + $0x6c8] sm:$0xff]
    %v257 = vld [vmem:[#allocation2 + $0x6d0] sm:$0xff]
    %v258 = vld [vmem:[#allocation2 + $0x6d8] sm:$0xff]
    %v259 = vld [vmem:[#allocation2 + $0x6e0] sm:$0xff]
    %v260 = vld [vmem:[#allocation2 + $0x6e8] sm:$0xff]
    %v261 = vld [vmem:[#allocation2 + $0x6f0] sm:$0xff]
    %v262 = vld [vmem:[#allocation2 + $0x6f8] sm:$0xff]
    %v263 = vld [vmem:[#allocation2 + $0x700] sm:$0xff]
    %v264 = vld [vmem:[#allocation2 + $0x708] sm:$0xff]
    %v265 = vld [vmem:[#allocation2 + $0x710] sm:$0xff]
    %v266 = vld [vmem:[#allocation2 + $0x718] sm:$0xff]
    %v267 = vld [vmem:[#allocation2 + $0x720] sm:$0xff]
    %v268 = vld [vmem:[#allocation2 + $0x728] sm:$0xff]
    %v269 = vld [vmem:[#allocation2 + $0x730] sm:$0xff]
    %v270 = vld [vmem:[#allocation2 + $0x738] sm:$0xff]
    %v271 = vld [vmem:[#allocation2 + $0x740] sm:$0xff]
    %v272 = vld [vmem:[#allocation2 + $0x748] sm:$0xff]
    %v273 = vld [vmem:[#allocation2 + $0x750] sm:$0xff]
    %v274 = vld [vmem:[#allocation2 + $0x758] sm:$0xff]
    %v275 = vld [vmem:[#allocation2 + $0x760] sm:$0xff]
    %v276 = vld [vmem:[#allocation2 + $0x768] sm:$0xff]
    %v277 = vld [vmem:[#allocation2 + $0x770] sm:$0xff]
    %v278 = vld [vmem:[#allocation2 + $0x778] sm:$0xff]
    %v279 = vld [vmem:[#allocation2 + $0x780] sm:$0xff]
    %v280 = vld [vmem:[#allocation2 + $0x788] sm:$0xff]
    %v281 = vld [vmem:[#allocation2 + $0x790] sm:$0xff]
    %v282 = vld [vmem:[#allocation2 + $0x798] sm:$0xff]
    %v283 = vld [vmem:[#allocation2 + $0x7a0] sm:$0xff]
    %v284 = vld [vmem:[#allocation2 + $0x7a8] sm:$0xff]
    %v285 = vld [vmem:[#allocation2 + $0x7b0] sm:$0xff]
    %v286 = vld [vmem:[#allocation2 + $0x7b8] sm:$0xff]
    %v287 = vld [vmem:[#allocation2 + $0x7c0] sm:$0xff]
    %v288 = vld [vmem:[#allocation2 + $0x7c8] sm:$0xff]
    %v289 = vld [vmem:[#allocation2 + $0x7d0] sm:$0xff]
    %v290 = vld [vmem:[#allocation2 + $0x7d8] sm:$0xff]
    %v291 = vld [vmem:[#allocation2 + $0x7e0] sm:$0xff]
    %v292 = vld [vmem:[#allocation2 + $0x7e8] sm:$0xff]
    %v293 = vld [vmem:[#allocation2 + $0x7f0] sm:$0xff]
    %v294 = vld [vmem:[#allocation2 + $0x7f8] sm:$0xff]
    %v295 = vld [vmem:[#allocation2 + $0x800] sm:$0xff]
    %v296 = vld [vmem:[#allocation2 + $0x808] sm:$0xff]
    %v297 = vld [vmem:[#allocation2 + $0x810] sm:$0xff]
    %v298 = vld [vmem:[#allocation2 + $0x818] sm:$0xff]
    %v299 = vld [vmem:[#allocation2 + $0x820] sm:$0xff]
    %v300 = vld [vmem:[#allocation2 + $0x828] sm:$0xff]
    %v301 = vld [vmem:[#allocation2 + $0x830] sm:$0xff]
    %v302 = vld [vmem:[#allocation2 + $0x838] sm:$0xff]
    %v303 = vld [vmem:[#allocation2 + $0x840] sm:$0xff]
    %v304 = vld [vmem:[#allocation2 + $0x848] sm:$0xff]
    %v305 = vld [vmem:[#allocation2 + $0x850] sm:$0xff]
    %v306 = vld [vmem:[#allocation2 + $0x858] sm:$0xff]
    %v307 = vld [vmem:[#allocation2 + $0x860] sm:$0xff]
    %v308 = vld [vmem:[#allocation2 + $0x868] sm:$0xff]
    %v309 = vld [vmem:[#allocation2 + $0x870] sm:$0xff]
    %v310 = vld [vmem:[#allocation2 + $0x878] sm:$0xff]
    %v311 = vld [vmem:[#allocation2 + $0x880] sm:$0xff]
    %v312 = vld [vmem:[#allocation2 + $0x888] sm:$0xff]
    %v313 = vld [vmem:[#allocation2 + $0x890] sm:$0xff]
    %v314 = vld [vmem:[#allocation2 + $0x898] sm:$0xff]
    %v315 = vld [vmem:[#allocation2 + $0x8a0] sm:$0xff]
    %v316 = vld [vmem:[#allocation2 + $0x8a8] sm:$0xff]
    %v317 = vld [vmem:[#allocation2 + $0x8b0] sm:$0xff]
    %v318 = vld [vmem:[#allocation2 + $0x8b8] sm:$0xff]
    %v319 = vld [vmem:[#allocation2 + $0x8c0] sm:$0xff]
    %v320 = vld [vmem:[#allocation2 + $0x8c8] sm:$0xff]
    %v321 = vld [vmem:[#allocation2 + $0x8d0] sm:$0xff]
    %v322 = vld [vmem:[#allocation2 + $0x8d8] sm:$0xff]
    %v323 = vld [vmem:[#allocation2 + $0x8e0] sm:$0xff]
    %v324 = vld [vmem:[#allocation2 + $0x8e8] sm:$0xff]
    %v325 = vld [vmem:[#allocation2 + $0x8f0] sm:$0xff]
    %v326 = vld [vmem:[#allocation2 + $0x8f8] sm:$0xff]
    %v327 = vld [vmem:[#allocation2 + $0x900] sm:$0xff]
    %v328 = vld [vmem:[#allocation2 + $0x908] sm:$0xff]
    %v329 = vld [vmem:[#allocation2 + $0x910] sm:$0xff]
    %v330 = vld [vmem:[#allocation2 + $0x918] sm:$0xff]
    %v331 = vld [vmem:[#allocation2 + $0x920] sm:$0xff]
    %v332 = vld [vmem:[#allocation2 + $0x928] sm:$0xff]
    %v333 = vld [vmem:[#allocation2 + $0x930] sm:$0xff]
    %v334 = vld [vmem:[#allocation2 + $0x938] sm:$0xff]
    %v335 = vld [vmem:[#allocation2 + $0x940] sm:$0xff]
    %v336 = vld [vmem:[#allocation2 + $0x948] sm:$0xff]
    %v337 = vld [vmem:[#allocation2 + $0x950] sm:$0xff]
    %v338 = vld [vmem:[#allocation2 + $0x958] sm:$0xff]
    %v339 = vld [vmem:[#allocation2 + $0x960] sm:$0xff]
    %v340 = vld [vmem:[#allocation2 + $0x968] sm:$0xff]
    %v341 = vld [vmem:[#allocation2 + $0x970] sm:$0xff]
    %v342 = vld [vmem:[#allocation2 + $0x978] sm:$0xff]
    %v343 = vld [vmem:[#allocation2 + $0x980] sm:$0xff]
    %v344 = vld [vmem:[#allocation2 + $0x988] sm:$0xff]
    %v345 = vld [vmem:[#allocation2 + $0x990] sm:$0xff]
    %v346 = vld [vmem:[#allocation2 + $0x998] sm:$0xff]
    %v347 = vld [vmem:[#allocation2 + $0x9a0] sm:$0xff]
    %v348 = vld [vmem:[#allocation2 + $0x9a8] sm:$0xff]
    %v349 = vld [vmem:[#allocation2 + $0x9b0] sm:$0xff]
    %v350 = vld [vmem:[#allocation2 + $0x9b8] sm:$0xff]
    %v351 = vld [vmem:[#allocation2 + $0x9c0] sm:$0xff]
    %v352 = vld [vmem:[#allocation2 + $0x9c8] sm:$0xff]
    %v353 = vld [vmem:[#allocation2 + $0x9d0] sm:$0xff]
    %v354 = vld [vmem:[#allocation2 + $0x9d8] sm:$0xff]
    %v355 = vld [vmem:[#allocation2 + $0x9e0] sm:$0xff]
    %v356 = vld [vmem:[#allocation2 + $0x9e8] sm:$0xff]
    %v357 = vld [vmem:[#allocation2 + $0x9f0] sm:$0xff]
    %v358 = vld [vmem:[#allocation2 + $0x9f8] sm:$0xff]
    %v359 = vld [vmem:[#allocation2 + $0xa00] sm:$0xff]
    %v360 = vld [vmem:[#allocation2 + $0xa08] sm:$0xff]
    %v361 = vld [vmem:[#allocation2 + $0xa10] sm:$0xff]
    %v362 = vld [vmem:[#allocation2 + $0xa18] sm:$0xff]
    %v363 = vld [vmem:[#allocation2 + $0xa20] sm:$0xff]
    %v364 = vld [vmem:[#allocation2 + $0xa28] sm:$0xff]
    %v365 = vld [vmem:[#allocation2 + $0xa30] sm:$0xff]
    %v366 = vld [vmem:[#allocation2 + $0xa38] sm:$0xff]
    %v367 = vld [vmem:[#allocation2 + $0xa40] sm:$0xff]
    %v368 = vld [vmem:[#allocation2 + $0xa48] sm:$0xff]
    %v369 = vld [vmem:[#allocation2 + $0xa50] sm:$0xff]
    %v370 = vld [vmem:[#allocation2 + $0xa58] sm:$0xff]
    %v371 = vld [vmem:[#allocation2 + $0xa60] sm:$0xff]
    %v372 = vld [vmem:[#allocation2 + $0xa68] sm:$0xff]
    %v373 = vld [vmem:[#allocation2 + $0xa70] sm:$0xff]
    %v374 = vld [vmem:[#allocation2 + $0xa78] sm:$0xff]
    %v375 = vld [vmem:[#allocation2 + $0xa80] sm:$0xff]
    %v376 = vld [vmem:[#allocation2 + $0xa88] sm:$0xff]
    %v377 = vld [vmem:[#allocation2 + $0xa90] sm:$0xff]
    %v378 = vld [vmem:[#allocation2 + $0xa98] sm:$0xff]
    %v379 = vld [vmem:[#allocation2 + $0xaa0] sm:$0xff]
    %v380 = vld [vmem:[#allocation2 + $0xaa8] sm:$0xff]
    %v381 = vld [vmem:[#allocation2 + $0xab0] sm:$0xff]
    %v382 = vld [vmem:[#allocation2 + $0xab8] sm:$0xff]
    %v383 = vld [vmem:[#allocation2 + $0xac0] sm:$0xff]
    %v384 = vld [vmem:[#allocation2 + $0xac8] sm:$0xff]
    %v385 = vld [vmem:[#allocation2 + $0xad0] sm:$0xff]
    %v386 = vld [vmem:[#allocation2 + $0xad8] sm:$0xff]
    %v387 = vld [vmem:[#allocation2 + $0xae0] sm:$0xff]
    %v388 = vld [vmem:[#allocation2 + $0xae8] sm:$0xff]
    %v389 = vld [vmem:[#allocation2 + $0xaf0] sm:$0xff]
    %v390 = vld [vmem:[#allocation2 + $0xaf8] sm:$0xff]
    %v391 = vld [vmem:[#allocation2 + $0xb00] sm:$0xff]
    %v392 = vld [vmem:[#allocation2 + $0xb08] sm:$0xff]
    %v393 = vld [vmem:[#allocation2 + $0xb10] sm:$0xff]
    %v394 = vld [vmem:[#allocation2 + $0xb18] sm:$0xff]
    %v395 = vld [vmem:[#allocation2 + $0xb20] sm:$0xff]
    %v396 = vld [vmem:[#allocation2 + $0xb28] sm:$0xff]
    %v397 = vld [vmem:[#allocation2 + $0xb30] sm:$0xff]
    %v398 = vld [vmem:[#allocation2 + $0xb38] sm:$0xff]
    %v399 = vld [vmem:[#allocation2 + $0xb40] sm:$0xff]
    %v400 = vld [vmem:[#allocation2 + $0xb48] sm:$0xff]
    %v401 = vld [vmem:[#allocation2 + $0xb50] sm:$0xff]
    %v402 = vld [vmem:[#allocation2 + $0xb58] sm:$0xff]
    %v403 = vld [vmem:[#allocation2 + $0xb60] sm:$0xff]
    %v404 = vld [vmem:[#allocation2 + $0xb68] sm:$0xff]
    %v405 = vld [vmem:[#allocation2 + $0xb70] sm:$0xff]
    %v406 = vld [vmem:[#allocation2 + $0xb78] sm:$0xff]
    %v407 = vld [vmem:[#allocation2 + $0xb80] sm:$0xff]
    %v408 = vld [vmem:[#allocation2 + $0xb88] sm:$0xff]
    %v409 = vld [vmem:[#allocation2 + $0xb90] sm:$0xff]
    %v410 = vld [vmem:[#allocation2 + $0xb98] sm:$0xff]
    %v411 = vld [vmem:[#allocation2 + $0xba0] sm:$0xff]
    %v412 = vld [vmem:[#allocation2 + $0xba8] sm:$0xff]
    %v413 = vld [vmem:[#allocation2 + $0xbb0] sm:$0xff]
    %v414 = vld [vmem:[#allocation2 + $0xbb8] sm:$0xff]
    %v415 = vld [vmem:[#allocation2 + $0xbc0] sm:$0xff]
    %v416 = vld [vmem:[#allocation2 + $0xbc8] sm:$0xff]
    %v417 = vld [vmem:[#allocation2 + $0xbd0] sm:$0xff]
    %v418 = vld [vmem:[#allocation2 + $0xbd8] sm:$0xff]
    %v419 = vld [vmem:[#allocation2 + $0xbe0] sm:$0xff]
    %v420 = vld [vmem:[#allocation2 + $0xbe8] sm:$0xff]
    %v421 = vld [vmem:[#allocation2 + $0xbf0] sm:$0xff]
    %v422 = vld [vmem:[#allocation2 + $0xbf8] sm:$0xff]
    %v423 = vld [vmem:[#allocation2 + $0xc00] sm:$0xff]
    %v424 = vld [vmem:[#allocation2 + $0xc08] sm:$0xff]
    %v425 = vld [vmem:[#allocation2 + $0xc10] sm:$0xff]
    %v426 = vld [vmem:[#allocation2 + $0xc18] sm:$0xff]
    %v427 = vld [vmem:[#allocation2 + $0xc20] sm:$0xff]
    %v428 = vld [vmem:[#allocation2 + $0xc28] sm:$0xff]
    %v429 = vld [vmem:[#allocation2 + $0xc30] sm:$0xff]
    %v430 = vld [vmem:[#allocation2 + $0xc38] sm:$0xff]
    %v431 = vld [vmem:[#allocation2 + $0xc40] sm:$0xff]
    %v432 = vld [vmem:[#allocation2 + $0xc48] sm:$0xff]
    %v433 = vld [vmem:[#allocation2 + $0xc50] sm:$0xff]
    %v434 = vld [vmem:[#allocation2 + $0xc58] sm:$0xff]
    %v435 = vld [vmem:[#allocation2 + $0xc60] sm:$0xff]
    %v436 = vld [vmem:[#allocation2 + $0xc68] sm:$0xff]
    %v437 = vld [vmem:[#allocation2 + $0xc70] sm:$0xff]
    %v438 = vld [vmem:[#allocation2 + $0xc78] sm:$0xff]
    %v439 = vld [vmem:[#allocation2 + $0xc80] sm:$0xff]
    %v440 = vld [vmem:[#allocation2 + $0xc88] sm:$0xff]
    %v441 = vld [vmem:[#allocation2 + $0xc90] sm:$0xff]
    %v442 = vld [vmem:[#allocation2 + $0xc98] sm:$0xff]
    %v443 = vld [vmem:[#allocation2 + $0xca0] sm:$0xff]
    %v444 = vld [vmem:[#allocation2 + $0xca8] sm:$0xff]
    %v445 = vld [vmem:[#allocation2 + $0xcb0] sm:$0xff]
    %v446 = vld [vmem:[#allocation2 + $0xcb8] sm:$0xff]
    %v447 = vld [vmem:[#allocation2 + $0xcc0] sm:$0xff]
    %v448 = vld [vmem:[#allocation2 + $0xcc8] sm:$0xff]
    %v449 = vld [vmem:[#allocation2 + $0xcd0] sm:$0xff]
    %v450 = vld [vmem:[#allocation2 + $0xcd8] sm:$0xff]
    %v451 = vld [vmem:[#allocation2 + $0xce0] sm:$0xff]
    %v452 = vld [vmem:[#allocation2 + $0xce8] sm:$0xff]
    %v453 = vld [vmem:[#allocation2 + $0xcf0] sm:$0xff]
    %v454 = vld [vmem:[#allocation2 + $0xcf8] sm:$0xff]
    %v455 = vld [vmem:[#allocation2 + $0xd00] sm:$0xff]
    %v456 = vld [vmem:[#allocation2 + $0xd08] sm:$0xff]
    %v457 = vld [vmem:[#allocation2 + $0xd10] sm:$0xff]
    %v458 = vld [vmem:[#allocation2 + $0xd18] sm:$0xff]
    %v459 = vld [vmem:[#allocation2 + $0xd20] sm:$0xff]
    %v460 = vld [vmem:[#allocation2 + $0xd28] sm:$0xff]
    %v461 = vld [vmem:[#allocation2 + $0xd30] sm:$0xff]
    %v462 = vld [vmem:[#allocation2 + $0xd38] sm:$0xff]
    %v463 = vld [vmem:[#allocation2 + $0xd40] sm:$0xff]
    %v464 = vld [vmem:[#allocation2 + $0xd48] sm:$0xff]
    %v465 = vld [vmem:[#allocation2 + $0xd50] sm:$0xff]
    %v466 = vld [vmem:[#allocation2 + $0xd58] sm:$0xff]
    %v467 = vld [vmem:[#allocation2 + $0xd60] sm:$0xff]
    %v468 = vld [vmem:[#allocation2 + $0xd68] sm:$0xff]
    %v469 = vld [vmem:[#allocation2 + $0xd70] sm:$0xff]
    %v470 = vld [vmem:[#allocation2 + $0xd78] sm:$0xff]
    %v471 = vld [vmem:[#allocation2 + $0xd80] sm:$0xff]
    %v472 = vld [vmem:[#allocation2 + $0xd88] sm:$0xff]
    %v473 = vld [vmem:[#allocation2 + $0xd90] sm:$0xff]
    %v474 = vld [vmem:[#allocation2 + $0xd98] sm:$0xff]
    %v475 = vld [vmem:[#allocation2 + $0xda0] sm:$0xff]
    %v476 = vld [vmem:[#allocation2 + $0xda8] sm:$0xff]
    %v477 = vld [vmem:[#allocation2 + $0xdb0] sm:$0xff]
    %v478 = vld [vmem:[#allocation2 + $0xdb8] sm:$0xff]
    %v479 = vld [vmem:[#allocation2 + $0xdc0] sm:$0xff]
    %v480 = vld [vmem:[#allocation2 + $0xdc8] sm:$0xff]
    %v481 = vld [vmem:[#allocation2 + $0xdd0] sm:$0xff]
    %v482 = vld [vmem:[#allocation2 + $0xdd8] sm:$0xff]
    %v483 = vld [vmem:[#allocation2 + $0xde0] sm:$0xff]
    %v484 = vld [vmem:[#allocation2 + $0xde8] sm:$0xff]
    %v485 = vld [vmem:[#allocation2 + $0xdf0] sm:$0xff]
    %v486 = vld [vmem:[#allocation2 + $0xdf8] sm:$0xff]
    %v487 = vld [vmem:[#allocation2 + $0xe00] sm:$0xff]
    %v488 = vld [vmem:[#allocation2 + $0xe08] sm:$0xff]
    %v489 = vld [vmem:[#allocation2 + $0xe10] sm:$0xff]
    %v490 = vld [vmem:[#allocation2 + $0xe18] sm:$0xff]
    %v491 = vld [vmem:[#allocation2 + $0xe20] sm:$0xff]
    %v492 = vld [vmem:[#allocation2 + $0xe28] sm:$0xff]
    %v493 = vld [vmem:[#allocation2 + $0xe30] sm:$0xff]
    %v494 = vld [vmem:[#allocation2 + $0xe38] sm:$0xff]
    %v495 = vld [vmem:[#allocation2 + $0xe40] sm:$0xff]
    %v496 = vld [vmem:[#allocation2 + $0xe48] sm:$0xff]
    %v497 = vld [vmem:[#allocation2 + $0xe50] sm:$0xff]
    %v498 = vld [vmem:[#allocation2 + $0xe58] sm:$0xff]
    %v499 = vld [vmem:[#allocation2 + $0xe60] sm:$0xff]
    %v500 = vld [vmem:[#allocation2 + $0xe68] sm:$0xff]
    %v501 = vld [vmem:[#allocation2 + $0xe70] sm:$0xff]
    %v502 = vld [vmem:[#allocation2 + $0xe78] sm:$0xff]
    %v503 = vld [vmem:[#allocation2 + $0xe80] sm:$0xff]
    %v504 = vld [vmem:[#allocation2 + $0xe88] sm:$0xff]
    %v505 = vld [vmem:[#allocation2 + $0xe90] sm:$0xff]
    %v506 = vld [vmem:[#allocation2 + $0xe98] sm:$0xff]
    %v507 = vld [vmem:[#allocation2 + $0xea0] sm:$0xff]
    %v508 = vld [vmem:[#allocation2 + $0xea8] sm:$0xff]
    %v509 = vld [vmem:[#allocation2 + $0xeb0] sm:$0xff]
    %v510 = vld [vmem:[#allocation2 + $0xeb8] sm:$0xff]
    %v511 = vld [vmem:[#allocation2 + $0xec0] sm:$0xff]
    %v512 = vld [vmem:[#allocation2 + $0xec8] sm:$0xff]
    %v513 = vld [vmem:[#allocation2 + $0xed0] sm:$0xff]
    %v514 = vld [vmem:[#allocation2 + $0xed8] sm:$0xff]
    %v515 = vld [vmem:[#allocation2 + $0xee0] sm:$0xff]
    %v516 = vld [vmem:[#allocation2 + $0xee8] sm:$0xff]
    %v517 = vld [vmem:[#allocation2 + $0xef0] sm:$0xff]
    %v518 = vld [vmem:[#allocation2 + $0xef8] sm:$0xff]
    %v519 = vld [vmem:[#allocation2 + $0xf00] sm:$0xff]
    %v520 = vld [vmem:[#allocation2 + $0xf08] sm:$0xff]
    %v521 = vld [vmem:[#allocation2 + $0xf10] sm:$0xff]
    %v522 = vld [vmem:[#allocation2 + $0xf18] sm:$0xff]
    %v523 = vld [vmem:[#allocation2 + $0xf20] sm:$0xff]
    %v524 = vld [vmem:[#allocation2 + $0xf28] sm:$0xff]
    %v525 = vld [vmem:[#allocation2 + $0xf30] sm:$0xff]
    %v526 = vld [vmem:[#allocation2 + $0xf38] sm:$0xff]
    %v527 = vld [vmem:[#allocation2 + $0xf40] sm:$0xff]
    %v528 = vld [vmem:[#allocation2 + $0xf48] sm:$0xff]
    %v529 = vld [vmem:[#allocation2 + $0xf50] sm:$0xff]
    %v530 = vld [vmem:[#allocation2 + $0xf58] sm:$0xff]
    %v531 = vld [vmem:[#allocation2 + $0xf60] sm:$0xff]
    %v532 = vld [vmem:[#allocation2 + $0xf68] sm:$0xff]
    %v533 = vld [vmem:[#allocation2 + $0xf70] sm:$0xff]
    %v534 = vld [vmem:[#allocation2 + $0xf78] sm:$0xff]
    %v535 = vld [vmem:[#allocation2 + $0xf80] sm:$0xff]
    %v536 = vld [vmem:[#allocation2 + $0xf88] sm:$0xff]
    %v537 = vld [vmem:[#allocation2 + $0xf90] sm:$0xff]
    %v538 = vld [vmem:[#allocation2 + $0xf98] sm:$0xff]
    %v539 = vld [vmem:[#allocation2 + $0xfa0] sm:$0xff]
    %v540 = vld [vmem:[#allocation2 + $0xfa8] sm:$0xff]
    %v541 = vld [vmem:[#allocation2 + $0xfb0] sm:$0xff]
    %v542 = vld [vmem:[#allocation2 + $0xfb8] sm:$0xff]
    %v543 = vld [vmem:[#allocation2 + $0xfc0] sm:$0xff]
    %v544 = vld [vmem:[#allocation2 + $0xfc8] sm:$0xff]
    %v545 = vld [vmem:[#allocation2 + $0xfd0] sm:$0xff]
    %v546 = vld [vmem:[#allocation2 + $0xfd8] sm:$0xff]
    %v547 = vld [vmem:[#allocation2 + $0xfe0] sm:$0xff]
    %v548 = vld [vmem:[#allocation2 + $0xfe8] sm:$0xff]
    %v549 = vld [vmem:[#allocation2 + $0xff0] sm:$0xff]
    %v550 = vld [vmem:[#allocation2 + $0xff8] sm:$0xff]
    %v551 = vld [vmem:[#allocation2 + $0x1000] sm:$0xff]
    %v552 = vld [vmem:[#allocation2 + $0x1008] sm:$0xff]
    %v553 = vld [vmem:[#allocation2 + $0x1010] sm:$0xff]
    %v554 = vld [vmem:[#allocation2 + $0x1018] sm:$0xff]
    %v555 = vld [vmem:[#allocation2 + $0x1020] sm:$0xff]
    %v556 = vld [vmem:[#allocation2 + $0x1028] sm:$0xff]
    %v557 = vld [vmem:[#allocation2 + $0x1030] sm:$0xff]
    %v558 = vld [vmem:[#allocation2 + $0x1038] sm:$0xff]
    %v559 = vld [vmem:[#allocation2 + $0x1040] sm:$0xff]
    %v560 = vld [vmem:[#allocation2 + $0x1048] sm:$0xff]
    %v561 = vld [vmem:[#allocation2 + $0x1050] sm:$0xff]
    %v562 = vld [vmem:[#allocation2 + $0x1058] sm:$0xff]
    %v563 = vld [vmem:[#allocation2 + $0x1060] sm:$0xff]
    %v564 = vld [vmem:[#allocation2 + $0x1068] sm:$0xff]
    %v565 = vld [vmem:[#allocation2 + $0x1070] sm:$0xff]
    %v566 = vld [vmem:[#allocation2 + $0x1078] sm:$0xff]
    %v567 = vld [vmem:[#allocation2 + $0x1080] sm:$0xff]
    %v568 = vld [vmem:[#allocation2 + $0x1088] sm:$0xff]
    %v569 = vld [vmem:[#allocation2 + $0x1090] sm:$0xff]
    %v570 = vld [vmem:[#allocation2 + $0x1098] sm:$0xff]
    %v571 = vld [vmem:[#allocation2 + $0x10a0] sm:$0xff]
    %v572 = vld [vmem:[#allocation2 + $0x10a8] sm:$0xff]
    %v573 = vld [vmem:[#allocation2 + $0x10b0] sm:$0xff]
    %v574 = vld [vmem:[#allocation2 + $0x10b8] sm:$0xff]
    %v575 = vld [vmem:[#allocation2 + $0x10c0] sm:$0xff]
    %v576 = vld [vmem:[#allocation2 + $0x10c8] sm:$0xff]
    %v577 = vld [vmem:[#allocation2 + $0x10d0] sm:$0xff]
    %v578 = vld [vmem:[#allocation2 + $0x10d8] sm:$0xff]
    %v579 = vld [vmem:[#allocation2 + $0x10e0] sm:$0xff]
    %v580 = vld [vmem:[#allocation2 + $0x10e8] sm:$0xff]
    %v581 = vld [vmem:[#allocation2 + $0x10f0] sm:$0xff]
    %v582 = vld [vmem:[#allocation2 + $0x10f8] sm:$0xff]
    %v583 = vld [vmem:[#allocation2 + $0x1100] sm:$0xff]
    %v584 = vld [vmem:[#allocation2 + $0x1108] sm:$0xff]
    %v585 = vld [vmem:[#allocation2 + $0x1110] sm:$0xff]
    %v586 = vld [vmem:[#allocation2 + $0x1118] sm:$0xff]
    %v587 = vld [vmem:[#allocation2 + $0x1120] sm:$0xff]
    %v588 = vld [vmem:[#allocation2 + $0x1128] sm:$0xff]
    %v589 = vld [vmem:[#allocation2 + $0x1130] sm:$0xff]
    %v590 = vld [vmem:[#allocation2 + $0x1138] sm:$0xff]
    %v591 = vld [vmem:[#allocation2 + $0x1140] sm:$0xff]
    %v592 = vld [vmem:[#allocation2 + $0x1148] sm:$0xff]
    %v593 = vld [vmem:[#allocation2 + $0x1150] sm:$0xff]
    %v594 = vld [vmem:[#allocation2 + $0x1158] sm:$0xff]
    %v595 = vld [vmem:[#allocation2 + $0x1160] sm:$0xff]
    %v596 = vld [vmem:[#allocation2 + $0x1168] sm:$0xff]
    %v597 = vld [vmem:[#allocation2 + $0x1170] sm:$0xff]
    %v598 = vld [vmem:[#allocation2 + $0x1178] sm:$0xff]
    %v599 = vld [vmem:[#allocation2 + $0x1180] sm:$0xff]
    %v600 = vld [vmem:[#allocation2 + $0x1188] sm:$0xff]
    %v601 = vld [vmem:[#allocation2 + $0x1190] sm:$0xff]
    %v602 = vld [vmem:[#allocation2 + $0x1198] sm:$0xff]
    %v603 = vld [vmem:[#allocation2 + $0x11a0] sm:$0xff]
    %v604 = vld [vmem:[#allocation2 + $0x11a8] sm:$0xff]
    %v605 = vld [vmem:[#allocation2 + $0x11b0] sm:$0xff]
    %v606 = vld [vmem:[#allocation2 + $0x11b8] sm:$0xff]
    %v607 = vld [vmem:[#allocation2 + $0x11c0] sm:$0xff]
    %v608 = vld [vmem:[#allocation2 + $0x11c8] sm:$0xff]
    %v609 = vld [vmem:[#allocation2 + $0x11d0] sm:$0xff]
    %v610 = vld [vmem:[#allocation2 + $0x11d8] sm:$0xff]
    %v611 = vld [vmem:[#allocation2 + $0x11e0] sm:$0xff]
    %v612 = vld [vmem:[#allocation2 + $0x11e8] sm:$0xff]
    %v613 = vld [vmem:[#allocation2 + $0x11f0] sm:$0xff]
    %v614 = vld [vmem:[#allocation2 + $0x11f8] sm:$0xff]
    %v615 = vld [vmem:[#allocation2 + $0x1200] sm:$0xff]
    %v616 = vld [vmem:[#allocation2 + $0x1208] sm:$0xff]
    %v617 = vld [vmem:[#allocation2 + $0x1210] sm:$0xff]
    %v618 = vld [vmem:[#allocation2 + $0x1218] sm:$0xff]
    %v619 = vld [vmem:[#allocation2 + $0x1220] sm:$0xff]
    %v620 = vld [vmem:[#allocation2 + $0x1228] sm:$0xff]
    %v621 = vld [vmem:[#allocation2 + $0x1230] sm:$0xff]
    %v622 = vld [vmem:[#allocation2 + $0x1238] sm:$0xff]
    %v623 = vld [vmem:[#allocation2 + $0x1240] sm:$0xff]
    %v624 = vld [vmem:[#allocation2 + $0x1248] sm:$0xff]
    %v625 = vld [vmem:[#allocation2 + $0x1250] sm:$0xff]
    %v626 = vld [vmem:[#allocation2 + $0x1258] sm:$0xff]
    %v627 = vld [vmem:[#allocation2 + $0x1260] sm:$0xff]
    %v628 = vld [vmem:[#allocation2 + $0x1268] sm:$0xff]
    %v629 = vld [vmem:[#allocation2 + $0x1270] sm:$0xff]
    %v630 = vld [vmem:[#allocation2 + $0x1278] sm:$0xff]
    %v631 = vld [vmem:[#allocation2 + $0x1280] sm:$0xff]
    %v632 = vld [vmem:[#allocation2 + $0x1288] sm:$0xff]
    %v633 = vld [vmem:[#allocation2 + $0x1290] sm:$0xff]
    %v634 = vld [vmem:[#allocation2 + $0x1298] sm:$0xff]
    %v635 = vld [vmem:[#allocation2 + $0x12a0] sm:$0xff]
    %v636 = vld [vmem:[#allocation2 + $0x12a8] sm:$0xff]
    %v637 = vld [vmem:[#allocation2 + $0x12b0] sm:$0xff]
    %v638 = vld [vmem:[#allocation2 + $0x12b8] sm:$0xff]
    %v639 = vld [vmem:[#allocation2 + $0x12c0] sm:$0xff]
    %v640 = vld [vmem:[#allocation2 + $0x12c8] sm:$0xff]
    %v641 = vld [vmem:[#allocation2 + $0x12d0] sm:$0xff]
    %v642 = vld [vmem:[#allocation2 + $0x12d8] sm:$0xff]
    %v643 = vld [vmem:[#allocation2 + $0x12e0] sm:$0xff]
    %v644 = vld [vmem:[#allocation2 + $0x12e8] sm:$0xff]
    %v645 = vld [vmem:[#allocation2 + $0x12f0] sm:$0xff]
    %v646 = vld [vmem:[#allocation2 + $0x12f8] sm:$0xff]
    %v647 = vld [vmem:[#allocation2 + $0x1300] sm:$0xff]
    %v648 = vld [vmem:[#allocation2 + $0x1308] sm:$0xff]
    %v649 = vld [vmem:[#allocation2 + $0x1310] sm:$0xff]
    %v650 = vld [vmem:[#allocation2 + $0x1318] sm:$0xff]
    %v651 = vld [vmem:[#allocation2 + $0x1320] sm:$0xff]
    %v652 = vld [vmem:[#allocation2 + $0x1328] sm:$0xff]
    %v653 = vld [vmem:[#allocation2 + $0x1330] sm:$0xff]
    %v654 = vld [vmem:[#allocation2 + $0x1338] sm:$0xff]
    %v655 = vld [vmem:[#allocation2 + $0x1340] sm:$0xff]
    %v656 = vld [vmem:[#allocation2 + $0x1348] sm:$0xff]
    %v657 = vld [vmem:[#allocation2 + $0x1350] sm:$0xff]
    %v658 = vld [vmem:[#allocation2 + $0x1358] sm:$0xff]
    %v659 = vld [vmem:[#allocation2 + $0x1360] sm:$0xff]
    %v660 = vld [vmem:[#allocation2 + $0x1368] sm:$0xff]
    %v661 = vld [vmem:[#allocation2 + $0x1370] sm:$0xff]
    %v662 = vld [vmem:[#allocation2 + $0x1378] sm:$0xff]
    %v663 = vld [vmem:[#allocation2 + $0x1380] sm:$0xff]
    %v664 = vld [vmem:[#allocation2 + $0x1388] sm:$0xff]
    %v665 = vld [vmem:[#allocation2 + $0x1390] sm:$0xff]
    %v666 = vld [vmem:[#allocation2 + $0x1398] sm:$0xff]
    %v667 = vld [vmem:[#allocation2 + $0x13a0] sm:$0xff]
    %v668 = vld [vmem:[#allocation2 + $0x13a8] sm:$0xff]
    %v669 = vld [vmem:[#allocation2 + $0x13b0] sm:$0xff]
    %v670 = vld [vmem:[#allocation2 + $0x13b8] sm:$0xff]
    %v671 = vld [vmem:[#allocation2 + $0x13c0] sm:$0xff]
    %v672 = vld [vmem:[#allocation2 + $0x13c8] sm:$0xff]
    %v673 = vld [vmem:[#allocation2 + $0x13d0] sm:$0xff]
    %v674 = vld [vmem:[#allocation2 + $0x13d8] sm:$0xff]
    %v675 = vld [vmem:[#allocation2 + $0x13e0] sm:$0xff]
    %v676 = vld [vmem:[#allocation2 + $0x13e8] sm:$0xff]
    %v677 = vld [vmem:[#allocation2 + $0x13f0] sm:$0xff]
    %v678 = vld [vmem:[#allocation2 + $0x13f8] sm:$0xff]
    %v679 = vld [vmem:[#allocation2 + $0x1400] sm:$0xff]
    %v680 = vld [vmem:[#allocation2 + $0x1408] sm:$0xff]
    %v681 = vld [vmem:[#allocation2 + $0x1410] sm:$0xff]
    %v682 = vld [vmem:[#allocation2 + $0x1418] sm:$0xff]
    %v683 = vld [vmem:[#allocation2 + $0x1420] sm:$0xff]
    %v684 = vld [vmem:[#allocation2 + $0x1428] sm:$0xff]
    %v685 = vld [vmem:[#allocation2 + $0x1430] sm:$0xff]
    %v686 = vld [vmem:[#allocation2 + $0x1438] sm:$0xff]
    %v687 = vld [vmem:[#allocation2 + $0x1440] sm:$0xff]
    %v688 = vld [vmem:[#allocation2 + $0x1448] sm:$0xff]
    %v689 = vld [vmem:[#allocation2 + $0x1450] sm:$0xff]
    %v690 = vld [vmem:[#allocation2 + $0x1458] sm:$0xff]
    %v691 = vld [vmem:[#allocation2 + $0x1460] sm:$0xff]
    %v692 = vld [vmem:[#allocation2 + $0x1468] sm:$0xff]
    %v693 = vld [vmem:[#allocation2 + $0x1470] sm:$0xff]
    %v694 = vld [vmem:[#allocation2 + $0x1478] sm:$0xff]
    %v695 = vld [vmem:[#allocation2 + $0x1480] sm:$0xff]
    %v696 = vld [vmem:[#allocation2 + $0x1488] sm:$0xff]
    %v697 = vld [vmem:[#allocation2 + $0x1490] sm:$0xff]
    %v698 = vld [vmem:[#allocation2 + $0x1498] sm:$0xff]
    %v699 = vld [vmem:[#allocation2 + $0x14a0] sm:$0xff]
    %v700 = vld [vmem:[#allocation2 + $0x14a8] sm:$0xff]
    %v701 = vld [vmem:[#allocation2 + $0x14b0] sm:$0xff]
    %v702 = vld [vmem:[#allocation2 + $0x14b8] sm:$0xff]
    %v703 = vld [vmem:[#allocation2 + $0x14c0] sm:$0xff]
    %v704 = vld [vmem:[#allocation2 + $0x14c8] sm:$0xff]
    %v705 = vld [vmem:[#allocation2 + $0x14d0] sm:$0xff]
    %v706 = vld [vmem:[#allocation2 + $0x14d8] sm:$0xff]
    %v707 = vld [vmem:[#allocation2 + $0x14e0] sm:$0xff]
    %v708 = vld [vmem:[#allocation2 + $0x14e8] sm:$0xff]
    %v709 = vld [vmem:[#allocation2 + $0x14f0] sm:$0xff]
    %v710 = vld [vmem:[#allocation2 + $0x14f8] sm:$0xff]
    %v711 = vld [vmem:[#allocation2 + $0x1500] sm:$0xff]
    %v712 = vld [vmem:[#allocation2 + $0x1508] sm:$0xff]
    %v713 = vld [vmem:[#allocation2 + $0x1510] sm:$0xff]
    %v714 = vld [vmem:[#allocation2 + $0x1518] sm:$0xff]
    %v715 = vld [vmem:[#allocation2 + $0x1520] sm:$0xff]
    %v716 = vld [vmem:[#allocation2 + $0x1528] sm:$0xff]
    %v717 = vld [vmem:[#allocation2 + $0x1530] sm:$0xff]
    %v718 = vld [vmem:[#allocation2 + $0x1538] sm:$0xff]
    %v719 = vld [vmem:[#allocation2 + $0x1540] sm:$0xff]
    %v720 = vld [vmem:[#allocation2 + $0x1548] sm:$0xff]
    %v721 = vld [vmem:[#allocation2 + $0x1550] sm:$0xff]
    %v722 = vld [vmem:[#allocation2 + $0x1558] sm:$0xff]
    %v723 = vld [vmem:[#allocation2 + $0x1560] sm:$0xff]
    %v724 = vld [vmem:[#allocation2 + $0x1568] sm:$0xff]
    %v725 = vld [vmem:[#allocation2 + $0x1570] sm:$0xff]
    %v726 = vld [vmem:[#allocation2 + $0x1578] sm:$0xff]
    %v727 = vld [vmem:[#allocation2 + $0x1580] sm:$0xff]
    %v728 = vld [vmem:[#allocation2 + $0x1588] sm:$0xff]
    %v729 = vld [vmem:[#allocation2 + $0x1590] sm:$0xff]
    %v730 = vld [vmem:[#allocation2 + $0x1598] sm:$0xff]
    %v731 = vld [vmem:[#allocation2 + $0x15a0] sm:$0xff]
    %v732 = vld [vmem:[#allocation2 + $0x15a8] sm:$0xff]
    %v733 = vld [vmem:[#allocation2 + $0x15b0] sm:$0xff]
    %v734 = vld [vmem:[#allocation2 + $0x15b8] sm:$0xff]
    %v735 = vld [vmem:[#allocation2 + $0x15c0] sm:$0xff]
    %v736 = vld [vmem:[#allocation2 + $0x15c8] sm:$0xff]
    %v737 = vld [vmem:[#allocation2 + $0x15d0] sm:$0xff]
    %v738 = vld [vmem:[#allocation2 + $0x15d8] sm:$0xff]
    %v739 = vld [vmem:[#allocation2 + $0x15e0] sm:$0xff]
    %v740 = vld [vmem:[#allocation2 + $0x15e8] sm:$0xff]
    %v741 = vld [vmem:[#allocation2 + $0x15f0] sm:$0xff]
    %v742 = vld [vmem:[#allocation2 + $0x15f8] sm:$0xff]
    %v743 = vld [vmem:[#allocation2 + $0x1600] sm:$0xff]
    %v744 = vld [vmem:[#allocation2 + $0x1608] sm:$0xff]
    %v745 = vld [vmem:[#allocation2 + $0x1610] sm:$0xff]
    %v746 = vld [vmem:[#allocation2 + $0x1618] sm:$0xff]
    %v747 = vld [vmem:[#allocation2 + $0x1620] sm:$0xff]
    %v748 = vld [vmem:[#allocation2 + $0x1628] sm:$0xff]
    %v749 = vld [vmem:[#allocation2 + $0x1630] sm:$0xff]
    %v750 = vld [vmem:[#allocation2 + $0x1638] sm:$0xff]
    %v751 = vld [vmem:[#allocation2 + $0x1640] sm:$0xff]
    %v752 = vld [vmem:[#allocation2 + $0x1648] sm:$0xff]
    %v753 = vld [vmem:[#allocation2 + $0x1650] sm:$0xff]
    %v754 = vld [vmem:[#allocation2 + $0x1658] sm:$0xff]
    %v755 = vld [vmem:[#allocation2 + $0x1660] sm:$0xff]
    %v756 = vld [vmem:[#allocation2 + $0x1668] sm:$0xff]
    %v757 = vld [vmem:[#allocation2 + $0x1670] sm:$0xff]
    %v758 = vld [vmem:[#allocation2 + $0x1678] sm:$0xff]
    %v759 = vld [vmem:[#allocation2 + $0x1680] sm:$0xff]
    %v760 = vld [vmem:[#allocation2 + $0x1688] sm:$0xff]
    %v761 = vld [vmem:[#allocation2 + $0x1690] sm:$0xff]
    %v762 = vld [vmem:[#allocation2 + $0x1698] sm:$0xff]
    %v763 = vld [vmem:[#allocation2 + $0x16a0] sm:$0xff]
    %v764 = vld [vmem:[#allocation2 + $0x16a8] sm:$0xff]
    %v765 = vld [vmem:[#allocation2 + $0x16b0] sm:$0xff]
    %v766 = vld [vmem:[#allocation2 + $0x16b8] sm:$0xff]
    %v767 = vld [vmem:[#allocation2 + $0x16c0] sm:$0xff]
    %v768 = vld [vmem:[#allocation2 + $0x16c8] sm:$0xff]
    %v769 = vld [vmem:[#allocation2 + $0x16d0] sm:$0xff]
    %v770 = vld [vmem:[#allocation2 + $0x16d8] sm:$0xff]
    %v771 = vld [vmem:[#allocation2 + $0x16e0] sm:$0xff]
    %v772 = vld [vmem:[#allocation2 + $0x16e8] sm:$0xff]
    %v773 = vld [vmem:[#allocation2 + $0x16f0] sm:$0xff]
    %v774 = vld [vmem:[#allocation2 + $0x16f8] sm:$0xff]
    %v775 = vld [vmem:[#allocation2 + $0x1700] sm:$0xff]
    %v776 = vld [vmem:[#allocation2 + $0x1708] sm:$0xff]
    %v777 = vld [vmem:[#allocation2 + $0x1710] sm:$0xff]
    %v778 = vld [vmem:[#allocation2 + $0x1718] sm:$0xff]
    %v779 = vld [vmem:[#allocation2 + $0x1720] sm:$0xff]
    %v780 = vld [vmem:[#allocation2 + $0x1728] sm:$0xff]
    %v781 = vld [vmem:[#allocation2 + $0x1730] sm:$0xff]
    %v782 = vld [vmem:[#allocation2 + $0x1738] sm:$0xff]
    %v783 = vld [vmem:[#allocation2 + $0x1740] sm:$0xff]
    %v784 = vld [vmem:[#allocation2 + $0x1748] sm:$0xff]
    %v785 = vld [vmem:[#allocation2 + $0x1750] sm:$0xff]
    %v786 = vld [vmem:[#allocation2 + $0x1758] sm:$0xff]
    %v787 = vld [vmem:[#allocation2 + $0x1760] sm:$0xff]
    %v788 = vld [vmem:[#allocation2 + $0x1768] sm:$0xff]
    %v789 = vld [vmem:[#allocation2 + $0x1770] sm:$0xff]
    %v790 = vld [vmem:[#allocation2 + $0x1778] sm:$0xff]
    %v791 = vld [vmem:[#allocation2 + $0x1780] sm:$0xff]
    %v792 = vld [vmem:[#allocation2 + $0x1788] sm:$0xff]
    %v793 = vld [vmem:[#allocation2 + $0x1790] sm:$0xff]
    %v794 = vld [vmem:[#allocation2 + $0x1798] sm:$0xff]
    %v795 = vld [vmem:[#allocation2 + $0x17a0] sm:$0xff]
    %v796 = vld [vmem:[#allocation2 + $0x17a8] sm:$0xff]
    %v797 = vld [vmem:[#allocation2 + $0x17b0] sm:$0xff]
    %v798 = vld [vmem:[#allocation2 + $0x17b8] sm:$0xff]
    %v799 = vld [vmem:[#allocation2 + $0x17c0] sm:$0xff]
    %v800 = vld [vmem:[#allocation2 + $0x17c8] sm:$0xff]
    %v801 = vld [vmem:[#allocation2 + $0x17d0] sm:$0xff]
    %v802 = vld [vmem:[#allocation2 + $0x17d8] sm:$0xff]
    %v803 = vld [vmem:[#allocation2 + $0x17e0] sm:$0xff]
    %v804 = vld [vmem:[#allocation2 + $0x17e8] sm:$0xff]
    %v805 = vld [vmem:[#allocation2 + $0x17f0] sm:$0xff]
    %v806 = vld [vmem:[#allocation2 + $0x17f8] sm:$0xff]
    %v807 = vld [vmem:[#allocation2 + $0x1800] sm:$0xff]
    %v808 = vld [vmem:[#allocation2 + $0x1808] sm:$0xff]
    %v809 = vld [vmem:[#allocation2 + $0x1810] sm:$0xff]
    %v810 = vld [vmem:[#allocation2 + $0x1818] sm:$0xff]
    %v811 = vld [vmem:[#allocation2 + $0x1820] sm:$0xff]
    %v812 = vld [vmem:[#allocation2 + $0x1828] sm:$0xff]
    %v813 = vld [vmem:[#allocation2 + $0x1830] sm:$0xff]
    %v814 = vld [vmem:[#allocation2 + $0x1838] sm:$0xff]
    %v815 = vld [vmem:[#allocation2 + $0x1840] sm:$0xff]
    %v816 = vld [vmem:[#allocation2 + $0x1848] sm:$0xff]
    %v817 = vld [vmem:[#allocation2 + $0x1850] sm:$0xff]
    %v818 = vld [vmem:[#allocation2 + $0x1858] sm:$0xff]
    %v819 = vld [vmem:[#allocation2 + $0x1860] sm:$0xff]
    %v820 = vld [vmem:[#allocation2 + $0x1868] sm:$0xff]
    %v821 = vld [vmem:[#allocation2 + $0x1870] sm:$0xff]
    %v822 = vld [vmem:[#allocation2 + $0x1878] sm:$0xff]
    %v823 = vld [vmem:[#allocation2 + $0x1880] sm:$0xff]
    %v824 = vld [vmem:[#allocation2 + $0x1888] sm:$0xff]
    %v825 = vld [vmem:[#allocation2 + $0x1890] sm:$0xff]
    %v826 = vld [vmem:[#allocation2 + $0x1898] sm:$0xff]
    %v827 = vld [vmem:[#allocation2 + $0x18a0] sm:$0xff]
    %v828 = vld [vmem:[#allocation2 + $0x18a8] sm:$0xff]
    %v829 = vld [vmem:[#allocation2 + $0x18b0] sm:$0xff]
    %v830 = vld [vmem:[#allocation2 + $0x18b8] sm:$0xff]
    %v831 = vld [vmem:[#allocation2 + $0x18c0] sm:$0xff]
    %v832 = vld [vmem:[#allocation2 + $0x18c8] sm:$0xff]
    %v833 = vld [vmem:[#allocation2 + $0x18d0] sm:$0xff]
    %v834 = vld [vmem:[#allocation2 + $0x18d8] sm:$0xff]
    %v835 = vld [vmem:[#allocation2 + $0x18e0] sm:$0xff]
    %v836 = vld [vmem:[#allocation2 + $0x18e8] sm:$0xff]
    %v837 = vld [vmem:[#allocation2 + $0x18f0] sm:$0xff]
    %v838 = vld [vmem:[#allocation2 + $0x18f8] sm:$0xff]
    %v839 = vld [vmem:[#allocation2 + $0x1900] sm:$0xff]
    %v840 = vld [vmem:[#allocation2 + $0x1908] sm:$0xff]
    %v841 = vld [vmem:[#allocation2 + $0x1910] sm:$0xff]
    %v842 = vld [vmem:[#allocation2 + $0x1918] sm:$0xff]
    %v843 = vld [vmem:[#allocation2 + $0x1920] sm:$0xff]
    %v844 = vld [vmem:[#allocation2 + $0x1928] sm:$0xff]
    %v845 = vld [vmem:[#allocation2 + $0x1930] sm:$0xff]
    %v846 = vld [vmem:[#allocation2 + $0x1938] sm:$0xff]
    %v847 = vld [vmem:[#allocation2 + $0x1940] sm:$0xff]
    %v848 = vld [vmem:[#allocation2 + $0x1948] sm:$0xff]
    %v849 = vld [vmem:[#allocation2 + $0x1950] sm:$0xff]
    %v850 = vld [vmem:[#allocation2 + $0x1958] sm:$0xff]
    %v851 = vld [vmem:[#allocation2 + $0x1960] sm:$0xff]
    %v852 = vld [vmem:[#allocation2 + $0x1968] sm:$0xff]
    %v853 = vld [vmem:[#allocation2 + $0x1970] sm:$0xff]
    %v854 = vld [vmem:[#allocation2 + $0x1978] sm:$0xff]
    %v855 = vld [vmem:[#allocation2 + $0x1980] sm:$0xff]
    %v856 = vld [vmem:[#allocation2 + $0x1988] sm:$0xff]
    %v857 = vld [vmem:[#allocation2 + $0x1990] sm:$0xff]
    %v858 = vld [vmem:[#allocation2 + $0x1998] sm:$0xff]
    %v859 = vld [vmem:[#allocation2 + $0x19a0] sm:$0xff]
    %v860 = vld [vmem:[#allocation2 + $0x19a8] sm:$0xff]
    %v861 = vld [vmem:[#allocation2 + $0x19b0] sm:$0xff]
    %v862 = vld [vmem:[#allocation2 + $0x19b8] sm:$0xff]
    %v863 = vld [vmem:[#allocation2 + $0x19c0] sm:$0xff]
    %v864 = vld [vmem:[#allocation2 + $0x19c8] sm:$0xff]
    %v865 = vld [vmem:[#allocation2 + $0x19d0] sm:$0xff]
    %v866 = vld [vmem:[#allocation2 + $0x19d8] sm:$0xff]
    %v867 = vld [vmem:[#allocation2 + $0x19e0] sm:$0xff]
    %v868 = vld [vmem:[#allocation2 + $0x19e8] sm:$0xff]
    %v869 = vld [vmem:[#allocation2 + $0x19f0] sm:$0xff]
    %v870 = vld [vmem:[#allocation2 + $0x19f8] sm:$0xff]
    %v871 = vld [vmem:[#allocation2 + $0x1a00] sm:$0xff]
    %v872 = vld [vmem:[#allocation2 + $0x1a08] sm:$0xff]
    %v873 = vld [vmem:[#allocation2 + $0x1a10] sm:$0xff]
    %v874 = vld [vmem:[#allocation2 + $0x1a18] sm:$0xff]
    %v875 = vld [vmem:[#allocation2 + $0x1a20] sm:$0xff]
    %v876 = vld [vmem:[#allocation2 + $0x1a28] sm:$0xff]
    %v877 = vld [vmem:[#allocation2 + $0x1a30] sm:$0xff]
    %v878 = vld [vmem:[#allocation2 + $0x1a38] sm:$0xff]
    %v879 = vld [vmem:[#allocation2 + $0x1a40] sm:$0xff]
    %v880 = vld [vmem:[#allocation2 + $0x1a48] sm:$0xff]
    %v881 = vld [vmem:[#allocation2 + $0x1a50] sm:$0xff]
    %v882 = vld [vmem:[#allocation2 + $0x1a58] sm:$0xff]
    %v883 = vld [vmem:[#allocation2 + $0x1a60] sm:$0xff]
    %v884 = vld [vmem:[#allocation2 + $0x1a68] sm:$0xff]
    %v885 = vld [vmem:[#allocation2 + $0x1a70] sm:$0xff]
    %v886 = vld [vmem:[#allocation2 + $0x1a78] sm:$0xff]
    %v887 = vld [vmem:[#allocation2 + $0x1a80] sm:$0xff]
    %v888 = vld [vmem:[#allocation2 + $0x1a88] sm:$0xff]
    %v889 = vld [vmem:[#allocation2 + $0x1a90] sm:$0xff]
    %v890 = vld [vmem:[#allocation2 + $0x1a98] sm:$0xff]
    %v891 = vld [vmem:[#allocation2 + $0x1aa0] sm:$0xff]
    %v892 = vld [vmem:[#allocation2 + $0x1aa8] sm:$0xff]
    %v893 = vld [vmem:[#allocation2 + $0x1ab0] sm:$0xff]
    %v894 = vld [vmem:[#allocation2 + $0x1ab8] sm:$0xff]
    %v895 = vld [vmem:[#allocation2 + $0x1ac0] sm:$0xff]
    %v896 = vld [vmem:[#allocation2 + $0x1ac8] sm:$0xff]
    %v897 = vld [vmem:[#allocation2 + $0x1ad0] sm:$0xff]
    %v898 = vld [vmem:[#allocation2 + $0x1ad8] sm:$0xff]
    %v899 = vld [vmem:[#allocation2 + $0x1ae0] sm:$0xff]
    %v900 = vld [vmem:[#allocation2 + $0x1ae8] sm:$0xff]
    %v901 = vld [vmem:[#allocation2 + $0x1af0] sm:$0xff]
    %v902 = vld [vmem:[#allocation2 + $0x1af8] sm:$0xff]
    %v903 = vld [vmem:[#allocation2 + $0x1b00] sm:$0xff]
    %v904 = vld [vmem:[#allocation2 + $0x1b08] sm:$0xff]
    %v905 = vld [vmem:[#allocation2 + $0x1b10] sm:$0xff]
    %v906 = vld [vmem:[#allocation2 + $0x1b18] sm:$0xff]
    %v907 = vld [vmem:[#allocation2 + $0x1b20] sm:$0xff]
    %v908 = vld [vmem:[#allocation2 + $0x1b28] sm:$0xff]
    %v909 = vld [vmem:[#allocation2 + $0x1b30] sm:$0xff]
    %v910 = vld [vmem:[#allocation2 + $0x1b38] sm:$0xff]
    %v911 = vld [vmem:[#allocation2 + $0x1b40] sm:$0xff]
    %v912 = vld [vmem:[#allocation2 + $0x1b48] sm:$0xff]
    %v913 = vld [vmem:[#allocation2 + $0x1b50] sm:$0xff]
    %v914 = vld [vmem:[#allocation2 + $0x1b58] sm:$0xff]
    %v915 = vld [vmem:[#allocation2 + $0x1b60] sm:$0xff]
    %v916 = vld [vmem:[#allocation2 + $0x1b68] sm:$0xff]
    %v917 = vld [vmem:[#allocation2 + $0x1b70] sm:$0xff]
    %v918 = vld [vmem:[#allocation2 + $0x1b78] sm:$0xff]
    %v919 = vld [vmem:[#allocation2 + $0x1b80] sm:$0xff]
    %v920 = vld [vmem:[#allocation2 + $0x1b88] sm:$0xff]
    %v921 = vld [vmem:[#allocation2 + $0x1b90] sm:$0xff]
    %v922 = vld [vmem:[#allocation2 + $0x1b98] sm:$0xff]
    %v923 = vld [vmem:[#allocation2 + $0x1ba0] sm:$0xff]
    %v924 = vld [vmem:[#allocation2 + $0x1ba8] sm:$0xff]
    %v925 = vld [vmem:[#allocation2 + $0x1bb0] sm:$0xff]
    %v926 = vld [vmem:[#allocation2 + $0x1bb8] sm:$0xff]
    %v927 = vld [vmem:[#allocation2 + $0x1bc0] sm:$0xff]
    %v928 = vld [vmem:[#allocation2 + $0x1bc8] sm:$0xff]
    %v929 = vld [vmem:[#allocation2 + $0x1bd0] sm:$0xff]
    %v930 = vld [vmem:[#allocation2 + $0x1bd8] sm:$0xff]
    %v931 = vld [vmem:[#allocation2 + $0x1be0] sm:$0xff]
    %v932 = vld [vmem:[#allocation2 + $0x1be8] sm:$0xff]
    %v933 = vld [vmem:[#allocation2 + $0x1bf0] sm:$0xff]
    %v934 = vld [vmem:[#allocation2 + $0x1bf8] sm:$0xff]
    %v935 = vld [vmem:[#allocation2 + $0x1c00] sm:$0xff]
    %v936 = vld [vmem:[#allocation2 + $0x1c08] sm:$0xff]
    %v937 = vld [vmem:[#allocation2 + $0x1c10] sm:$0xff]
    %v938 = vld [vmem:[#allocation2 + $0x1c18] sm:$0xff]
    %v939 = vld [vmem:[#allocation2 + $0x1c20] sm:$0xff]
    %v940 = vld [vmem:[#allocation2 + $0x1c28] sm:$0xff]
    %v941 = vld [vmem:[#allocation2 + $0x1c30] sm:$0xff]
    %v942 = vld [vmem:[#allocation2 + $0x1c38] sm:$0xff]
    %v943 = vld [vmem:[#allocation2 + $0x1c40] sm:$0xff]
    %v944 = vld [vmem:[#allocation2 + $0x1c48] sm:$0xff]
    %v945 = vld [vmem:[#allocation2 + $0x1c50] sm:$0xff]
    %v946 = vld [vmem:[#allocation2 + $0x1c58] sm:$0xff]
    %v947 = vld [vmem:[#allocation2 + $0x1c60] sm:$0xff]
    %v948 = vld [vmem:[#allocation2 + $0x1c68] sm:$0xff]
    %v949 = vld [vmem:[#allocation2 + $0x1c70] sm:$0xff]
    %v950 = vld [vmem:[#allocation2 + $0x1c78] sm:$0xff]
    %v951 = vld [vmem:[#allocation2 + $0x1c80] sm:$0xff]
    %v952 = vld [vmem:[#allocation2 + $0x1c88] sm:$0xff]
    %v953 = vld [vmem:[#allocation2 + $0x1c90] sm:$0xff]
    %v954 = vld [vmem:[#allocation2 + $0x1c98] sm:$0xff]
    %v955 = vld [vmem:[#allocation2 + $0x1ca0] sm:$0xff]
    %v956 = vld [vmem:[#allocation2 + $0x1ca8] sm:$0xff]
    %v957 = vld [vmem:[#allocation2 + $0x1cb0] sm:$0xff]
    %v958 = vld [vmem:[#allocation2 + $0x1cb8] sm:$0xff]
    %v959 = vld [vmem:[#allocation2 + $0x1cc0] sm:$0xff]
    %v960 = vld [vmem:[#allocation2 + $0x1cc8] sm:$0xff]
    %v961 = vld [vmem:[#allocation2 + $0x1cd0] sm:$0xff]
    %v962 = vld [vmem:[#allocation2 + $0x1cd8] sm:$0xff]
    %v963 = vld [vmem:[#allocation2 + $0x1ce0] sm:$0xff]
    %v964 = vld [vmem:[#allocation2 + $0x1ce8] sm:$0xff]
    %v965 = vld [vmem:[#allocation2 + $0x1cf0] sm:$0xff]
    %v966 = vld [vmem:[#allocation2 + $0x1cf8] sm:$0xff]
    %v967 = vld [vmem:[#allocation2 + $0x1d00] sm:$0xff]
    %v968 = vld [vmem:[#allocation2 + $0x1d08] sm:$0xff]
    %v969 = vld [vmem:[#allocation2 + $0x1d10] sm:$0xff]
    %v970 = vld [vmem:[#allocation2 + $0x1d18] sm:$0xff]
    %v971 = vld [vmem:[#allocation2 + $0x1d20] sm:$0xff]
    %v972 = vld [vmem:[#allocation2 + $0x1d28] sm:$0xff]
    %v973 = vld [vmem:[#allocation2 + $0x1d30] sm:$0xff]
    %v974 = vld [vmem:[#allocation2 + $0x1d38] sm:$0xff]
    %v975 = vld [vmem:[#allocation2 + $0x1d40] sm:$0xff]
    %v976 = vld [vmem:[#allocation2 + $0x1d48] sm:$0xff]
    %v977 = vld [vmem:[#allocation2 + $0x1d50] sm:$0xff]
    %v978 = vld [vmem:[#allocation2 + $0x1d58] sm:$0xff]
    %v979 = vld [vmem:[#allocation2 + $0x1d60] sm:$0xff]
    %v980 = vld [vmem:[#allocation2 + $0x1d68] sm:$0xff]
    %v981 = vld [vmem:[#allocation2 + $0x1d70] sm:$0xff]
    %v982 = vld [vmem:[#allocation2 + $0x1d78] sm:$0xff]
    %v983 = vld [vmem:[#allocation2 + $0x1d80] sm:$0xff]
    %v984 = vld [vmem:[#allocation2 + $0x1d88] sm:$0xff]
    %v985 = vld [vmem:[#allocation2 + $0x1d90] sm:$0xff]
    %v986 = vld [vmem:[#allocation2 + $0x1d98] sm:$0xff]
    %v987 = vld [vmem:[#allocation2 + $0x1da0] sm:$0xff]
    %v988 = vld [vmem:[#allocation2 + $0x1da8] sm:$0xff]
    %v989 = vld [vmem:[#allocation2 + $0x1db0] sm:$0xff]
    %v990 = vld [vmem:[#allocation2 + $0x1db8] sm:$0xff]
    %v991 = vld [vmem:[#allocation2 + $0x1dc0] sm:$0xff]
    %v992 = vld [vmem:[#allocation2 + $0x1dc8] sm:$0xff]
    %v993 = vld [vmem:[#allocation2 + $0x1dd0] sm:$0xff]
    %v994 = vld [vmem:[#allocation2 + $0x1dd8] sm:$0xff]
    %v995 = vld [vmem:[#allocation2 + $0x1de0] sm:$0xff]
    %v996 = vld [vmem:[#allocation2 + $0x1de8] sm:$0xff]
    %v997 = vld [vmem:[#allocation2 + $0x1df0] sm:$0xff]
    %v998 = vld [vmem:[#allocation2 + $0x1df8] sm:$0xff]
    %v999 = vld [vmem:[#allocation2 + $0x1e00] sm:$0xff]
    %v1000 = vld [vmem:[#allocation2 + $0x1e08] sm:$0xff]
    %v1001 = vld [vmem:[#allocation2 + $0x1e10] sm:$0xff]
    %v1002 = vld [vmem:[#allocation2 + $0x1e18] sm:$0xff]
    %v1003 = vld [vmem:[#allocation2 + $0x1e20] sm:$0xff]
    %v1004 = vld [vmem:[#allocation2 + $0x1e28] sm:$0xff]
    %v1005 = vld [vmem:[#allocation2 + $0x1e30] sm:$0xff]
    %v1006 = vld [vmem:[#allocation2 + $0x1e38] sm:$0xff]
    %v1007 = vld [vmem:[#allocation2 + $0x1e40] sm:$0xff]
    %v1008 = vld [vmem:[#allocation2 + $0x1e48] sm:$0xff]
    %v1009 = vld [vmem:[#allocation2 + $0x1e50] sm:$0xff]
    %v1010 = vld [vmem:[#allocation2 + $0x1e58] sm:$0xff]
    %v1011 = vld [vmem:[#allocation2 + $0x1e60] sm:$0xff]
    %v1012 = vld [vmem:[#allocation2 + $0x1e68] sm:$0xff]
    %v1013 = vld [vmem:[#allocation2 + $0x1e70] sm:$0xff]
    %v1014 = vld [vmem:[#allocation2 + $0x1e78] sm:$0xff]
    %v1015 = vld [vmem:[#allocation2 + $0x1e80] sm:$0xff]
    %v1016 = vld [vmem:[#allocation2 + $0x1e88] sm:$0xff]
    %v1017 = vld [vmem:[#allocation2 + $0x1e90] sm:$0xff]
    %v1018 = vld [vmem:[#allocation2 + $0x1e98] sm:$0xff]
    %v1019 = vld [vmem:[#allocation2 + $0x1ea0] sm:$0xff]
    %v1020 = vld [vmem:[#allocation2 + $0x1ea8] sm:$0xff]
    %v1021 = vld [vmem:[#allocation2 + $0x1eb0] sm:$0xff]
    %v1022 = vld [vmem:[#allocation2 + $0x1eb8] sm:$0xff]
    %v1023 = vld [vmem:[#allocation2 + $0x1ec0] sm:$0xff]
    %v1024 = vld [vmem:[#allocation2 + $0x1ec8] sm:$0xff]
    %v1025 = vld [vmem:[#allocation2 + $0x1ed0] sm:$0xff]
    %v1026 = vld [vmem:[#allocation2 + $0x1ed8] sm:$0xff]
    %v1027 = vld [vmem:[#allocation2 + $0x1ee0] sm:$0xff]
    %v1028 = vld [vmem:[#allocation2 + $0x1ee8] sm:$0xff]
    %v1029 = vld [vmem:[#allocation2 + $0x1ef0] sm:$0xff]
    %v1030 = vld [vmem:[#allocation2 + $0x1ef8] sm:$0xff]
    %v1031 = vld [vmem:[#allocation2 + $0x1f00] sm:$0xff]
    %v1032 = vld [vmem:[#allocation2 + $0x1f08] sm:$0xff]
    %v1033 = vld [vmem:[#allocation2 + $0x1f10] sm:$0xff]
    %v1034 = vld [vmem:[#allocation2 + $0x1f18] sm:$0xff]
    %v1035 = vld [vmem:[#allocation2 + $0x1f20] sm:$0xff]
    %v1036 = vld [vmem:[#allocation2 + $0x1f28] sm:$0xff]
    %v1037 = vld [vmem:[#allocation2 + $0x1f30] sm:$0xff]
    %v1038 = vld [vmem:[#allocation2 + $0x1f38] sm:$0xff]
    %v1039 = vld [vmem:[#allocation2 + $0x1f40] sm:$0xff]
    %v1040 = vld [vmem:[#allocation2 + $0x1f48] sm:$0xff]
    %v1041 = vld [vmem:[#allocation2 + $0x1f50] sm:$0xff]
    %v1042 = vld [vmem:[#allocation2 + $0x1f58] sm:$0xff]
    %v1043 = vld [vmem:[#allocation2 + $0x1f60] sm:$0xff]
    %v1044 = vld [vmem:[#allocation2 + $0x1f68] sm:$0xff]
    %v1045 = vld [vmem:[#allocation2 + $0x1f70] sm:$0xff]
    %v1046 = vld [vmem:[#allocation2 + $0x1f78] sm:$0xff]
    %v1047 = vld [vmem:[#allocation2 + $0x1f80] sm:$0xff]
    %v1048 = vld [vmem:[#allocation2 + $0x1f88] sm:$0xff]
    %v1049 = vld [vmem:[#allocation2 + $0x1f90] sm:$0xff]
    %v1050 = vld [vmem:[#allocation2 + $0x1f98] sm:$0xff]
    %v1051 = vld [vmem:[#allocation2 + $0x1fa0] sm:$0xff]
    %v1052 = vld [vmem:[#allocation2 + $0x1fa8] sm:$0xff]
    %v1053 = vld [vmem:[#allocation2 + $0x1fb0] sm:$0xff]
    %v1054 = vld [vmem:[#allocation2 + $0x1fb8] sm:$0xff]
    %v1055 = vld [vmem:[#allocation2 + $0x1fc0] sm:$0xff]
    %v1056 = vld [vmem:[#allocation2 + $0x1fc8] sm:$0xff]
    %v1057 = vld [vmem:[#allocation2 + $0x1fd0] sm:$0xff]
    %v1058 = vld [vmem:[#allocation2 + $0x1fd8] sm:$0xff]
    %v1059 = vld [vmem:[#allocation2 + $0x1fe0] sm:$0xff]
    %v1060 = vld [vmem:[#allocation2 + $0x1fe8] sm:$0xff]
    %v1061 = vld [vmem:[#allocation2 + $0x1ff0] sm:$0xff]
    %v1062 = vld [vmem:[#allocation2 + $0x1ff8] sm:$0xff]
    %v1063 = vld [vmem:[%s2] sm:$0xff]
    %v1065 = vlaneseq
    %v1066 = vshrl.u32 %v1065, 7
    %v1067 = vsub.s32 0, %v1066
    %v1068 = vrot.slane %v1063, %v1067
    %v1069 = vlaneseq
    %v1070 = vshrl.u32 %v1069, 7
    %v1071 = vsub.s32 1, %v1070
    %v1072 = vrot.slane %v1063, %v1071
    %v1073 = vlaneseq
    %v1074 = vshrl.u32 %v1073, 7
    %v1075 = vsub.s32 2, %v1074
    %v1076 = vrot.slane %v1063, %v1075
    %v1077 = vlaneseq
    %v1078 = vshrl.u32 %v1077, 7
    %v1079 = vsub.s32 3, %v1078
    %v1080 = vrot.slane %v1063, %v1079
    %v1081 = vlaneseq
    %v1082 = vshrl.u32 %v1081, 7
    %v1083 = vsub.s32 4, %v1082
    %v1084 = vrot.slane %v1063, %v1083
    %v1085 = vlaneseq
    %v1086 = vshrl.u32 %v1085, 7
    %v1087 = vsub.s32 5, %v1086
    %v1088 = vrot.slane %v1063, %v1087
    %v1089 = vlaneseq
    %v1090 = vshrl.u32 %v1089, 7
    %v1091 = vsub.s32 6, %v1090
    %v1092 = vrot.slane %v1063, %v1091
    %v1093 = vlaneseq
    %v1094 = vshrl.u32 %v1093, 7
    %v1095 = vsub.s32 7, %v1094
    %v1096 = vrot.slane %v1063, %v1095
    %v1107 = vcombine.high %v37, %v37
    %v1109 = vunpack.c.l.s4 1983009808
    %v1110 = vunpack.c.0.s8 %v1109
    %v1111 = vlaneseq
    %v1112 = vshrl.u32 %v1111, 7
    %v1113 = vsub.s32 %v1110, %v1112
    %v1114 = vrot.slane %v37, %v1113
    %v1116 = vunpack.c.l.s4 1983009808
    %v1117 = vunpack.c.0.s8 %v1116
    %v1118 = vlaneseq
    %v1119 = vshrl.u32 %v1118, 7
    %v1120 = vsub.s32 %v1117, %v1119
    %v1121 = vrot.slane %v1107, %v1120
    %v1122 = vcombine.high %v1114, %v1114
    %v1123 = vcombine.high %v1121, %v1121
    %v1124 = vcombine.high %v38, %v38
    %v1126 = vunpack.c.l.s4 1983009808
    %v1127 = vunpack.c.0.s8 %v1126
    %v1128 = vlaneseq
    %v1129 = vshrl.u32 %v1128, 7
    %v1130 = vsub.s32 %v1127, %v1129
    %v1131 = vrot.slane %v38, %v1130
    %v1133 = vunpack.c.l.s4 1983009808
    %v1134 = vunpack.c.0.s8 %v1133
    %v1135 = vlaneseq
    %v1136 = vshrl.u32 %v1135, 7
    %v1137 = vsub.s32 %v1134, %v1136
    %v1138 = vrot.slane %v1124, %v1137
    %v1139 = vcombine.high %v1131, %v1131
    %v1140 = vcombine.high %v1138, %v1138
    %1149 = vmatprep.subr.mxu0 %v40
    %1150 = vmatpush1.msra.mxu0 %v39
    %1151 = vmatprep.subr.mxu0 %v48
    %1152 = vmatpush1.msra.mxu0 %v47
    %1153 = vmatprep.subr.mxu0 %v56
    %1154 = vmatpush1.msra.mxu0 %v55
    %1155 = vmatprep.subr.mxu0 %v64
    %1156 = vmatpush1.msra.mxu0 %v63
    %1157 = vmatprep.subr.mxu0 %v72
    %1158 = vmatpush1.msra.mxu0 %v71
    %1159 = vmatprep.subr.mxu0 %v80
    %1160 = vmatpush1.msra.mxu0 %v79
    %1161 = vmatprep.subr.mxu0 %v88
    %1162 = vmatpush1.msra.mxu0 %v87
    %1163 = vmatprep.subr.mxu0 %v96
    %1164 = vmatpush1.msra.mxu0 %v95
    %1165 = vmatprep.subr.mxu0 %v104
    %1166 = vmatpush1.msra.mxu0 %v103
    %1167 = vmatprep.subr.mxu0 %v112
    %1168 = vmatpush1.msra.mxu0 %v111
    %1169 = vmatprep.subr.mxu0 %v120
    %1170 = vmatpush1.msra.mxu0 %v119
    %1171 = vmatprep.subr.mxu0 %v128
    %1172 = vmatpush1.msra.mxu0 %v127
    %1173 = vmatprep.subr.mxu0 %v136
    %1174 = vmatpush1.msra.mxu0 %v135
    %1175 = vmatprep.subr.mxu0 %v144
    %1176 = vmatpush1.msra.mxu0 %v143
    %1177 = vmatprep.subr.mxu0 %v152
    %1178 = vmatpush1.msra.mxu0 %v151
    %1179 = vmatprep.subr.mxu0 %v160
    %1180 = vmatpush1.msra.mxu0 %v159
    %1181 = vmatprep.subr.mxu0 %v168
    %1182 = vmatpush1.msra.mxu0 %v167
    %1183 = vmatprep.subr.mxu0 %v176
    %1184 = vmatpush1.msra.mxu0 %v175
    %1185 = vmatprep.subr.mxu0 %v184
    %1186 = vmatpush1.msra.mxu0 %v183
    %1187 = vmatprep.subr.mxu0 %v192
    %1188 = vmatpush1.msra.mxu0 %v191
    %1189 = vmatprep.subr.mxu0 %v200
    %1190 = vmatpush1.msra.mxu0 %v199
    %1191 = vmatprep.subr.mxu0 %v208
    %1192 = vmatpush1.msra.mxu0 %v207
    %1193 = vmatprep.subr.mxu0 %v216
    %1194 = vmatpush1.msra.mxu0 %v215
    %1195 = vmatprep.subr.mxu0 %v224
    %1196 = vmatpush1.msra.mxu0 %v223
    %1197 = vmatprep.subr.mxu0 %v232
    %1198 = vmatpush1.msra.mxu0 %v231
    %1199 = vmatprep.subr.mxu0 %v240
    %1200 = vmatpush1.msra.mxu0 %v239
    %1201 = vmatprep.subr.mxu0 %v248
    %1202 = vmatpush1.msra.mxu0 %v247
    %1203 = vmatprep.subr.mxu0 %v256
    %1204 = vmatpush1.msra.mxu0 %v255
    %1205 = vmatprep.subr.mxu0 %v264
    %1206 = vmatpush1.msra.mxu0 %v263
    %1207 = vmatprep.subr.mxu0 %v272
    %1208 = vmatpush1.msra.mxu0 %v271
    %1209 = vmatprep.subr.mxu0 %v280
    %1210 = vmatpush1.msra.mxu0 %v279
    %1211 = vmatprep.subr.mxu0 %v288
    %1212 = vmatpush1.msra.mxu0 %v287
    %1213 = vmatprep.mubr.f32.mxu0 %v1122
    %1214 = vmatmul.mubr.f32.gmra.mrb[0].mxu0 %v1114
    %v1215 = vpop.f32.mrb[0].mxu0
    %v1216 = vadd.f32 %v1068, %v1215
    %v1217 = vpop.f32.mrb[0].mxu0
    %v1218 = vadd.f32 %v1072, %v1217
    %1219 = vdwg.mxu0
    %1220 = vmatprep.subr.mxu0 %v296
    %1221 = vmatpush1.msra.mxu0 %v295
    %1222 = vmatprep.subr.mxu0 %v304
    %1223 = vmatpush1.msra.mxu0 %v303
    %1224 = vmatprep.subr.mxu0 %v312
    %1225 = vmatpush1.msra.mxu0 %v311
    %1226 = vmatprep.subr.mxu0 %v320
    %1227 = vmatpush1.msra.mxu0 %v319
    %1228 = vmatprep.subr.mxu0 %v328
    %1229 = vmatpush1.msra.mxu0 %v327
    %1230 = vmatprep.subr.mxu0 %v336
    %1231 = vmatpush1.msra.mxu0 %v335
    %1232 = vmatprep.subr.mxu0 %v344
    %1233 = vmatpush1.msra.mxu0 %v343
    %1234 = vmatprep.subr.mxu0 %v352
    %1235 = vmatpush1.msra.mxu0 %v351
    %1236 = vmatprep.subr.mxu0 %v360
    %1237 = vmatpush1.msra.mxu0 %v359
    %1238 = vmatprep.subr.mxu0 %v368
    %1239 = vmatpush1.msra.mxu0 %v367
    %1240 = vmatprep.subr.mxu0 %v376
    %1241 = vmatpush1.msra.mxu0 %v375
    %1242 = vmatprep.subr.mxu0 %v384
    %1243 = vmatpush1.msra.mxu0 %v383
    %1244 = vmatprep.subr.mxu0 %v392
    %1245 = vmatpush1.msra.mxu0 %v391
    %1246 = vmatprep.subr.mxu0 %v400
    %1247 = vmatpush1.msra.mxu0 %v399
    %1248 = vmatprep.subr.mxu0 %v408
    %1249 = vmatpush1.msra.mxu0 %v407
    %1250 = vmatprep.subr.mxu0 %v416
    %1251 = vmatpush1.msra.mxu0 %v415
    %1252 = vmatprep.subr.mxu0 %v424
    %1253 = vmatpush1.msra.mxu0 %v423
    %1254 = vmatprep.subr.mxu0 %v432
    %1255 = vmatpush1.msra.mxu0 %v431
    %1256 = vmatprep.subr.mxu0 %v440
    %1257 = vmatpush1.msra.mxu0 %v439
    %1258 = vmatprep.subr.mxu0 %v448
    %1259 = vmatpush1.msra.mxu0 %v447
    %1260 = vmatprep.subr.mxu0 %v456
    %1261 = vmatpush1.msra.mxu0 %v455
    %1262 = vmatprep.subr.mxu0 %v464
    %1263 = vmatpush1.msra.mxu0 %v463
    %1264 = vmatprep.subr.mxu0 %v472
    %1265 = vmatpush1.msra.mxu0 %v471
    %1266 = vmatprep.subr.mxu0 %v480
    %1267 = vmatpush1.msra.mxu0 %v479
    %1268 = vmatprep.subr.mxu0 %v488
    %1269 = vmatpush1.msra.mxu0 %v487
    %1270 = vmatprep.subr.mxu0 %v496
    %1271 = vmatpush1.msra.mxu0 %v495
    %1272 = vmatprep.subr.mxu0 %v504
    %1273 = vmatpush1.msra.mxu0 %v503
    %1274 = vmatprep.subr.mxu0 %v512
    %1275 = vmatpush1.msra.mxu0 %v511
    %1276 = vmatprep.subr.mxu0 %v520
    %1277 = vmatpush1.msra.mxu0 %v519
    %1278 = vmatprep.subr.mxu0 %v528
    %1279 = vmatpush1.msra.mxu0 %v527
    %1280 = vmatprep.subr.mxu0 %v536
    %1281 = vmatpush1.msra.mxu0 %v535
    %1282 = vmatprep.subr.mxu0 %v544
    %1283 = vmatpush1.msra.mxu0 %v543
    %1284 = vmatprep.mubr.f32.mxu0 %v1123
    %1285 = vmatmul.mubr.f32.gmra.mrb[0].mxu0 %v1121
    %v1286 = vpop.f32.mrb[0].mxu0
    %v1287 = vadd.f32 %v1216, %v1286
    %v1288 = vpop.f32.mrb[0].mxu0
    %v1289 = vadd.f32 %v1218, %v1288
    %1290 = vdwg.mxu0
    %1291 = vmatprep.subr.mxu0 %v552
    %1292 = vmatpush1.msra.mxu0 %v551
    %1293 = vmatprep.subr.mxu0 %v560
    %1294 = vmatpush1.msra.mxu0 %v559
    %1295 = vmatprep.subr.mxu0 %v568
    %1296 = vmatpush1.msra.mxu0 %v567
    %1297 = vmatprep.subr.mxu0 %v576
    %1298 = vmatpush1.msra.mxu0 %v575
    %1299 = vmatprep.subr.mxu0 %v584
    %1300 = vmatpush1.msra.mxu0 %v583
    %1301 = vmatprep.subr.mxu0 %v592
    %1302 = vmatpush1.msra.mxu0 %v591
    %1303 = vmatprep.subr.mxu0 %v600
    %1304 = vmatpush1.msra.mxu0 %v599
    %1305 = vmatprep.subr.mxu0 %v608
    %1306 = vmatpush1.msra.mxu0 %v607
    %1307 = vmatprep.subr.mxu0 %v616
    %1308 = vmatpush1.msra.mxu0 %v615
    %1309 = vmatprep.subr.mxu0 %v624
    %1310 = vmatpush1.msra.mxu0 %v623
    %1311 = vmatprep.subr.mxu0 %v632
    %1312 = vmatpush1.msra.mxu0 %v631
    %1313 = vmatprep.subr.mxu0 %v640
    %1314 = vmatpush1.msra.mxu0 %v639
    %1315 = vmatprep.subr.mxu0 %v648
    %1316 = vmatpush1.msra.mxu0 %v647
    %1317 = vmatprep.subr.mxu0 %v656
    %1318 = vmatpush1.msra.mxu0 %v655
    %1319 = vmatprep.subr.mxu0 %v664
    %1320 = vmatpush1.msra.mxu0 %v663
    %1321 = vmatprep.subr.mxu0 %v672
    %1322 = vmatpush1.msra.mxu0 %v671
    %1323 = vmatprep.subr.mxu0 %v680
    %1324 = vmatpush1.msra.mxu0 %v679
    %1325 = vmatprep.subr.mxu0 %v688
    %1326 = vmatpush1.msra.mxu0 %v687
    %1327 = vmatprep.subr.mxu0 %v696
    %1328 = vmatpush1.msra.mxu0 %v695
    %1329 = vmatprep.subr.mxu0 %v704
    %1330 = vmatpush1.msra.mxu0 %v703
    %1331 = vmatprep.subr.mxu0 %v712
    %1332 = vmatpush1.msra.mxu0 %v711
    %1333 = vmatprep.subr.mxu0 %v720
    %1334 = vmatpush1.msra.mxu0 %v719
    %1335 = vmatprep.subr.mxu0 %v728
    %1336 = vmatpush1.msra.mxu0 %v727
    %1337 = vmatprep.subr.mxu0 %v736
    %1338 = vmatpush1.msra.mxu0 %v735
    %1339 = vmatprep.subr.mxu0 %v744
    %1340 = vmatpush1.msra.mxu0 %v743
    %1341 = vmatprep.subr.mxu0 %v752
    %1342 = vmatpush1.msra.mxu0 %v751
    %1343 = vmatprep.subr.mxu0 %v760
    %1344 = vmatpush1.msra.mxu0 %v759
    %1345 = vmatprep.subr.mxu0 %v768
    %1346 = vmatpush1.msra.mxu0 %v767
    %1347 = vmatprep.subr.mxu0 %v776
    %1348 = vmatpush1.msra.mxu0 %v775
    %1349 = vmatprep.subr.mxu0 %v784
    %1350 = vmatpush1.msra.mxu0 %v783
    %1351 = vmatprep.subr.mxu0 %v792
    %1352 = vmatpush1.msra.mxu0 %v791
    %1353 = vmatprep.subr.mxu0 %v800
    %1354 = vmatpush1.msra.mxu0 %v799
    %1355 = vmatprep.mubr.f32.mxu0 %v1139
    %1356 = vmatmul.mubr.f32.gmra.mrb[0].mxu0 %v1131
    %v1357 = vpop.f32.mrb[0].mxu0
    %v1358 = vadd.f32 %v1287, %v1357
    %v1359 = vpop.f32.mrb[0].mxu0
    %v1360 = vadd.f32 %v1289, %v1359
    %1361 = vdwg.mxu0
    %1362 = vmatprep.subr.mxu0 %v808
    %1363 = vmatpush1.msra.mxu0 %v807
    %1364 = vmatprep.subr.mxu0 %v816
    %1365 = vmatpush1.msra.mxu0 %v815
    %1366 = vmatprep.subr.mxu0 %v824
    %1367 = vmatpush1.msra.mxu0 %v823
    %1368 = vmatprep.subr.mxu0 %v832
    %1369 = vmatpush1.msra.mxu0 %v831
    %1370 = vmatprep.subr.mxu0 %v840
    %1371 = vmatpush1.msra.mxu0 %v839
    %1372 = vmatprep.subr.mxu0 %v848
    %1373 = vmatpush1.msra.mxu0 %v847
    %1374 = vmatprep.subr.mxu0 %v856
    %1375 = vmatpush1.msra.mxu0 %v855
    %1376 = vmatprep.subr.mxu0 %v864
    %1377 = vmatpush1.msra.mxu0 %v863
    %1378 = vmatprep.subr.mxu0 %v872
    %1379 = vmatpush1.msra.mxu0 %v871
    %1380 = vmatprep.subr.mxu0 %v880
    %1381 = vmatpush1.msra.mxu0 %v879
    %1382 = vmatprep.subr.mxu0 %v888
    %1383 = vmatpush1.msra.mxu0 %v887
    %1384 = vmatprep.subr.mxu0 %v896
    %1385 = vmatpush1.msra.mxu0 %v895
    %1386 = vmatprep.subr.mxu0 %v904
    %1387 = vmatpush1.msra.mxu0 %v903
    %1388 = vmatprep.subr.mxu0 %v912
    %1389 = vmatpush1.msra.mxu0 %v911
    %1390 = vmatprep.subr.mxu0 %v920
    %1391 = vmatpush1.msra.mxu0 %v919
    %1392 = vmatprep.subr.mxu0 %v928
    %1393 = vmatpush1.msra.mxu0 %v927
    %1394 = vmatprep.subr.mxu0 %v936
    %1395 = vmatpush1.msra.mxu0 %v935
    %1396 = vmatprep.subr.mxu0 %v944
    %1397 = vmatpush1.msra.mxu0 %v943
    %1398 = vmatprep.subr.mxu0 %v952
    %1399 = vmatpush1.msra.mxu0 %v951
    %1400 = vmatprep.subr.mxu0 %v960
    %1401 = vmatpush1.msra.mxu0 %v959
    %1402 = vmatprep.subr.mxu0 %v968
    %1403 = vmatpush1.msra.mxu0 %v967
    %1404 = vmatprep.subr.mxu0 %v976
    %1405 = vmatpush1.msra.mxu0 %v975
    %1406 = vmatprep.subr.mxu0 %v984
    %1407 = vmatpush1.msra.mxu0 %v983
    %1408 = vmatprep.subr.mxu0 %v992
    %1409 = vmatpush1.msra.mxu0 %v991
    %1410 = vmatprep.subr.mxu0 %v1000
    %1411 = vmatpush1.msra.mxu0 %v999
    %1412 = vmatprep.subr.mxu0 %v1008
    %1413 = vmatpush1.msra.mxu0 %v1007
    %1414 = vmatprep.subr.mxu0 %v1016
    %1415 = vmatpush1.msra.mxu0 %v1015
    %1416 = vmatprep.subr.mxu0 %v1024
    %1417 = vmatpush1.msra.mxu0 %v1023
    %1418 = vmatprep.subr.mxu0 %v1032
    %1419 = vmatpush1.msra.mxu0 %v1031
    %1420 = vmatprep.subr.mxu0 %v1040
    %1421 = vmatpush1.msra.mxu0 %v1039
    %1422 = vmatprep.subr.mxu0 %v1048
    %1423 = vmatpush1.msra.mxu0 %v1047
    %1424 = vmatprep.subr.mxu0 %v1056
    %1425 = vmatpush1.msra.mxu0 %v1055
    %1426 = vmatprep.mubr.f32.mxu0 %v1140
    %1427 = vmatmul.mubr.f32.gmra.mrb[0].mxu0 %v1138
    %v1428 = vpop.f32.mrb[0].mxu0
    %v1429 = vadd.f32 %v1358, %v1428
    %v1430 = vpop.f32.mrb[0].mxu0
    %v1431 = vadd.f32 %v1360, %v1430
    %1432 = vdwg.mxu0
    %1433 = vmatprep.subr.mxu0 %v42
    %1434 = vmatpush1.msra.mxu0 %v41
    %1435 = vmatprep.subr.mxu0 %v50
    %1436 = vmatpush1.msra.mxu0 %v49
    %1437 = vmatprep.subr.mxu0 %v58
    %1438 = vmatpush1.msra.mxu0 %v57
    %1439 = vmatprep.subr.mxu0 %v66
    %1440 = vmatpush1.msra.mxu0 %v65
    %1441 = vmatprep.subr.mxu0 %v74
    %1442 = vmatpush1.msra.mxu0 %v73
    %1443 = vmatprep.subr.mxu0 %v82
    %1444 = vmatpush1.msra.mxu0 %v81
    %1445 = vmatprep.subr.mxu0 %v90
    %1446 = vmatpush1.msra.mxu0 %v89
    %1447 = vmatprep.subr.mxu0 %v98
    %1448 = vmatpush1.msra.mxu0 %v97
    %1449 = vmatprep.subr.mxu0 %v106
    %1450 = vmatpush1.msra.mxu0 %v105
    %1451 = vmatprep.subr.mxu0 %v114
    %1452 = vmatpush1.msra.mxu0 %v113
    %1453 = vmatprep.subr.mxu0 %v122
    %1454 = vmatpush1.msra.mxu0 %v121
    %1455 = vmatprep.subr.mxu0 %v130
    %1456 = vmatpush1.msra.mxu0 %v129
    %1457 = vmatprep.subr.mxu0 %v138
    %1458 = vmatpush1.msra.mxu0 %v137
    %1459 = vmatprep.subr.mxu0 %v146
    %1460 = vmatpush1.msra.mxu0 %v145
    %1461 = vmatprep.subr.mxu0 %v154
    %1462 = vmatpush1.msra.mxu0 %v153
    %1463 = vmatprep.subr.mxu0 %v162
    %1464 = vmatpush1.msra.mxu0 %v161
    %1465 = vmatprep.subr.mxu0 %v170
    %1466 = vmatpush1.msra.mxu0 %v169
    %1467 = vmatprep.subr.mxu0 %v178
    %1468 = vmatpush1.msra.mxu0 %v177
    %1469 = vmatprep.subr.mxu0 %v186
    %1470 = vmatpush1.msra.mxu0 %v185
    %1471 = vmatprep.subr.mxu0 %v194
    %1472 = vmatpush1.msra.mxu0 %v193
    %1473 = vmatprep.subr.mxu0 %v202
    %1474 = vmatpush1.msra.mxu0 %v201
    %1475 = vmatprep.subr.mxu0 %v210
    %1476 = vmatpush1.msra.mxu0 %v209
    %1477 = vmatprep.subr.mxu0 %v218
    %1478 = vmatpush1.msra.mxu0 %v217
    %1479 = vmatprep.subr.mxu0 %v226
    %1480 = vmatpush1.msra.mxu0 %v225
    %1481 = vmatprep.subr.mxu0 %v234
    %1482 = vmatpush1.msra.mxu0 %v233
    %1483 = vmatprep.subr.mxu0 %v242
    %1484 = vmatpush1.msra.mxu0 %v241
    %1485 = vmatprep.subr.mxu0 %v250
    %1486 = vmatpush1.msra.mxu0 %v249
    %1487 = vmatprep.subr.mxu0 %v258
    %1488 = vmatpush1.msra.mxu0 %v257
    %1489 = vmatprep.subr.mxu0 %v266
    %1490 = vmatpush1.msra.mxu0 %v265
    %1491 = vmatprep.subr.mxu0 %v274
    %1492 = vmatpush1.msra.mxu0 %v273
    %1493 = vmatprep.subr.mxu0 %v282
    %1494 = vmatpush1.msra.mxu0 %v281
    %1495 = vmatprep.subr.mxu0 %v290
    %1496 = vmatpush1.msra.mxu0 %v289
    %1497 = vmatprep.mubr.f32.mxu0 %v1122
    %1498 = vmatmul.mubr.f32.gmra.mrb[0].mxu0 %v1114
    %v1499 = vpop.f32.mrb[0].mxu0
    %v1500 = vadd.f32 %v1076, %v1499
    %v1501 = vpop.f32.mrb[0].mxu0
    %v1502 = vadd.f32 %v1080, %v1501
    %1503 = vdwg.mxu0
    %1504 = vmatprep.subr.mxu0 %v298
    %1505 = vmatpush1.msra.mxu0 %v297
    %1506 = vmatprep.subr.mxu0 %v306
    %1507 = vmatpush1.msra.mxu0 %v305
    %1508 = vmatprep.subr.mxu0 %v314
    %1509 = vmatpush1.msra.mxu0 %v313
    %1510 = vmatprep.subr.mxu0 %v322
    %1511 = vmatpush1.msra.mxu0 %v321
    %1512 = vmatprep.subr.mxu0 %v330
    %1513 = vmatpush1.msra.mxu0 %v329
    %1514 = vmatprep.subr.mxu0 %v338
    %1515 = vmatpush1.msra.mxu0 %v337
    %1516 = vmatprep.subr.mxu0 %v346
    %1517 = vmatpush1.msra.mxu0 %v345
    %1518 = vmatprep.subr.mxu0 %v354
    %1519 = vmatpush1.msra.mxu0 %v353
    %1520 = vmatprep.subr.mxu0 %v362
    %1521 = vmatpush1.msra.mxu0 %v361
    %1522 = vmatprep.subr.mxu0 %v370
    %1523 = vmatpush1.msra.mxu0 %v369
    %1524 = vmatprep.subr.mxu0 %v378
    %1525 = vmatpush1.msra.mxu0 %v377
    %1526 = vmatprep.subr.mxu0 %v386
    %1527 = vmatpush1.msra.mxu0 %v385
    %1528 = vmatprep.subr.mxu0 %v394
    %1529 = vmatpush1.msra.mxu0 %v393
    %1530 = vmatprep.subr.mxu0 %v402
    %1531 = vmatpush1.msra.mxu0 %v401
    %1532 = vmatprep.subr.mxu0 %v410
    %1533 = vmatpush1.msra.mxu0 %v409
    %1534 = vmatprep.subr.mxu0 %v418
    %1535 = vmatpush1.msra.mxu0 %v417
    %1536 = vmatprep.subr.mxu0 %v426
    %1537 = vmatpush1.msra.mxu0 %v425
    %1538 = vmatprep.subr.mxu0 %v434
    %1539 = vmatpush1.msra.mxu0 %v433
    %1540 = vmatprep.subr.mxu0 %v442
    %1541 = vmatpush1.msra.mxu0 %v441
    %1542 = vmatprep.subr.mxu0 %v450
    %1543 = vmatpush1.msra.mxu0 %v449
    %1544 = vmatprep.subr.mxu0 %v458
    %1545 = vmatpush1.msra.mxu0 %v457
    %1546 = vmatprep.subr.mxu0 %v466
    %1547 = vmatpush1.msra.mxu0 %v465
    %1548 = vmatprep.subr.mxu0 %v474
    %1549 = vmatpush1.msra.mxu0 %v473
    %1550 = vmatprep.subr.mxu0 %v482
    %1551 = vmatpush1.msra.mxu0 %v481
    %1552 = vmatprep.subr.mxu0 %v490
    %1553 = vmatpush1.msra.mxu0 %v489
    %1554 = vmatprep.subr.mxu0 %v498
    %1555 = vmatpush1.msra.mxu0 %v497
    %1556 = vmatprep.subr.mxu0 %v506
    %1557 = vmatpush1.msra.mxu0 %v505
    %1558 = vmatprep.subr.mxu0 %v514
    %1559 = vmatpush1.msra.mxu0 %v513
    %1560 = vmatprep.subr.mxu0 %v522
    %1561 = vmatpush1.msra.mxu0 %v521
    %1562 = vmatprep.subr.mxu0 %v530
    %1563 = vmatpush1.msra.mxu0 %v529
    %1564 = vmatprep.subr.mxu0 %v538
    %1565 = vmatpush1.msra.mxu0 %v537
    %1566 = vmatprep.subr.mxu0 %v546
    %1567 = vmatpush1.msra.mxu0 %v545
    %1568 = vmatprep.mubr.f32.mxu0 %v1123
    %1569 = vmatmul.mubr.f32.gmra.mrb[0].mxu0 %v1121
    %v1570 = vpop.f32.mrb[0].mxu0
    %v1571 = vadd.f32 %v1500, %v1570
    %v1572 = vpop.f32.mrb[0].mxu0
    %v1573 = vadd.f32 %v1502, %v1572
    %1574 = vdwg.mxu0
    %1575 = vmatprep.subr.mxu0 %v554
    %1576 = vmatpush1.msra.mxu0 %v553
    %1577 = vmatprep.subr.mxu0 %v562
    %1578 = vmatpush1.msra.mxu0 %v561
    %1579 = vmatprep.subr.mxu0 %v570
    %1580 = vmatpush1.msra.mxu0 %v569
    %1581 = vmatprep.subr.mxu0 %v578
    %1582 = vmatpush1.msra.mxu0 %v577
    %1583 = vmatprep.subr.mxu0 %v586
    %1584 = vmatpush1.msra.mxu0 %v585
    %1585 = vmatprep.subr.mxu0 %v594
    %1586 = vmatpush1.msra.mxu0 %v593
    %1587 = vmatprep.subr.mxu0 %v602
    %1588 = vmatpush1.msra.mxu0 %v601
    %1589 = vmatprep.subr.mxu0 %v610
    %1590 = vmatpush1.msra.mxu0 %v609
    %1591 = vmatprep.subr.mxu0 %v618
    %1592 = vmatpush1.msra.mxu0 %v617
    %1593 = vmatprep.subr.mxu0 %v626
    %1594 = vmatpush1.msra.mxu0 %v625
    %1595 = vmatprep.subr.mxu0 %v634
    %1596 = vmatpush1.msra.mxu0 %v633
    %1597 = vmatprep.subr.mxu0 %v642
    %1598 = vmatpush1.msra.mxu0 %v641
    %1599 = vmatprep.subr.mxu0 %v650
    %1600 = vmatpush1.msra.mxu0 %v649
    %1601 = vmatprep.subr.mxu0 %v658
    %1602 = vmatpush1.msra.mxu0 %v657
    %1603 = vmatprep.subr.mxu0 %v666
    %1604 = vmatpush1.msra.mxu0 %v665
    %1605 = vmatprep.subr.mxu0 %v674
    %1606 = vmatpush1.msra.mxu0 %v673
    %1607 = vmatprep.subr.mxu0 %v682
    %1608 = vmatpush1.msra.mxu0 %v681
    %1609 = vmatprep.subr.mxu0 %v690
    %1610 = vmatpush1.msra.mxu0 %v689
    %1611 = vmatprep.subr.mxu0 %v698
    %1612 = vmatpush1.msra.mxu0 %v697
    %1613 = vmatprep.subr.mxu0 %v706
    %1614 = vmatpush1.msra.mxu0 %v705
    %1615 = vmatprep.subr.mxu0 %v714
    %1616 = vmatpush1.msra.mxu0 %v713
    %1617 = vmatprep.subr.mxu0 %v722
    %1618 = vmatpush1.msra.mxu0 %v721
    %1619 = vmatprep.subr.mxu0 %v730
    %1620 = vmatpush1.msra.mxu0 %v729
    %1621 = vmatprep.subr.mxu0 %v738
    %1622 = vmatpush1.msra.mxu0 %v737
    %1623 = vmatprep.subr.mxu0 %v746
    %1624 = vmatpush1.msra.mxu0 %v745
    %1625 = vmatprep.subr.mxu0 %v754
    %1626 = vmatpush1.msra.mxu0 %v753
    %1627 = vmatprep.subr.mxu0 %v762
    %1628 = vmatpush1.msra.mxu0 %v761
    %1629 = vmatprep.subr.mxu0 %v770
    %1630 = vmatpush1.msra.mxu0 %v769
    %1631 = vmatprep.subr.mxu0 %v778
    %1632 = vmatpush1.msra.mxu0 %v777
    %1633 = vmatprep.subr.mxu0 %v786
    %1634 = vmatpush1.msra.mxu0 %v785
    %1635 = vmatprep.subr.mxu0 %v794
    %1636 = vmatpush1.msra.mxu0 %v793
    %1637 = vmatprep.subr.mxu0 %v802
    %1638 = vmatpush1.msra.mxu0 %v801
    %1639 = vmatprep.mubr.f32.mxu0 %v1139
    %1640 = vmatmul.mubr.f32.gmra.mrb[0].mxu0 %v1131
    %v1641 = vpop.f32.mrb[0].mxu0
    %v1642 = vadd.f32 %v1571, %v1641
    %v1643 = vpop.f32.mrb[0].mxu0
    %v1644 = vadd.f32 %v1573, %v1643
    %1645 = vdwg.mxu0
    %1646 = vmatprep.subr.mxu0 %v810
    %1647 = vmatpush1.msra.mxu0 %v809
    %1648 = vmatprep.subr.mxu0 %v818
    %1649 = vmatpush1.msra.mxu0 %v817
    %1650 = vmatprep.subr.mxu0 %v826
    %1651 = vmatpush1.msra.mxu0 %v825
    %1652 = vmatprep.subr.mxu0 %v834
    %1653 = vmatpush1.msra.mxu0 %v833
    %1654 = vmatprep.subr.mxu0 %v842
    %1655 = vmatpush1.msra.mxu0 %v841
    %1656 = vmatprep.subr.mxu0 %v850
    %1657 = vmatpush1.msra.mxu0 %v849
    %1658 = vmatprep.subr.mxu0 %v858
    %1659 = vmatpush1.msra.mxu0 %v857
    %1660 = vmatprep.subr.mxu0 %v866
    %1661 = vmatpush1.msra.mxu0 %v865
    %1662 = vmatprep.subr.mxu0 %v874
    %1663 = vmatpush1.msra.mxu0 %v873
    %1664 = vmatprep.subr.mxu0 %v882
    %1665 = vmatpush1.msra.mxu0 %v881
    %1666 = vmatprep.subr.mxu0 %v890
    %1667 = vmatpush1.msra.mxu0 %v889
    %1668 = vmatprep.subr.mxu0 %v898
    %1669 = vmatpush1.msra.mxu0 %v897
    %1670 = vmatprep.subr.mxu0 %v906
    %1671 = vmatpush1.msra.mxu0 %v905
    %1672 = vmatprep.subr.mxu0 %v914
    %1673 = vmatpush1.msra.mxu0 %v913
    %1674 = vmatprep.subr.mxu0 %v922
    %1675 = vmatpush1.msra.mxu0 %v921
    %1676 = vmatprep.subr.mxu0 %v930
    %1677 = vmatpush1.msra.mxu0 %v929
    %1678 = vmatprep.subr.mxu0 %v938
    %1679 = vmatpush1.msra.mxu0 %v937
    %1680 = vmatprep.subr.mxu0 %v946
    %1681 = vmatpush1.msra.mxu0 %v945
    %1682 = vmatprep.subr.mxu0 %v954
    %1683 = vmatpush1.msra.mxu0 %v953
    %1684 = vmatprep.subr.mxu0 %v962
    %1685 = vmatpush1.msra.mxu0 %v961
    %1686 = vmatprep.subr.mxu0 %v970
    %1687 = vmatpush1.msra.mxu0 %v969
    %1688 = vmatprep.subr.mxu0 %v978
    %1689 = vmatpush1.msra.mxu0 %v977
    %1690 = vmatprep.subr.mxu0 %v986
    %1691 = vmatpush1.msra.mxu0 %v985
    %1692 = vmatprep.subr.mxu0 %v994
    %1693 = vmatpush1.msra.mxu0 %v993
    %1694 = vmatprep.subr.mxu0 %v1002
    %1695 = vmatpush1.msra.mxu0 %v1001
    %1696 = vmatprep.subr.mxu0 %v1010
    %1697 = vmatpush1.msra.mxu0 %v1009
    %1698 = vmatprep.subr.mxu0 %v1018
    %1699 = vmatpush1.msra.mxu0 %v1017
    %1700 = vmatprep.subr.mxu0 %v1026
    %1701 = vmatpush1.msra.mxu0 %v1025
    %1702 = vmatprep.subr.mxu0 %v1034
    %1703 = vmatpush1.msra.mxu0 %v1033
    %1704 = vmatprep.subr.mxu0 %v1042
    %1705 = vmatpush1.msra.mxu0 %v1041
    %1706 = vmatprep.subr.mxu0 %v1050
    %1707 = vmatpush1.msra.mxu0 %v1049
    %1708 = vmatprep.subr.mxu0 %v1058
    %1709 = vmatpush1.msra.mxu0 %v1057
    %1710 = vmatprep.mubr.f32.mxu0 %v1140
    %1711 = vmatmul.mubr.f32.gmra.mrb[0].mxu0 %v1138
    %v1712 = vpop.f32.mrb[0].mxu0
    %v1713 = vadd.f32 %v1642, %v1712
    %v1714 = vpop.f32.mrb[0].mxu0
    %v1715 = vadd.f32 %v1644, %v1714
    %1716 = vdwg.mxu0
    %1717 = vmatprep.subr.mxu0 %v44
    %1718 = vmatpush1.msra.mxu0 %v43
    %1719 = vmatprep.subr.mxu0 %v52
    %1720 = vmatpush1.msra.mxu0 %v51
    %1721 = vmatprep.subr.mxu0 %v60
    %1722 = vmatpush1.msra.mxu0 %v59
    %1723 = vmatprep.subr.mxu0 %v68
    %1724 = vmatpush1.msra.mxu0 %v67
    %1725 = vmatprep.subr.mxu0 %v76
    %1726 = vmatpush1.msra.mxu0 %v75
    %1727 = vmatprep.subr.mxu0 %v84
    %1728 = vmatpush1.msra.mxu0 %v83
    %1729 = vmatprep.subr.mxu0 %v92
    %1730 = vmatpush1.msra.mxu0 %v91
    %1731 = vmatprep.subr.mxu0 %v100
    %1732 = vmatpush1.msra.mxu0 %v99
    %1733 = vmatprep.subr.mxu0 %v108
    %1734 = vmatpush1.msra.mxu0 %v107
    %1735 = vmatprep.subr.mxu0 %v116
    %1736 = vmatpush1.msra.mxu0 %v115
    %1737 = vmatprep.subr.mxu0 %v124
    %1738 = vmatpush1.msra.mxu0 %v123
    %1739 = vmatprep.subr.mxu0 %v132
    %1740 = vmatpush1.msra.mxu0 %v131
    %1741 = vmatprep.subr.mxu0 %v140
    %1742 = vmatpush1.msra.mxu0 %v139
    %1743 = vmatprep.subr.mxu0 %v148
    %1744 = vmatpush1.msra.mxu0 %v147
    %1745 = vmatprep.subr.mxu0 %v156
    %1746 = vmatpush1.msra.mxu0 %v155
    %1747 = vmatprep.subr.mxu0 %v164
    %1748 = vmatpush1.msra.mxu0 %v163
    %1749 = vmatprep.subr.mxu0 %v172
    %1750 = vmatpush1.msra.mxu0 %v171
    %1751 = vmatprep.subr.mxu0 %v180
    %1752 = vmatpush1.msra.mxu0 %v179
    %1753 = vmatprep.subr.mxu0 %v188
    %1754 = vmatpush1.msra.mxu0 %v187
    %1755 = vmatprep.subr.mxu0 %v196
    %1756 = vmatpush1.msra.mxu0 %v195
    %1757 = vmatprep.subr.mxu0 %v204
    %1758 = vmatpush1.msra.mxu0 %v203
    %1759 = vmatprep.subr.mxu0 %v212
    %1760 = vmatpush1.msra.mxu0 %v211
    %1761 = vmatprep.subr.mxu0 %v220
    %1762 = vmatpush1.msra.mxu0 %v219
    %1763 = vmatprep.subr.mxu0 %v228
    %1764 = vmatpush1.msra.mxu0 %v227
    %1765 = vmatprep.subr.mxu0 %v236
    %1766 = vmatpush1.msra.mxu0 %v235
    %1767 = vmatprep.subr.mxu0 %v244
    %1768 = vmatpush1.msra.mxu0 %v243
    %1769 = vmatprep.subr.mxu0 %v252
    %1770 = vmatpush1.msra.mxu0 %v251
    %1771 = vmatprep.subr.mxu0 %v260
    %1772 = vmatpush1.msra.mxu0 %v259
    %1773 = vmatprep.subr.mxu0 %v268
    %1774 = vmatpush1.msra.mxu0 %v267
    %1775 = vmatprep.subr.mxu0 %v276
    %1776 = vmatpush1.msra.mxu0 %v275
    %1777 = vmatprep.subr.mxu0 %v284
    %1778 = vmatpush1.msra.mxu0 %v283
    %1779 = vmatprep.subr.mxu0 %v292
    %1780 = vmatpush1.msra.mxu0 %v291
    %1781 = vmatprep.mubr.f32.mxu0 %v1122
    %1782 = vmatmul.mubr.f32.gmra.mrb[0].mxu0 %v1114
    %v1783 = vpop.f32.mrb[0].mxu0
    %v1784 = vadd.f32 %v1084, %v1783
    %v1785 = vpop.f32.mrb[0].mxu0
    %v1786 = vadd.f32 %v1088, %v1785
    %1787 = vdwg.mxu0
    %1788 = vmatprep.subr.mxu0 %v300
    %1789 = vmatpush1.msra.mxu0 %v299
    %1790 = vmatprep.subr.mxu0 %v308
    %1791 = vmatpush1.msra.mxu0 %v307
    %1792 = vmatprep.subr.mxu0 %v316
    %1793 = vmatpush1.msra.mxu0 %v315
    %1794 = vmatprep.subr.mxu0 %v324
    %1795 = vmatpush1.msra.mxu0 %v323
    %1796 = vmatprep.subr.mxu0 %v332
    %1797 = vmatpush1.msra.mxu0 %v331
    %1798 = vmatprep.subr.mxu0 %v340
    %1799 = vmatpush1.msra.mxu0 %v339
    %1800 = vmatprep.subr.mxu0 %v348
    %1801 = vmatpush1.msra.mxu0 %v347
    %1802 = vmatprep.subr.mxu0 %v356
    %1803 = vmatpush1.msra.mxu0 %v355
    %1804 = vmatprep.subr.mxu0 %v364
    %1805 = vmatpush1.msra.mxu0 %v363
    %1806 = vmatprep.subr.mxu0 %v372
    %1807 = vmatpush1.msra.mxu0 %v371
    %1808 = vmatprep.subr.mxu0 %v380
    %1809 = vmatpush1.msra.mxu0 %v379
    %1810 = vmatprep.subr.mxu0 %v388
    %1811 = vmatpush1.msra.mxu0 %v387
    %1812 = vmatprep.subr.mxu0 %v396
    %1813 = vmatpush1.msra.mxu0 %v395
    %1814 = vmatprep.subr.mxu0 %v404
    %1815 = vmatpush1.msra.mxu0 %v403
    %1816 = vmatprep.subr.mxu0 %v412
    %1817 = vmatpush1.msra.mxu0 %v411
    %1818 = vmatprep.subr.mxu0 %v420
    %1819 = vmatpush1.msra.mxu0 %v419
    %1820 = vmatprep.subr.mxu0 %v428
    %1821 = vmatpush1.msra.mxu0 %v427
    %1822 = vmatprep.subr.mxu0 %v436
    %1823 = vmatpush1.msra.mxu0 %v435
    %1824 = vmatprep.subr.mxu0 %v444
    %1825 = vmatpush1.msra.mxu0 %v443
    %1826 = vmatprep.subr.mxu0 %v452
    %1827 = vmatpush1.msra.mxu0 %v451
    %1828 = vmatprep.subr.mxu0 %v460
    %1829 = vmatpush1.msra.mxu0 %v459
    %1830 = vmatprep.subr.mxu0 %v468
    %1831 = vmatpush1.msra.mxu0 %v467
    %1832 = vmatprep.subr.mxu0 %v476
    %1833 = vmatpush1.msra.mxu0 %v475
    %1834 = vmatprep.subr.mxu0 %v484
    %1835 = vmatpush1.msra.mxu0 %v483
    %1836 = vmatprep.subr.mxu0 %v492
    %1837 = vmatpush1.msra.mxu0 %v491
    %1838 = vmatprep.subr.mxu0 %v500
    %1839 = vmatpush1.msra.mxu0 %v499
    %1840 = vmatprep.subr.mxu0 %v508
    %1841 = vmatpush1.msra.mxu0 %v507
    %1842 = vmatprep.subr.mxu0 %v516
    %1843 = vmatpush1.msra.mxu0 %v515
    %1844 = vmatprep.subr.mxu0 %v524
    %1845 = vmatpush1.msra.mxu0 %v523
    %1846 = vmatprep.subr.mxu0 %v532
    %1847 = vmatpush1.msra.mxu0 %v531
    %1848 = vmatprep.subr.mxu0 %v540
    %1849 = vmatpush1.msra.mxu0 %v539
    %1850 = vmatprep.subr.mxu0 %v548
    %1851 = vmatpush1.msra.mxu0 %v547
    %1852 = vmatprep.mubr.f32.mxu0 %v1123
    %1853 = vmatmul.mubr.f32.gmra.mrb[0].mxu0 %v1121
    %v1854 = vpop.f32.mrb[0].mxu0
    %v1855 = vadd.f32 %v1784, %v1854
    %v1856 = vpop.f32.mrb[0].mxu0
    %v1857 = vadd.f32 %v1786, %v1856
    %1858 = vdwg.mxu0
    %1859 = vmatprep.subr.mxu0 %v556
    %1860 = vmatpush1.msra.mxu0 %v555
    %1861 = vmatprep.subr.mxu0 %v564
    %1862 = vmatpush1.msra.mxu0 %v563
    %1863 = vmatprep.subr.mxu0 %v572
    %1864 = vmatpush1.msra.mxu0 %v571
    %1865 = vmatprep.subr.mxu0 %v580
    %1866 = vmatpush1.msra.mxu0 %v579
    %1867 = vmatprep.subr.mxu0 %v588
    %1868 = vmatpush1.msra.mxu0 %v587
    %1869 = vmatprep.subr.mxu0 %v596
    %1870 = vmatpush1.msra.mxu0 %v595
    %1871 = vmatprep.subr.mxu0 %v604
    %1872 = vmatpush1.msra.mxu0 %v603
    %1873 = vmatprep.subr.mxu0 %v612
    %1874 = vmatpush1.msra.mxu0 %v611
    %1875 = vmatprep.subr.mxu0 %v620
    %1876 = vmatpush1.msra.mxu0 %v619
    %1877 = vmatprep.subr.mxu0 %v628
    %1878 = vmatpush1.msra.mxu0 %v627
    %1879 = vmatprep.subr.mxu0 %v636
    %1880 = vmatpush1.msra.mxu0 %v635
    %1881 = vmatprep.subr.mxu0 %v644
    %1882 = vmatpush1.msra.mxu0 %v643
    %1883 = vmatprep.subr.mxu0 %v652
    %1884 = vmatpush1.msra.mxu0 %v651
    %1885 = vmatprep.subr.mxu0 %v660
    %1886 = vmatpush1.msra.mxu0 %v659
    %1887 = vmatprep.subr.mxu0 %v668
    %1888 = vmatpush1.msra.mxu0 %v667
    %1889 = vmatprep.subr.mxu0 %v676
    %1890 = vmatpush1.msra.mxu0 %v675
    %1891 = vmatprep.subr.mxu0 %v684
    %1892 = vmatpush1.msra.mxu0 %v683
    %1893 = vmatprep.subr.mxu0 %v692
    %1894 = vmatpush1.msra.mxu0 %v691
    %1895 = vmatprep.subr.mxu0 %v700
    %1896 = vmatpush1.msra.mxu0 %v699
    %1897 = vmatprep.subr.mxu0 %v708
    %1898 = vmatpush1.msra.mxu0 %v707
    %1899 = vmatprep.subr.mxu0 %v716
    %1900 = vmatpush1.msra.mxu0 %v715
    %1901 = vmatprep.subr.mxu0 %v724
    %1902 = vmatpush1.msra.mxu0 %v723
    %1903 = vmatprep.subr.mxu0 %v732
    %1904 = vmatpush1.msra.mxu0 %v731
    %1905 = vmatprep.subr.mxu0 %v740
    %1906 = vmatpush1.msra.mxu0 %v739
    %1907 = vmatprep.subr.mxu0 %v748
    %1908 = vmatpush1.msra.mxu0 %v747
    %1909 = vmatprep.subr.mxu0 %v756
    %1910 = vmatpush1.msra.mxu0 %v755
    %1911 = vmatprep.subr.mxu0 %v764
    %1912 = vmatpush1.msra.mxu0 %v763
    %1913 = vmatprep.subr.mxu0 %v772
    %1914 = vmatpush1.msra.mxu0 %v771
    %1915 = vmatprep.subr.mxu0 %v780
    %1916 = vmatpush1.msra.mxu0 %v779
    %1917 = vmatprep.subr.mxu0 %v788
    %1918 = vmatpush1.msra.mxu0 %v787
    %1919 = vmatprep.subr.mxu0 %v796
    %1920 = vmatpush1.msra.mxu0 %v795
    %1921 = vmatprep.subr.mxu0 %v804
    %1922 = vmatpush1.msra.mxu0 %v803
    %1923 = vmatprep.mubr.f32.mxu0 %v1139
    %1924 = vmatmul.mubr.f32.gmra.mrb[0].mxu0 %v1131
    %v1925 = vpop.f32.mrb[0].mxu0
    %v1926 = vadd.f32 %v1855, %v1925
    %v1927 = vpop.f32.mrb[0].mxu0
    %v1928 = vadd.f32 %v1857, %v1927
    %1929 = vdwg.mxu0
    %1930 = vmatprep.subr.mxu0 %v812
    %1931 = vmatpush1.msra.mxu0 %v811
    %1932 = vmatprep.subr.mxu0 %v820
    %1933 = vmatpush1.msra.mxu0 %v819
    %1934 = vmatprep.subr.mxu0 %v828
    %1935 = vmatpush1.msra.mxu0 %v827
    %1936 = vmatprep.subr.mxu0 %v836
    %1937 = vmatpush1.msra.mxu0 %v835
    %1938 = vmatprep.subr.mxu0 %v844
    %1939 = vmatpush1.msra.mxu0 %v843
    %1940 = vmatprep.subr.mxu0 %v852
    %1941 = vmatpush1.msra.mxu0 %v851
    %1942 = vmatprep.subr.mxu0 %v860
    %1943 = vmatpush1.msra.mxu0 %v859
    %1944 = vmatprep.subr.mxu0 %v868
    %1945 = vmatpush1.msra.mxu0 %v867
    %1946 = vmatprep.subr.mxu0 %v876
    %1947 = vmatpush1.msra.mxu0 %v875
    %1948 = vmatprep.subr.mxu0 %v884
    %1949 = vmatpush1.msra.mxu0 %v883
    %1950 = vmatprep.subr.mxu0 %v892
    %1951 = vmatpush1.msra.mxu0 %v891
    %1952 = vmatprep.subr.mxu0 %v900
    %1953 = vmatpush1.msra.mxu0 %v899
    %1954 = vmatprep.subr.mxu0 %v908
    %1955 = vmatpush1.msra.mxu0 %v907
    %1956 = vmatprep.subr.mxu0 %v916
    %1957 = vmatpush1.msra.mxu0 %v915
    %1958 = vmatprep.subr.mxu0 %v924
    %1959 = vmatpush1.msra.mxu0 %v923
    %1960 = vmatprep.subr.mxu0 %v932
    %1961 = vmatpush1.msra.mxu0 %v931
    %1962 = vmatprep.subr.mxu0 %v940
    %1963 = vmatpush1.msra.mxu0 %v939
    %1964 = vmatprep.subr.mxu0 %v948
    %1965 = vmatpush1.msra.mxu0 %v947
    %1966 = vmatprep.subr.mxu0 %v956
    %1967 = vmatpush1.msra.mxu0 %v955
    %1968 = vmatprep.subr.mxu0 %v964
    %1969 = vmatpush1.msra.mxu0 %v963
    %1970 = vmatprep.subr.mxu0 %v972
    %1971 = vmatpush1.msra.mxu0 %v971
    %1972 = vmatprep.subr.mxu0 %v980
    %1973 = vmatpush1.msra.mxu0 %v979
    %1974 = vmatprep.subr.mxu0 %v988
    %1975 = vmatpush1.msra.mxu0 %v987
    %1976 = vmatprep.subr.mxu0 %v996
    %1977 = vmatpush1.msra.mxu0 %v995
    %1978 = vmatprep.subr.mxu0 %v1004
    %1979 = vmatpush1.msra.mxu0 %v1003
    %1980 = vmatprep.subr.mxu0 %v1012
    %1981 = vmatpush1.msra.mxu0 %v1011
    %1982 = vmatprep.subr.mxu0 %v1020
    %1983 = vmatpush1.msra.mxu0 %v1019
    %1984 = vmatprep.subr.mxu0 %v1028
    %1985 = vmatpush1.msra.mxu0 %v1027
    %1986 = vmatprep.subr.mxu0 %v1036
    %1987 = vmatpush1.msra.mxu0 %v1035
    %1988 = vmatprep.subr.mxu0 %v1044
    %1989 = vmatpush1.msra.mxu0 %v1043
    %1990 = vmatprep.subr.mxu0 %v1052
    %1991 = vmatpush1.msra.mxu0 %v1051
    %1992 = vmatprep.subr.mxu0 %v1060
    %1993 = vmatpush1.msra.mxu0 %v1059
    %1994 = vmatprep.mubr.f32.mxu0 %v1140
    %1995 = vmatmul.mubr.f32.gmra.mrb[0].mxu0 %v1138
    %v1996 = vpop.f32.mrb[0].mxu0
    %v1997 = vadd.f32 %v1926, %v1996
    %v1998 = vpop.f32.mrb[0].mxu0
    %v1999 = vadd.f32 %v1928, %v1998
    %2000 = vdwg.mxu0
    %2001 = vmatprep.subr.mxu0 %v46
    %2002 = vmatpush1.msra.mxu0 %v45
    %2003 = vmatprep.subr.mxu0 %v54
    %2004 = vmatpush1.msra.mxu0 %v53
    %2005 = vmatprep.subr.mxu0 %v62
    %2006 = vmatpush1.msra.mxu0 %v61
    %2007 = vmatprep.subr.mxu0 %v70
    %2008 = vmatpush1.msra.mxu0 %v69
    %2009 = vmatprep.subr.mxu0 %v78
    %2010 = vmatpush1.msra.mxu0 %v77
    %2011 = vmatprep.subr.mxu0 %v86
    %2012 = vmatpush1.msra.mxu0 %v85
    %2013 = vmatprep.subr.mxu0 %v94
    %2014 = vmatpush1.msra.mxu0 %v93
    %2015 = vmatprep.subr.mxu0 %v102
    %2016 = vmatpush1.msra.mxu0 %v101
    %2017 = vmatprep.subr.mxu0 %v110
    %2018 = vmatpush1.msra.mxu0 %v109
    %2019 = vmatprep.subr.mxu0 %v118
    %2020 = vmatpush1.msra.mxu0 %v117
    %2021 = vmatprep.subr.mxu0 %v126
    %2022 = vmatpush1.msra.mxu0 %v125
    %2023 = vmatprep.subr.mxu0 %v134
    %2024 = vmatpush1.msra.mxu0 %v133
    %2025 = vmatprep.subr.mxu0 %v142
    %2026 = vmatpush1.msra.mxu0 %v141
    %2027 = vmatprep.subr.mxu0 %v150
    %2028 = vmatpush1.msra.mxu0 %v149
    %2029 = vmatprep.subr.mxu0 %v158
    %2030 = vmatpush1.msra.mxu0 %v157
    %2031 = vmatprep.subr.mxu0 %v166
    %2032 = vmatpush1.msra.mxu0 %v165
    %2033 = vmatprep.subr.mxu0 %v174
    %2034 = vmatpush1.msra.mxu0 %v173
    %2035 = vmatprep.subr.mxu0 %v182
    %2036 = vmatpush1.msra.mxu0 %v181
    %2037 = vmatprep.subr.mxu0 %v190
    %2038 = vmatpush1.msra.mxu0 %v189
    %2039 = vmatprep.subr.mxu0 %v198
    %2040 = vmatpush1.msra.mxu0 %v197
    %2041 = vmatprep.subr.mxu0 %v206
    %2042 = vmatpush1.msra.mxu0 %v205
    %2043 = vmatprep.subr.mxu0 %v214
    %2044 = vmatpush1.msra.mxu0 %v213
    %2045 = vmatprep.subr.mxu0 %v222
    %2046 = vmatpush1.msra.mxu0 %v221
    %2047 = vmatprep.subr.mxu0 %v230
    %2048 = vmatpush1.msra.mxu0 %v229
    %2049 = vmatprep.subr.mxu0 %v238
    %2050 = vmatpush1.msra.mxu0 %v237
    %2051 = vmatprep.subr.mxu0 %v246
    %2052 = vmatpush1.msra.mxu0 %v245
    %2053 = vmatprep.subr.mxu0 %v254
    %2054 = vmatpush1.msra.mxu0 %v253
    %2055 = vmatprep.subr.mxu0 %v262
    %2056 = vmatpush1.msra.mxu0 %v261
    %2057 = vmatprep.subr.mxu0 %v270
    %2058 = vmatpush1.msra.mxu0 %v269
    %2059 = vmatprep.subr.mxu0 %v278
    %2060 = vmatpush1.msra.mxu0 %v277
    %2061 = vmatprep.subr.mxu0 %v286
    %2062 = vmatpush1.msra.mxu0 %v285
    %2063 = vmatprep.subr.mxu0 %v294
    %2064 = vmatpush1.msra.mxu0 %v293
    %2065 = vmatprep.mubr.f32.mxu0 %v1122
    %2066 = vmatmul.mubr.f32.gmra.mrb[0].mxu0 %v1114
    %v2067 = vpop.f32.mrb[0].mxu0
    %v2068 = vadd.f32 %v1092, %v2067
    %v2069 = vpop.f32.mrb[0].mxu0
    %v2070 = vadd.f32 %v1096, %v2069
    %2071 = vdwg.mxu0
    %2072 = vmatprep.subr.mxu0 %v302
    %2073 = vmatpush1.msra.mxu0 %v301
    %2074 = vmatprep.subr.mxu0 %v310
    %2075 = vmatpush1.msra.mxu0 %v309
    %2076 = vmatprep.subr.mxu0 %v318
    %2077 = vmatpush1.msra.mxu0 %v317
    %2078 = vmatprep.subr.mxu0 %v326
    %2079 = vmatpush1.msra.mxu0 %v325
    %2080 = vmatprep.subr.mxu0 %v334
    %2081 = vmatpush1.msra.mxu0 %v333
    %2082 = vmatprep.subr.mxu0 %v342
    %2083 = vmatpush1.msra.mxu0 %v341
    %2084 = vmatprep.subr.mxu0 %v350
    %2085 = vmatpush1.msra.mxu0 %v349
    %2086 = vmatprep.subr.mxu0 %v358
    %2087 = vmatpush1.msra.mxu0 %v357
    %2088 = vmatprep.subr.mxu0 %v366
    %2089 = vmatpush1.msra.mxu0 %v365
    %2090 = vmatprep.subr.mxu0 %v374
    %2091 = vmatpush1.msra.mxu0 %v373
    %2092 = vmatprep.subr.mxu0 %v382
    %2093 = vmatpush1.msra.mxu0 %v381
    %2094 = vmatprep.subr.mxu0 %v390
    %2095 = vmatpush1.msra.mxu0 %v389
    %2096 = vmatprep.subr.mxu0 %v398
    %2097 = vmatpush1.msra.mxu0 %v397
    %2098 = vmatprep.subr.mxu0 %v406
    %2099 = vmatpush1.msra.mxu0 %v405
    %2100 = vmatprep.subr.mxu0 %v414
    %2101 = vmatpush1.msra.mxu0 %v413
    %2102 = vmatprep.subr.mxu0 %v422
    %2103 = vmatpush1.msra.mxu0 %v421
    %2104 = vmatprep.subr.mxu0 %v430
    %2105 = vmatpush1.msra.mxu0 %v429
    %2106 = vmatprep.subr.mxu0 %v438
    %2107 = vmatpush1.msra.mxu0 %v437
    %2108 = vmatprep.subr.mxu0 %v446
    %2109 = vmatpush1.msra.mxu0 %v445
    %2110 = vmatprep.subr.mxu0 %v454
    %2111 = vmatpush1.msra.mxu0 %v453
    %2112 = vmatprep.subr.mxu0 %v462
    %2113 = vmatpush1.msra.mxu0 %v461
    %2114 = vmatprep.subr.mxu0 %v470
    %2115 = vmatpush1.msra.mxu0 %v469
    %2116 = vmatprep.subr.mxu0 %v478
    %2117 = vmatpush1.msra.mxu0 %v477
    %2118 = vmatprep.subr.mxu0 %v486
    %2119 = vmatpush1.msra.mxu0 %v485
    %2120 = vmatprep.subr.mxu0 %v494
    %2121 = vmatpush1.msra.mxu0 %v493
    %2122 = vmatprep.subr.mxu0 %v502
    %2123 = vmatpush1.msra.mxu0 %v501
    %2124 = vmatprep.subr.mxu0 %v510
    %2125 = vmatpush1.msra.mxu0 %v509
    %2126 = vmatprep.subr.mxu0 %v518
    %2127 = vmatpush1.msra.mxu0 %v517
    %2128 = vmatprep.subr.mxu0 %v526
    %2129 = vmatpush1.msra.mxu0 %v525
    %2130 = vmatprep.subr.mxu0 %v534
    %2131 = vmatpush1.msra.mxu0 %v533
    %2132 = vmatprep.subr.mxu0 %v542
    %2133 = vmatpush1.msra.mxu0 %v541
    %2134 = vmatprep.subr.mxu0 %v550
    %2135 = vmatpush1.msra.mxu0 %v549
    %2136 = vmatprep.mubr.f32.mxu0 %v1123
    %2137 = vmatmul.mubr.f32.gmra.mrb[0].mxu0 %v1121
    %v2138 = vpop.f32.mrb[0].mxu0
    %v2139 = vadd.f32 %v2068, %v2138
    %v2140 = vpop.f32.mrb[0].mxu0
    %v2141 = vadd.f32 %v2070, %v2140
    %2142 = vdwg.mxu0
    %2143 = vmatprep.subr.mxu0 %v558
    %2144 = vmatpush1.msra.mxu0 %v557
    %2145 = vmatprep.subr.mxu0 %v566
    %2146 = vmatpush1.msra.mxu0 %v565
    %2147 = vmatprep.subr.mxu0 %v574
    %2148 = vmatpush1.msra.mxu0 %v573
    %2149 = vmatprep.subr.mxu0 %v582
    %2150 = vmatpush1.msra.mxu0 %v581
    %2151 = vmatprep.subr.mxu0 %v590
    %2152 = vmatpush1.msra.mxu0 %v589
    %2153 = vmatprep.subr.mxu0 %v598
    %2154 = vmatpush1.msra.mxu0 %v597
    %2155 = vmatprep.subr.mxu0 %v606
    %2156 = vmatpush1.msra.mxu0 %v605
    %2157 = vmatprep.subr.mxu0 %v614
    %2158 = vmatpush1.msra.mxu0 %v613
    %2159 = vmatprep.subr.mxu0 %v622
    %2160 = vmatpush1.msra.mxu0 %v621
    %2161 = vmatprep.subr.mxu0 %v630
    %2162 = vmatpush1.msra.mxu0 %v629
    %2163 = vmatprep.subr.mxu0 %v638
    %2164 = vmatpush1.msra.mxu0 %v637
    %2165 = vmatprep.subr.mxu0 %v646
    %2166 = vmatpush1.msra.mxu0 %v645
    %2167 = vmatprep.subr.mxu0 %v654
    %2168 = vmatpush1.msra.mxu0 %v653
    %2169 = vmatprep.subr.mxu0 %v662
    %2170 = vmatpush1.msra.mxu0 %v661
    %2171 = vmatprep.subr.mxu0 %v670
    %2172 = vmatpush1.msra.mxu0 %v669
    %2173 = vmatprep.subr.mxu0 %v678
    %2174 = vmatpush1.msra.mxu0 %v677
    %2175 = vmatprep.subr.mxu0 %v686
    %2176 = vmatpush1.msra.mxu0 %v685
    %2177 = vmatprep.subr.mxu0 %v694
    %2178 = vmatpush1.msra.mxu0 %v693
    %2179 = vmatprep.subr.mxu0 %v702
    %2180 = vmatpush1.msra.mxu0 %v701
    %2181 = vmatprep.subr.mxu0 %v710
    %2182 = vmatpush1.msra.mxu0 %v709
    %2183 = vmatprep.subr.mxu0 %v718
    %2184 = vmatpush1.msra.mxu0 %v717
    %2185 = vmatprep.subr.mxu0 %v726
    %2186 = vmatpush1.msra.mxu0 %v725
    %2187 = vmatprep.subr.mxu0 %v734
    %2188 = vmatpush1.msra.mxu0 %v733
    %2189 = vmatprep.subr.mxu0 %v742
    %2190 = vmatpush1.msra.mxu0 %v741
    %2191 = vmatprep.subr.mxu0 %v750
    %2192 = vmatpush1.msra.mxu0 %v749
    %2193 = vmatprep.subr.mxu0 %v758
    %2194 = vmatpush1.msra.mxu0 %v757
    %2195 = vmatprep.subr.mxu0 %v766
    %2196 = vmatpush1.msra.mxu0 %v765
    %2197 = vmatprep.subr.mxu0 %v774
    %2198 = vmatpush1.msra.mxu0 %v773
    %2199 = vmatprep.subr.mxu0 %v782
    %2200 = vmatpush1.msra.mxu0 %v781
    %2201 = vmatprep.subr.mxu0 %v790
    %2202 = vmatpush1.msra.mxu0 %v789
    %2203 = vmatprep.subr.mxu0 %v798
    %2204 = vmatpush1.msra.mxu0 %v797
    %2205 = vmatprep.subr.mxu0 %v806
    %2206 = vmatpush1.msra.mxu0 %v805
    %2207 = vmatprep.mubr.f32.mxu0 %v1139
    %2208 = vmatmul.mubr.f32.gmra.mrb[0].mxu0 %v1131
    %v2209 = vpop.f32.mrb[0].mxu0
    %v2210 = vadd.f32 %v2139, %v2209
    %v2211 = vpop.f32.mrb[0].mxu0
    %v2212 = vadd.f32 %v2141, %v2211
    %2213 = vdwg.mxu0
    %2214 = vmatprep.subr.mxu0 %v814
    %2215 = vmatpush1.msra.mxu0 %v813
    %2216 = vmatprep.subr.mxu0 %v822
    %2217 = vmatpush1.msra.mxu0 %v821
    %2218 = vmatprep.subr.mxu0 %v830
    %2219 = vmatpush1.msra.mxu0 %v829
    %2220 = vmatprep.subr.mxu0 %v838
    %2221 = vmatpush1.msra.mxu0 %v837
    %2222 = vmatprep.subr.mxu0 %v846
    %2223 = vmatpush1.msra.mxu0 %v845
    %2224 = vmatprep.subr.mxu0 %v854
    %2225 = vmatpush1.msra.mxu0 %v853
    %2226 = vmatprep.subr.mxu0 %v862
    %2227 = vmatpush1.msra.mxu0 %v861
    %2228 = vmatprep.subr.mxu0 %v870
    %2229 = vmatpush1.msra.mxu0 %v869
    %2230 = vmatprep.subr.mxu0 %v878
    %2231 = vmatpush1.msra.mxu0 %v877
    %2232 = vmatprep.subr.mxu0 %v886
    %2233 = vmatpush1.msra.mxu0 %v885
    %2234 = vmatprep.subr.mxu0 %v894
    %2235 = vmatpush1.msra.mxu0 %v893
    %2236 = vmatprep.subr.mxu0 %v902
    %2237 = vmatpush1.msra.mxu0 %v901
    %2238 = vmatprep.subr.mxu0 %v910
    %2239 = vmatpush1.msra.mxu0 %v909
    %2240 = vmatprep.subr.mxu0 %v918
    %2241 = vmatpush1.msra.mxu0 %v917
    %2242 = vmatprep.subr.mxu0 %v926
    %2243 = vmatpush1.msra.mxu0 %v925
    %2244 = vmatprep.subr.mxu0 %v934
    %2245 = vmatpush1.msra.mxu0 %v933
    %2246 = vmatprep.subr.mxu0 %v942
    %2247 = vmatpush1.msra.mxu0 %v941
    %2248 = vmatprep.subr.mxu0 %v950
    %2249 = vmatpush1.msra.mxu0 %v949
    %2250 = vmatprep.subr.mxu0 %v958
    %2251 = vmatpush1.msra.mxu0 %v957
    %2252 = vmatprep.subr.mxu0 %v966
    %2253 = vmatpush1.msra.mxu0 %v965
    %2254 = vmatprep.subr.mxu0 %v974
    %2255 = vmatpush1.msra.mxu0 %v973
    %2256 = vmatprep.subr.mxu0 %v982
    %2257 = vmatpush1.msra.mxu0 %v981
    %2258 = vmatprep.subr.mxu0 %v990
    %2259 = vmatpush1.msra.mxu0 %v989
    %2260 = vmatprep.subr.mxu0 %v998
    %2261 = vmatpush1.msra.mxu0 %v997
    %2262 = vmatprep.subr.mxu0 %v1006
    %2263 = vmatpush1.msra.mxu0 %v1005
    %2264 = vmatprep.subr.mxu0 %v1014
    %2265 = vmatpush1.msra.mxu0 %v1013
    %2266 = vmatprep.subr.mxu0 %v1022
    %2267 = vmatpush1.msra.mxu0 %v1021
    %2268 = vmatprep.subr.mxu0 %v1030
    %2269 = vmatpush1.msra.mxu0 %v1029
    %2270 = vmatprep.subr.mxu0 %v1038
    %2271 = vmatpush1.msra.mxu0 %v1037
    %2272 = vmatprep.subr.mxu0 %v1046
    %2273 = vmatpush1.msra.mxu0 %v1045
    %2274 = vmatprep.subr.mxu0 %v1054
    %2275 = vmatpush1.msra.mxu0 %v1053
    %2276 = vmatprep.subr.mxu0 %v1062
    %2277 = vmatpush1.msra.mxu0 %v1061
    %2278 = vmatprep.mubr.f32.mxu0 %v1140
    %2279 = vmatmul.mubr.f32.gmra.mrb[0].mxu0 %v1138
    %v2280 = vpop.f32.mrb[0].mxu0
    %v2281 = vadd.f32 %v2210, %v2280
    %v2282 = vpop.f32.mrb[0].mxu0
    %v2283 = vadd.f32 %v2212, %v2282
    %2284 = vdwg.mxu0
    %vm2285 = vcmp.gt.f32.partialorder %v1429, 0.0
    %vm2286 = vcmp.gt.f32.partialorder %v1431, 0.0
    %vm2287 = vcmp.gt.f32.partialorder %v1713, 0.0
    %vm2288 = vcmp.gt.f32.partialorder %v1715, 0.0
    %vm2289 = vcmp.gt.f32.partialorder %v1997, 0.0
    %vm2290 = vcmp.gt.f32.partialorder %v1999, 0.0
    %vm2291 = vcmp.gt.f32.partialorder %v2281, 0.0
    %vm2292 = vcmp.gt.f32.partialorder %v2283, 0.0
    %v2293 = vmin.f32 %v1429, 0.0
    %v2294 = vmin.f32 %v1431, 0.0
    %v2295 = vmin.f32 %v1713, 0.0
    %v2296 = vmin.f32 %v1715, 0.0
    %v2297 = vmin.f32 %v1997, 0.0
    %v2298 = vmin.f32 %v1999, 0.0
    %v2299 = vmin.f32 %v2281, 0.0
    %v2300 = vmin.f32 %v2283, 0.0
    %v2301 = vmul.f32 %v2293, 1.442695
    %v2302 = vpow.pop %v2301
    %v2303 = vmul.f32 %v2294, 1.442695
    %v2304 = vpow.pop %v2303
    %v2305 = vmul.f32 %v2295, 1.442695
    %v2306 = vpow.pop %v2305
    %v2307 = vmul.f32 %v2296, 1.442695
    %v2308 = vpow.pop %v2307
    %v2309 = vmul.f32 %v2297, 1.442695
    %v2310 = vpow.pop %v2309
    %v2311 = vmul.f32 %v2298, 1.442695
    %v2312 = vpow.pop %v2311
    %v2313 = vmul.f32 %v2299, 1.442695
    %v2314 = vpow.pop %v2313
    %v2315 = vmul.f32 %v2300, 1.442695
    %v2316 = vpow.pop %v2315
    %v2317 = vsub.f32 %v2302, 1.0
    %v2318 = vsub.f32 %v2304, 1.0
    %v2319 = vsub.f32 %v2306, 1.0
    %v2320 = vsub.f32 %v2308, 1.0
    %v2321 = vsub.f32 %v2310, 1.0
    %v2322 = vsub.f32 %v2312, 1.0
    %v2323 = vsub.f32 %v2314, 1.0
    %v2324 = vsub.f32 %v2316, 1.0
    %v2325 = vsel %vm2285, %v1429, %v2317
    %v2326 = vsel %vm2286, %v1431, %v2318
    %v2327 = vsel %vm2287, %v1713, %v2319
    %v2328 = vsel %vm2288, %v1715, %v2320
    %v2329 = vsel %vm2289, %v1997, %v2321
    %v2330 = vsel %vm2290, %v1999, %v2322
    %v2331 = vsel %vm2291, %v2281, %v2323
    %v2332 = vsel %vm2292, %v2283, %v2324
    %v2333 = vld [vmem:[%s3] sm:$0xff]
    %v2334 = vld [vmem:[%s3 + $0x8] sm:$0xff]
    %v2335 = vld [vmem:[%s3 + $0x10] sm:$0xff]
    %v2336 = vld [vmem:[%s3 + $0x18] sm:$0xff]
    %v2337 = vld [vmem:[%s3 + $0x20] sm:$0xff]
    %v2338 = vld [vmem:[%s3 + $0x28] sm:$0xff]
    %v2339 = vld [vmem:[%s3 + $0x30] sm:$0xff]
    %v2340 = vld [vmem:[%s3 + $0x38] sm:$0xff]
    %v2341 = vld [vmem:[%s3 + $0x40] sm:$0xff]
    %v2342 = vld [vmem:[%s3 + $0x48] sm:$0xff]
    %v2343 = vld [vmem:[%s3 + $0x50] sm:$0xff]
    %v2344 = vld [vmem:[%s3 + $0x58] sm:$0xff]
    %v2345 = vld [vmem:[%s3 + $0x60] sm:$0xff]
    %v2346 = vld [vmem:[%s3 + $0x68] sm:$0xff]
    %v2347 = vld [vmem:[%s3 + $0x70] sm:$0xff]
    %v2348 = vld [vmem:[%s3 + $0x78] sm:$0xff]
    %v2349 = vld [vmem:[%s3 + $0x80] sm:$0xff]
    %v2350 = vld [vmem:[%s3 + $0x88] sm:$0xff]
    %v2351 = vld [vmem:[%s3 + $0x90] sm:$0xff]
    %v2352 = vld [vmem:[%s3 + $0x98] sm:$0xff]
    %v2353 = vld [vmem:[%s3 + $0xa0] sm:$0xff]
    %v2354 = vld [vmem:[%s3 + $0xa8] sm:$0xff]
    %v2355 = vld [vmem:[%s3 + $0xb0] sm:$0xff]
    %v2356 = vld [vmem:[%s3 + $0xb8] sm:$0xff]
    %v2357 = vld [vmem:[%s3 + $0xc0] sm:$0xff]
    %v2358 = vld [vmem:[%s3 + $0xc8] sm:$0xff]
    %v2359 = vld [vmem:[%s3 + $0xd0] sm:$0xff]
    %v2360 = vld [vmem:[%s3 + $0xd8] sm:$0xff]
    %v2361 = vld [vmem:[%s3 + $0xe0] sm:$0xff]
    %v2362 = vld [vmem:[%s3 + $0xe8] sm:$0xff]
    %v2363 = vld [vmem:[%s3 + $0xf0] sm:$0xff]
    %v2364 = vld [vmem:[%s3 + $0xf8] sm:$0xff]
    %v2365 = vld [vmem:[%s3 + $0x100] sm:$0xff]
    %v2366 = vld [vmem:[%s3 + $0x108] sm:$0xff]
    %v2367 = vld [vmem:[%s3 + $0x110] sm:$0xff]
    %v2368 = vld [vmem:[%s3 + $0x118] sm:$0xff]
    %v2369 = vld [vmem:[%s3 + $0x120] sm:$0xff]
    %v2370 = vld [vmem:[%s3 + $0x128] sm:$0xff]
    %v2371 = vld [vmem:[%s3 + $0x130] sm:$0xff]
    %v2372 = vld [vmem:[%s3 + $0x138] sm:$0xff]
    %v2373 = vld [vmem:[%s3 + $0x140] sm:$0xff]
    %v2374 = vld [vmem:[%s3 + $0x148] sm:$0xff]
    %v2375 = vld [vmem:[%s3 + $0x150] sm:$0xff]
    %v2376 = vld [vmem:[%s3 + $0x158] sm:$0xff]
    %v2377 = vld [vmem:[%s3 + $0x160] sm:$0xff]
    %v2378 = vld [vmem:[%s3 + $0x168] sm:$0xff]
    %v2379 = vld [vmem:[%s3 + $0x170] sm:$0xff]
    %v2380 = vld [vmem:[%s3 + $0x178] sm:$0xff]
    %v2381 = vld [vmem:[%s3 + $0x180] sm:$0xff]
    %v2382 = vld [vmem:[%s3 + $0x188] sm:$0xff]
    %v2383 = vld [vmem:[%s3 + $0x190] sm:$0xff]
    %v2384 = vld [vmem:[%s3 + $0x198] sm:$0xff]
    %v2385 = vld [vmem:[%s3 + $0x1a0] sm:$0xff]
    %v2386 = vld [vmem:[%s3 + $0x1a8] sm:$0xff]
    %v2387 = vld [vmem:[%s3 + $0x1b0] sm:$0xff]
    %v2388 = vld [vmem:[%s3 + $0x1b8] sm:$0xff]
    %v2389 = vld [vmem:[%s3 + $0x1c0] sm:$0xff]
    %v2390 = vld [vmem:[%s3 + $0x1c8] sm:$0xff]
    %v2391 = vld [vmem:[%s3 + $0x1d0] sm:$0xff]
    %v2392 = vld [vmem:[%s3 + $0x1d8] sm:$0xff]
    %v2393 = vld [vmem:[%s3 + $0x1e0] sm:$0xff]
    %v2394 = vld [vmem:[%s3 + $0x1e8] sm:$0xff]
    %v2395 = vld [vmem:[%s3 + $0x1f0] sm:$0xff]
    %v2396 = vld [vmem:[%s3 + $0x1f8] sm:$0xff]
    %v2397 = vld [vmem:[%s3 + $0x200] sm:$0xff]
    %v2398 = vld [vmem:[%s3 + $0x208] sm:$0xff]
    %v2399 = vld [vmem:[%s3 + $0x210] sm:$0xff]
    %v2400 = vld [vmem:[%s3 + $0x218] sm:$0xff]
    %v2401 = vld [vmem:[%s3 + $0x220] sm:$0xff]
    %v2402 = vld [vmem:[%s3 + $0x228] sm:$0xff]
    %v2403 = vld [vmem:[%s3 + $0x230] sm:$0xff]
    %v2404 = vld [vmem:[%s3 + $0x238] sm:$0xff]
    %v2405 = vld [vmem:[%s3 + $0x240] sm:$0xff]
    %v2406 = vld [vmem:[%s3 + $0x248] sm:$0xff]
    %v2407 = vld [vmem:[%s3 + $0x250] sm:$0xff]
    %v2408 = vld [vmem:[%s3 + $0x258] sm:$0xff]
    %v2409 = vld [vmem:[%s3 + $0x260] sm:$0xff]
    %v2410 = vld [vmem:[%s3 + $0x268] sm:$0xff]
    %v2411 = vld [vmem:[%s3 + $0x270] sm:$0xff]
    %v2412 = vld [vmem:[%s3 + $0x278] sm:$0xff]
    %v2413 = vld [vmem:[%s3 + $0x280] sm:$0xff]
    %v2414 = vld [vmem:[%s3 + $0x288] sm:$0xff]
    %v2415 = vld [vmem:[%s3 + $0x290] sm:$0xff]
    %v2416 = vld [vmem:[%s3 + $0x298] sm:$0xff]
    %v2417 = vld [vmem:[%s3 + $0x2a0] sm:$0xff]
    %v2418 = vld [vmem:[%s3 + $0x2a8] sm:$0xff]
    %v2419 = vld [vmem:[%s3 + $0x2b0] sm:$0xff]
    %v2420 = vld [vmem:[%s3 + $0x2b8] sm:$0xff]
    %v2421 = vld [vmem:[%s3 + $0x2c0] sm:$0xff]
    %v2422 = vld [vmem:[%s3 + $0x2c8] sm:$0xff]
    %v2423 = vld [vmem:[%s3 + $0x2d0] sm:$0xff]
    %v2424 = vld [vmem:[%s3 + $0x2d8] sm:$0xff]
    %v2425 = vld [vmem:[%s3 + $0x2e0] sm:$0xff]
    %v2426 = vld [vmem:[%s3 + $0x2e8] sm:$0xff]
    %v2427 = vld [vmem:[%s3 + $0x2f0] sm:$0xff]
    %v2428 = vld [vmem:[%s3 + $0x2f8] sm:$0xff]
    %v2429 = vld [vmem:[%s3 + $0x300] sm:$0xff]
    %v2430 = vld [vmem:[%s3 + $0x308] sm:$0xff]
    %v2431 = vld [vmem:[%s3 + $0x310] sm:$0xff]
    %v2432 = vld [vmem:[%s3 + $0x318] sm:$0xff]
    %v2433 = vld [vmem:[%s3 + $0x320] sm:$0xff]
    %v2434 = vld [vmem:[%s3 + $0x328] sm:$0xff]
    %v2435 = vld [vmem:[%s3 + $0x330] sm:$0xff]
    %v2436 = vld [vmem:[%s3 + $0x338] sm:$0xff]
    %v2437 = vld [vmem:[%s3 + $0x340] sm:$0xff]
    %v2438 = vld [vmem:[%s3 + $0x348] sm:$0xff]
    %v2439 = vld [vmem:[%s3 + $0x350] sm:$0xff]
    %v2440 = vld [vmem:[%s3 + $0x358] sm:$0xff]
    %v2441 = vld [vmem:[%s3 + $0x360] sm:$0xff]
    %v2442 = vld [vmem:[%s3 + $0x368] sm:$0xff]
    %v2443 = vld [vmem:[%s3 + $0x370] sm:$0xff]
    %v2444 = vld [vmem:[%s3 + $0x378] sm:$0xff]
    %v2445 = vld [vmem:[%s3 + $0x380] sm:$0xff]
    %v2446 = vld [vmem:[%s3 + $0x388] sm:$0xff]
    %v2447 = vld [vmem:[%s3 + $0x390] sm:$0xff]
    %v2448 = vld [vmem:[%s3 + $0x398] sm:$0xff]
    %v2449 = vld [vmem:[%s3 + $0x3a0] sm:$0xff]
    %v2450 = vld [vmem:[%s3 + $0x3a8] sm:$0xff]
    %v2451 = vld [vmem:[%s3 + $0x3b0] sm:$0xff]
    %v2452 = vld [vmem:[%s3 + $0x3b8] sm:$0xff]
    %v2453 = vld [vmem:[%s3 + $0x3c0] sm:$0xff]
    %v2454 = vld [vmem:[%s3 + $0x3c8] sm:$0xff]
    %v2455 = vld [vmem:[%s3 + $0x3d0] sm:$0xff]
    %v2456 = vld [vmem:[%s3 + $0x3d8] sm:$0xff]
    %v2457 = vld [vmem:[%s3 + $0x3e0] sm:$0xff]
    %v2458 = vld [vmem:[%s3 + $0x3e8] sm:$0xff]
    %v2459 = vld [vmem:[%s3 + $0x3f0] sm:$0xff]
    %v2460 = vld [vmem:[%s3 + $0x3f8] sm:$0xff]
    %v2461 = vld [vmem:[%s3 + $0x400] sm:$0xff]
    %v2462 = vld [vmem:[%s3 + $0x408] sm:$0xff]
    %v2463 = vld [vmem:[%s3 + $0x410] sm:$0xff]
    %v2464 = vld [vmem:[%s3 + $0x418] sm:$0xff]
    %v2465 = vld [vmem:[%s3 + $0x420] sm:$0xff]
    %v2466 = vld [vmem:[%s3 + $0x428] sm:$0xff]
    %v2467 = vld [vmem:[%s3 + $0x430] sm:$0xff]
    %v2468 = vld [vmem:[%s3 + $0x438] sm:$0xff]
    %v2469 = vld [vmem:[%s3 + $0x440] sm:$0xff]
    %v2470 = vld [vmem:[%s3 + $0x448] sm:$0xff]
    %v2471 = vld [vmem:[%s3 + $0x450] sm:$0xff]
    %v2472 = vld [vmem:[%s3 + $0x458] sm:$0xff]
    %v2473 = vld [vmem:[%s3 + $0x460] sm:$0xff]
    %v2474 = vld [vmem:[%s3 + $0x468] sm:$0xff]
    %v2475 = vld [vmem:[%s3 + $0x470] sm:$0xff]
    %v2476 = vld [vmem:[%s3 + $0x478] sm:$0xff]
    %v2477 = vld [vmem:[%s3 + $0x480] sm:$0xff]
    %v2478 = vld [vmem:[%s3 + $0x488] sm:$0xff]
    %v2479 = vld [vmem:[%s3 + $0x490] sm:$0xff]
    %v2480 = vld [vmem:[%s3 + $0x498] sm:$0xff]
    %v2481 = vld [vmem:[%s3 + $0x4a0] sm:$0xff]
    %v2482 = vld [vmem:[%s3 + $0x4a8] sm:$0xff]
    %v2483 = vld [vmem:[%s3 + $0x4b0] sm:$0xff]
    %v2484 = vld [vmem:[%s3 + $0x4b8] sm:$0xff]
    %v2485 = vld [vmem:[%s3 + $0x4c0] sm:$0xff]
    %v2486 = vld [vmem:[%s3 + $0x4c8] sm:$0xff]
    %v2487 = vld [vmem:[%s3 + $0x4d0] sm:$0xff]
    %v2488 = vld [vmem:[%s3 + $0x4d8] sm:$0xff]
    %v2489 = vld [vmem:[%s3 + $0x4e0] sm:$0xff]
    %v2490 = vld [vmem:[%s3 + $0x4e8] sm:$0xff]
    %v2491 = vld [vmem:[%s3 + $0x4f0] sm:$0xff]
    %v2492 = vld [vmem:[%s3 + $0x4f8] sm:$0xff]
    %v2493 = vld [vmem:[%s3 + $0x500] sm:$0xff]
    %v2494 = vld [vmem:[%s3 + $0x508] sm:$0xff]
    %v2495 = vld [vmem:[%s3 + $0x510] sm:$0xff]
    %v2496 = vld [vmem:[%s3 + $0x518] sm:$0xff]
    %v2497 = vld [vmem:[%s3 + $0x520] sm:$0xff]
    %v2498 = vld [vmem:[%s3 + $0x528] sm:$0xff]
    %v2499 = vld [vmem:[%s3 + $0x530] sm:$0xff]
    %v2500 = vld [vmem:[%s3 + $0x538] sm:$0xff]
    %v2501 = vld [vmem:[%s3 + $0x540] sm:$0xff]
    %v2502 = vld [vmem:[%s3 + $0x548] sm:$0xff]
    %v2503 = vld [vmem:[%s3 + $0x550] sm:$0xff]
    %v2504 = vld [vmem:[%s3 + $0x558] sm:$0xff]
    %v2505 = vld [vmem:[%s3 + $0x560] sm:$0xff]
    %v2506 = vld [vmem:[%s3 + $0x568] sm:$0xff]
    %v2507 = vld [vmem:[%s3 + $0x570] sm:$0xff]
    %v2508 = vld [vmem:[%s3 + $0x578] sm:$0xff]
    %v2509 = vld [vmem:[%s3 + $0x580] sm:$0xff]
    %v2510 = vld [vmem:[%s3 + $0x588] sm:$0xff]
    %v2511 = vld [vmem:[%s3 + $0x590] sm:$0xff]
    %v2512 = vld [vmem:[%s3 + $0x598] sm:$0xff]
    %v2513 = vld [vmem:[%s3 + $0x5a0] sm:$0xff]
    %v2514 = vld [vmem:[%s3 + $0x5a8] sm:$0xff]
    %v2515 = vld [vmem:[%s3 + $0x5b0] sm:$0xff]
    %v2516 = vld [vmem:[%s3 + $0x5b8] sm:$0xff]
    %v2517 = vld [vmem:[%s3 + $0x5c0] sm:$0xff]
    %v2518 = vld [vmem:[%s3 + $0x5c8] sm:$0xff]
    %v2519 = vld [vmem:[%s3 + $0x5d0] sm:$0xff]
    %v2520 = vld [vmem:[%s3 + $0x5d8] sm:$0xff]
    %v2521 = vld [vmem:[%s3 + $0x5e0] sm:$0xff]
    %v2522 = vld [vmem:[%s3 + $0x5e8] sm:$0xff]
    %v2523 = vld [vmem:[%s3 + $0x5f0] sm:$0xff]
    %v2524 = vld [vmem:[%s3 + $0x5f8] sm:$0xff]
    %v2525 = vld [vmem:[%s3 + $0x600] sm:$0xff]
    %v2526 = vld [vmem:[%s3 + $0x608] sm:$0xff]
    %v2527 = vld [vmem:[%s3 + $0x610] sm:$0xff]
    %v2528 = vld [vmem:[%s3 + $0x618] sm:$0xff]
    %v2529 = vld [vmem:[%s3 + $0x620] sm:$0xff]
    %v2530 = vld [vmem:[%s3 + $0x628] sm:$0xff]
    %v2531 = vld [vmem:[%s3 + $0x630] sm:$0xff]
    %v2532 = vld [vmem:[%s3 + $0x638] sm:$0xff]
    %v2533 = vld [vmem:[%s3 + $0x640] sm:$0xff]
    %v2534 = vld [vmem:[%s3 + $0x648] sm:$0xff]
    %v2535 = vld [vmem:[%s3 + $0x650] sm:$0xff]
    %v2536 = vld [vmem:[%s3 + $0x658] sm:$0xff]
    %v2537 = vld [vmem:[%s3 + $0x660] sm:$0xff]
    %v2538 = vld [vmem:[%s3 + $0x668] sm:$0xff]
    %v2539 = vld [vmem:[%s3 + $0x670] sm:$0xff]
    %v2540 = vld [vmem:[%s3 + $0x678] sm:$0xff]
    %v2541 = vld [vmem:[%s3 + $0x680] sm:$0xff]
    %v2542 = vld [vmem:[%s3 + $0x688] sm:$0xff]
    %v2543 = vld [vmem:[%s3 + $0x690] sm:$0xff]
    %v2544 = vld [vmem:[%s3 + $0x698] sm:$0xff]
    %v2545 = vld [vmem:[%s3 + $0x6a0] sm:$0xff]
    %v2546 = vld [vmem:[%s3 + $0x6a8] sm:$0xff]
    %v2547 = vld [vmem:[%s3 + $0x6b0] sm:$0xff]
    %v2548 = vld [vmem:[%s3 + $0x6b8] sm:$0xff]
    %v2549 = vld [vmem:[%s3 + $0x6c0] sm:$0xff]
    %v2550 = vld [vmem:[%s3 + $0x6c8] sm:$0xff]
    %v2551 = vld [vmem:[%s3 + $0x6d0] sm:$0xff]
    %v2552 = vld [vmem:[%s3 + $0x6d8] sm:$0xff]
    %v2553 = vld [vmem:[%s3 + $0x6e0] sm:$0xff]
    %v2554 = vld [vmem:[%s3 + $0x6e8] sm:$0xff]
    %v2555 = vld [vmem:[%s3 + $0x6f0] sm:$0xff]
    %v2556 = vld [vmem:[%s3 + $0x6f8] sm:$0xff]
    %v2557 = vld [vmem:[%s3 + $0x700] sm:$0xff]
    %v2558 = vld [vmem:[%s3 + $0x708] sm:$0xff]
    %v2559 = vld [vmem:[%s3 + $0x710] sm:$0xff]
    %v2560 = vld [vmem:[%s3 + $0x718] sm:$0xff]
    %v2561 = vld [vmem:[%s3 + $0x720] sm:$0xff]
    %v2562 = vld [vmem:[%s3 + $0x728] sm:$0xff]
    %v2563 = vld [vmem:[%s3 + $0x730] sm:$0xff]
    %v2564 = vld [vmem:[%s3 + $0x738] sm:$0xff]
    %v2565 = vld [vmem:[%s3 + $0x740] sm:$0xff]
    %v2566 = vld [vmem:[%s3 + $0x748] sm:$0xff]
    %v2567 = vld [vmem:[%s3 + $0x750] sm:$0xff]
    %v2568 = vld [vmem:[%s3 + $0x758] sm:$0xff]
    %v2569 = vld [vmem:[%s3 + $0x760] sm:$0xff]
    %v2570 = vld [vmem:[%s3 + $0x768] sm:$0xff]
    %v2571 = vld [vmem:[%s3 + $0x770] sm:$0xff]
    %v2572 = vld [vmem:[%s3 + $0x778] sm:$0xff]
    %v2573 = vld [vmem:[%s3 + $0x780] sm:$0xff]
    %v2574 = vld [vmem:[%s3 + $0x788] sm:$0xff]
    %v2575 = vld [vmem:[%s3 + $0x790] sm:$0xff]
    %v2576 = vld [vmem:[%s3 + $0x798] sm:$0xff]
    %v2577 = vld [vmem:[%s3 + $0x7a0] sm:$0xff]
    %v2578 = vld [vmem:[%s3 + $0x7a8] sm:$0xff]
    %v2579 = vld [vmem:[%s3 + $0x7b0] sm:$0xff]
    %v2580 = vld [vmem:[%s3 + $0x7b8] sm:$0xff]
    %v2581 = vld [vmem:[%s3 + $0x7c0] sm:$0xff]
    %v2582 = vld [vmem:[%s3 + $0x7c8] sm:$0xff]
    %v2583 = vld [vmem:[%s3 + $0x7d0] sm:$0xff]
    %v2584 = vld [vmem:[%s3 + $0x7d8] sm:$0xff]
    %v2585 = vld [vmem:[%s3 + $0x7e0] sm:$0xff]
    %v2586 = vld [vmem:[%s3 + $0x7e8] sm:$0xff]
    %v2587 = vld [vmem:[%s3 + $0x7f0] sm:$0xff]
    %v2588 = vld [vmem:[%s3 + $0x7f8] sm:$0xff]
    %v2589 = vld [vmem:[%s3 + $0x800] sm:$0xff]
    %v2590 = vld [vmem:[%s3 + $0x808] sm:$0xff]
    %v2591 = vld [vmem:[%s3 + $0x810] sm:$0xff]
    %v2592 = vld [vmem:[%s3 + $0x818] sm:$0xff]
    %v2593 = vld [vmem:[%s3 + $0x820] sm:$0xff]
    %v2594 = vld [vmem:[%s3 + $0x828] sm:$0xff]
    %v2595 = vld [vmem:[%s3 + $0x830] sm:$0xff]
    %v2596 = vld [vmem:[%s3 + $0x838] sm:$0xff]
    %v2597 = vld [vmem:[%s3 + $0x840] sm:$0xff]
    %v2598 = vld [vmem:[%s3 + $0x848] sm:$0xff]
    %v2599 = vld [vmem:[%s3 + $0x850] sm:$0xff]
    %v2600 = vld [vmem:[%s3 + $0x858] sm:$0xff]
    %v2601 = vld [vmem:[%s3 + $0x860] sm:$0xff]
    %v2602 = vld [vmem:[%s3 + $0x868] sm:$0xff]
    %v2603 = vld [vmem:[%s3 + $0x870] sm:$0xff]
    %v2604 = vld [vmem:[%s3 + $0x878] sm:$0xff]
    %v2605 = vld [vmem:[%s3 + $0x880] sm:$0xff]
    %v2606 = vld [vmem:[%s3 + $0x888] sm:$0xff]
    %v2607 = vld [vmem:[%s3 + $0x890] sm:$0xff]
    %v2608 = vld [vmem:[%s3 + $0x898] sm:$0xff]
    %v2609 = vld [vmem:[%s3 + $0x8a0] sm:$0xff]
    %v2610 = vld [vmem:[%s3 + $0x8a8] sm:$0xff]
    %v2611 = vld [vmem:[%s3 + $0x8b0] sm:$0xff]
    %v2612 = vld [vmem:[%s3 + $0x8b8] sm:$0xff]
    %v2613 = vld [vmem:[%s3 + $0x8c0] sm:$0xff]
    %v2614 = vld [vmem:[%s3 + $0x8c8] sm:$0xff]
    %v2615 = vld [vmem:[%s3 + $0x8d0] sm:$0xff]
    %v2616 = vld [vmem:[%s3 + $0x8d8] sm:$0xff]
    %v2617 = vld [vmem:[%s3 + $0x8e0] sm:$0xff]
    %v2618 = vld [vmem:[%s3 + $0x8e8] sm:$0xff]
    %v2619 = vld [vmem:[%s3 + $0x8f0] sm:$0xff]
    %v2620 = vld [vmem:[%s3 + $0x8f8] sm:$0xff]
    %v2621 = vld [vmem:[%s3 + $0x900] sm:$0xff]
    %v2622 = vld [vmem:[%s3 + $0x908] sm:$0xff]
    %v2623 = vld [vmem:[%s3 + $0x910] sm:$0xff]
    %v2624 = vld [vmem:[%s3 + $0x918] sm:$0xff]
    %v2625 = vld [vmem:[%s3 + $0x920] sm:$0xff]
    %v2626 = vld [vmem:[%s3 + $0x928] sm:$0xff]
    %v2627 = vld [vmem:[%s3 + $0x930] sm:$0xff]
    %v2628 = vld [vmem:[%s3 + $0x938] sm:$0xff]
    %v2629 = vld [vmem:[%s3 + $0x940] sm:$0xff]
    %v2630 = vld [vmem:[%s3 + $0x948] sm:$0xff]
    %v2631 = vld [vmem:[%s3 + $0x950] sm:$0xff]
    %v2632 = vld [vmem:[%s3 + $0x958] sm:$0xff]
    %v2633 = vld [vmem:[%s3 + $0x960] sm:$0xff]
    %v2634 = vld [vmem:[%s3 + $0x968] sm:$0xff]
    %v2635 = vld [vmem:[%s3 + $0x970] sm:$0xff]
    %v2636 = vld [vmem:[%s3 + $0x978] sm:$0xff]
    %v2637 = vld [vmem:[%s3 + $0x980] sm:$0xff]
    %v2638 = vld [vmem:[%s3 + $0x988] sm:$0xff]
    %v2639 = vld [vmem:[%s3 + $0x990] sm:$0xff]
    %v2640 = vld [vmem:[%s3 + $0x998] sm:$0xff]
    %v2641 = vld [vmem:[%s3 + $0x9a0] sm:$0xff]
    %v2642 = vld [vmem:[%s3 + $0x9a8] sm:$0xff]
    %v2643 = vld [vmem:[%s3 + $0x9b0] sm:$0xff]
    %v2644 = vld [vmem:[%s3 + $0x9b8] sm:$0xff]
    %v2645 = vld [vmem:[%s3 + $0x9c0] sm:$0xff]
    %v2646 = vld [vmem:[%s3 + $0x9c8] sm:$0xff]
    %v2647 = vld [vmem:[%s3 + $0x9d0] sm:$0xff]
    %v2648 = vld [vmem:[%s3 + $0x9d8] sm:$0xff]
    %v2649 = vld [vmem:[%s3 + $0x9e0] sm:$0xff]
    %v2650 = vld [vmem:[%s3 + $0x9e8] sm:$0xff]
    %v2651 = vld [vmem:[%s3 + $0x9f0] sm:$0xff]
    %v2652 = vld [vmem:[%s3 + $0x9f8] sm:$0xff]
    %v2653 = vld [vmem:[%s3 + $0xa00] sm:$0xff]
    %v2654 = vld [vmem:[%s3 + $0xa08] sm:$0xff]
    %v2655 = vld [vmem:[%s3 + $0xa10] sm:$0xff]
    %v2656 = vld [vmem:[%s3 + $0xa18] sm:$0xff]
    %v2657 = vld [vmem:[%s3 + $0xa20] sm:$0xff]
    %v2658 = vld [vmem:[%s3 + $0xa28] sm:$0xff]
    %v2659 = vld [vmem:[%s3 + $0xa30] sm:$0xff]
    %v2660 = vld [vmem:[%s3 + $0xa38] sm:$0xff]
    %v2661 = vld [vmem:[%s3 + $0xa40] sm:$0xff]
    %v2662 = vld [vmem:[%s3 + $0xa48] sm:$0xff]
    %v2663 = vld [vmem:[%s3 + $0xa50] sm:$0xff]
    %v2664 = vld [vmem:[%s3 + $0xa58] sm:$0xff]
    %v2665 = vld [vmem:[%s3 + $0xa60] sm:$0xff]
    %v2666 = vld [vmem:[%s3 + $0xa68] sm:$0xff]
    %v2667 = vld [vmem:[%s3 + $0xa70] sm:$0xff]
    %v2668 = vld [vmem:[%s3 + $0xa78] sm:$0xff]
    %v2669 = vld [vmem:[%s3 + $0xa80] sm:$0xff]
    %v2670 = vld [vmem:[%s3 + $0xa88] sm:$0xff]
    %v2671 = vld [vmem:[%s3 + $0xa90] sm:$0xff]
    %v2672 = vld [vmem:[%s3 + $0xa98] sm:$0xff]
    %v2673 = vld [vmem:[%s3 + $0xaa0] sm:$0xff]
    %v2674 = vld [vmem:[%s3 + $0xaa8] sm:$0xff]
    %v2675 = vld [vmem:[%s3 + $0xab0] sm:$0xff]
    %v2676 = vld [vmem:[%s3 + $0xab8] sm:$0xff]
    %v2677 = vld [vmem:[%s3 + $0xac0] sm:$0xff]
    %v2678 = vld [vmem:[%s3 + $0xac8] sm:$0xff]
    %v2679 = vld [vmem:[%s3 + $0xad0] sm:$0xff]
    %v2680 = vld [vmem:[%s3 + $0xad8] sm:$0xff]
    %v2681 = vld [vmem:[%s3 + $0xae0] sm:$0xff]
    %v2682 = vld [vmem:[%s3 + $0xae8] sm:$0xff]
    %v2683 = vld [vmem:[%s3 + $0xaf0] sm:$0xff]
    %v2684 = vld [vmem:[%s3 + $0xaf8] sm:$0xff]
    %v2685 = vld [vmem:[%s3 + $0xb00] sm:$0xff]
    %v2686 = vld [vmem:[%s3 + $0xb08] sm:$0xff]
    %v2687 = vld [vmem:[%s3 + $0xb10] sm:$0xff]
    %v2688 = vld [vmem:[%s3 + $0xb18] sm:$0xff]
    %v2689 = vld [vmem:[%s3 + $0xb20] sm:$0xff]
    %v2690 = vld [vmem:[%s3 + $0xb28] sm:$0xff]
    %v2691 = vld [vmem:[%s3 + $0xb30] sm:$0xff]
    %v2692 = vld [vmem:[%s3 + $0xb38] sm:$0xff]
    %v2693 = vld [vmem:[%s3 + $0xb40] sm:$0xff]
    %v2694 = vld [vmem:[%s3 + $0xb48] sm:$0xff]
    %v2695 = vld [vmem:[%s3 + $0xb50] sm:$0xff]
    %v2696 = vld [vmem:[%s3 + $0xb58] sm:$0xff]
    %v2697 = vld [vmem:[%s3 + $0xb60] sm:$0xff]
    %v2698 = vld [vmem:[%s3 + $0xb68] sm:$0xff]
    %v2699 = vld [vmem:[%s3 + $0xb70] sm:$0xff]
    %v2700 = vld [vmem:[%s3 + $0xb78] sm:$0xff]
    %v2701 = vld [vmem:[%s3 + $0xb80] sm:$0xff]
    %v2702 = vld [vmem:[%s3 + $0xb88] sm:$0xff]
    %v2703 = vld [vmem:[%s3 + $0xb90] sm:$0xff]
    %v2704 = vld [vmem:[%s3 + $0xb98] sm:$0xff]
    %v2705 = vld [vmem:[%s3 + $0xba0] sm:$0xff]
    %v2706 = vld [vmem:[%s3 + $0xba8] sm:$0xff]
    %v2707 = vld [vmem:[%s3 + $0xbb0] sm:$0xff]
    %v2708 = vld [vmem:[%s3 + $0xbb8] sm:$0xff]
    %v2709 = vld [vmem:[%s3 + $0xbc0] sm:$0xff]
    %v2710 = vld [vmem:[%s3 + $0xbc8] sm:$0xff]
    %v2711 = vld [vmem:[%s3 + $0xbd0] sm:$0xff]
    %v2712 = vld [vmem:[%s3 + $0xbd8] sm:$0xff]
    %v2713 = vld [vmem:[%s3 + $0xbe0] sm:$0xff]
    %v2714 = vld [vmem:[%s3 + $0xbe8] sm:$0xff]
    %v2715 = vld [vmem:[%s3 + $0xbf0] sm:$0xff]
    %v2716 = vld [vmem:[%s3 + $0xbf8] sm:$0xff]
    %v2717 = vld [vmem:[%s4] sm:$0x7]
    %v2719 = vlaneseq
    %v2720 = vshrl.u32 %v2719, 7
    %v2721 = vsub.s32 0, %v2720
    %v2722 = vrot.slane %v2717, %v2721
    %v2723 = vlaneseq
    %v2724 = vshrl.u32 %v2723, 7
    %v2725 = vsub.s32 1, %v2724
    %v2726 = vrot.slane %v2717, %v2725
    %v2727 = vlaneseq
    %v2728 = vshrl.u32 %v2727, 7
    %v2729 = vsub.s32 2, %v2728
    %v2730 = vrot.slane %v2717, %v2729
    %2734 = vmatprep.subr.mxu0 %v2334
    %2735 = vmatpush1.msra.mxu0 %v2333
    %2736 = vmatprep.subr.mxu0 %v2337
    %2737 = vmatpush1.msra.mxu0 %v2336
    %2738 = vmatprep.subr.mxu0 %v2340
    %2739 = vmatpush1.msra.mxu0 %v2339
    %2740 = vmatprep.subr.mxu0 %v2343
    %2741 = vmatpush1.msra.mxu0 %v2342
    %2742 = vmatprep.subr.mxu0 %v2346
    %2743 = vmatpush1.msra.mxu0 %v2345
    %2744 = vmatprep.subr.mxu0 %v2349
    %2745 = vmatpush1.msra.mxu0 %v2348
    %2746 = vmatprep.subr.mxu0 %v2352
    %2747 = vmatpush1.msra.mxu0 %v2351
    %2748 = vmatprep.subr.mxu0 %v2355
    %2749 = vmatpush1.msra.mxu0 %v2354
    %2750 = vmatprep.subr.mxu0 %v2358
    %2751 = vmatpush1.msra.mxu0 %v2357
    %2752 = vmatprep.subr.mxu0 %v2361
    %2753 = vmatpush1.msra.mxu0 %v2360
    %2754 = vmatprep.subr.mxu0 %v2364
    %2755 = vmatpush1.msra.mxu0 %v2363
    %2756 = vmatprep.subr.mxu0 %v2367
    %2757 = vmatpush1.msra.mxu0 %v2366
    %2758 = vmatprep.subr.mxu0 %v2370
    %2759 = vmatpush1.msra.mxu0 %v2369
    %2760 = vmatprep.subr.mxu0 %v2373
    %2761 = vmatpush1.msra.mxu0 %v2372
    %2762 = vmatprep.subr.mxu0 %v2376
    %2763 = vmatpush1.msra.mxu0 %v2375
    %2764 = vmatprep.subr.mxu0 %v2379
    %2765 = vmatpush1.msra.mxu0 %v2378
    %2766 = vmatprep.subr.mxu0 %v2382
    %2767 = vmatpush1.msra.mxu0 %v2381
    %2768 = vmatprep.subr.mxu0 %v2385
    %2769 = vmatpush1.msra.mxu0 %v2384
    %2770 = vmatprep.subr.mxu0 %v2388
    %2771 = vmatpush1.msra.mxu0 %v2387
    %2772 = vmatprep.subr.mxu0 %v2391
    %2773 = vmatpush1.msra.mxu0 %v2390
    %2774 = vmatprep.subr.mxu0 %v2394
    %2775 = vmatpush1.msra.mxu0 %v2393
    %2776 = vmatprep.subr.mxu0 %v2397
    %2777 = vmatpush1.msra.mxu0 %v2396
    %2778 = vmatprep.subr.mxu0 %v2400
    %2779 = vmatpush1.msra.mxu0 %v2399
    %2780 = vmatprep.subr.mxu0 %v2403
    %2781 = vmatpush1.msra.mxu0 %v2402
    %2782 = vmatprep.subr.mxu0 %v2406
    %2783 = vmatpush1.msra.mxu0 %v2405
    %2784 = vmatprep.subr.mxu0 %v2409
    %2785 = vmatpush1.msra.mxu0 %v2408
    %2786 = vmatprep.subr.mxu0 %v2412
    %2787 = vmatpush1.msra.mxu0 %v2411
    %2788 = vmatprep.subr.mxu0 %v2415
    %2789 = vmatpush1.msra.mxu0 %v2414
    %2790 = vmatprep.subr.mxu0 %v2418
    %2791 = vmatpush1.msra.mxu0 %v2417
    %2792 = vmatprep.subr.mxu0 %v2421
    %2793 = vmatpush1.msra.mxu0 %v2420
    %2794 = vmatprep.subr.mxu0 %v2424
    %2795 = vmatpush1.msra.mxu0 %v2423
    %2796 = vmatprep.subr.mxu0 %v2427
    %2797 = vmatpush1.msra.mxu0 %v2426
    %2798 = vmatprep.mubr.f32.mxu0 %v2326
    %2799 = vmatmul.mubr.f32.gmra.mrb[0].mxu0 %v2325
    %v2800 = vpop.f32.mrb[0].mxu0
    %v2801 = vadd.f32 %v2722, %v2800
    %v2802 = vpop.f32.mrb[0].mxu0
    %v2803 = vadd.f32 %v2726, %v2802
    %2804 = vdwg.mxu0
    %2805 = vmatprep.subr.mxu0 %v2430
    %2806 = vmatpush1.msra.mxu0 %v2429
    %2807 = vmatprep.subr.mxu0 %v2433
    %2808 = vmatpush1.msra.mxu0 %v2432
    %2809 = vmatprep.subr.mxu0 %v2436
    %2810 = vmatpush1.msra.mxu0 %v2435
    %2811 = vmatprep.subr.mxu0 %v2439
    %2812 = vmatpush1.msra.mxu0 %v2438
    %2813 = vmatprep.subr.mxu0 %v2442
    %2814 = vmatpush1.msra.mxu0 %v2441
    %2815 = vmatprep.subr.mxu0 %v2445
    %2816 = vmatpush1.msra.mxu0 %v2444
    %2817 = vmatprep.subr.mxu0 %v2448
    %2818 = vmatpush1.msra.mxu0 %v2447
    %2819 = vmatprep.subr.mxu0 %v2451
    %2820 = vmatpush1.msra.mxu0 %v2450
    %2821 = vmatprep.subr.mxu0 %v2454
    %2822 = vmatpush1.msra.mxu0 %v2453
    %2823 = vmatprep.subr.mxu0 %v2457
    %2824 = vmatpush1.msra.mxu0 %v2456
    %2825 = vmatprep.subr.mxu0 %v2460
    %2826 = vmatpush1.msra.mxu0 %v2459
    %2827 = vmatprep.subr.mxu0 %v2463
    %2828 = vmatpush1.msra.mxu0 %v2462
    %2829 = vmatprep.subr.mxu0 %v2466
    %2830 = vmatpush1.msra.mxu0 %v2465
    %2831 = vmatprep.subr.mxu0 %v2469
    %2832 = vmatpush1.msra.mxu0 %v2468
    %2833 = vmatprep.subr.mxu0 %v2472
    %2834 = vmatpush1.msra.mxu0 %v2471
    %2835 = vmatprep.subr.mxu0 %v2475
    %2836 = vmatpush1.msra.mxu0 %v2474
    %2837 = vmatprep.subr.mxu0 %v2478
    %2838 = vmatpush1.msra.mxu0 %v2477
    %2839 = vmatprep.subr.mxu0 %v2481
    %2840 = vmatpush1.msra.mxu0 %v2480
    %2841 = vmatprep.subr.mxu0 %v2484
    %2842 = vmatpush1.msra.mxu0 %v2483
    %2843 = vmatprep.subr.mxu0 %v2487
    %2844 = vmatpush1.msra.mxu0 %v2486
    %2845 = vmatprep.subr.mxu0 %v2490
    %2846 = vmatpush1.msra.mxu0 %v2489
    %2847 = vmatprep.subr.mxu0 %v2493
    %2848 = vmatpush1.msra.mxu0 %v2492
    %2849 = vmatprep.subr.mxu0 %v2496
    %2850 = vmatpush1.msra.mxu0 %v2495
    %2851 = vmatprep.subr.mxu0 %v2499
    %2852 = vmatpush1.msra.mxu0 %v2498
    %2853 = vmatprep.subr.mxu0 %v2502
    %2854 = vmatpush1.msra.mxu0 %v2501
    %2855 = vmatprep.subr.mxu0 %v2505
    %2856 = vmatpush1.msra.mxu0 %v2504
    %2857 = vmatprep.subr.mxu0 %v2508
    %2858 = vmatpush1.msra.mxu0 %v2507
    %2859 = vmatprep.subr.mxu0 %v2511
    %2860 = vmatpush1.msra.mxu0 %v2510
    %2861 = vmatprep.subr.mxu0 %v2514
    %2862 = vmatpush1.msra.mxu0 %v2513
    %2863 = vmatprep.subr.mxu0 %v2517
    %2864 = vmatpush1.msra.mxu0 %v2516
    %2865 = vmatprep.subr.mxu0 %v2520
    %2866 = vmatpush1.msra.mxu0 %v2519
    %2867 = vmatprep.subr.mxu0 %v2523
    %2868 = vmatpush1.msra.mxu0 %v2522
    %2869 = vmatprep.mubr.f32.mxu0 %v2328
    %2870 = vmatmul.mubr.f32.gmra.mrb[0].mxu0 %v2327
    %v2871 = vpop.f32.mrb[0].mxu0
    %v2872 = vadd.f32 %v2801, %v2871
    %v2873 = vpop.f32.mrb[0].mxu0
    %v2874 = vadd.f32 %v2803, %v2873
    %2875 = vdwg.mxu0
    %2876 = vmatprep.subr.mxu0 %v2526
    %2877 = vmatpush1.msra.mxu0 %v2525
    %2878 = vmatprep.subr.mxu0 %v2529
    %2879 = vmatpush1.msra.mxu0 %v2528
    %2880 = vmatprep.subr.mxu0 %v2532
    %2881 = vmatpush1.msra.mxu0 %v2531
    %2882 = vmatprep.subr.mxu0 %v2535
    %2883 = vmatpush1.msra.mxu0 %v2534
    %2884 = vmatprep.subr.mxu0 %v2538
    %2885 = vmatpush1.msra.mxu0 %v2537
    %2886 = vmatprep.subr.mxu0 %v2541
    %2887 = vmatpush1.msra.mxu0 %v2540
    %2888 = vmatprep.subr.mxu0 %v2544
    %2889 = vmatpush1.msra.mxu0 %v2543
    %2890 = vmatprep.subr.mxu0 %v2547
    %2891 = vmatpush1.msra.mxu0 %v2546
    %2892 = vmatprep.subr.mxu0 %v2550
    %2893 = vmatpush1.msra.mxu0 %v2549
    %2894 = vmatprep.subr.mxu0 %v2553
    %2895 = vmatpush1.msra.mxu0 %v2552
    %2896 = vmatprep.subr.mxu0 %v2556
    %2897 = vmatpush1.msra.mxu0 %v2555
    %2898 = vmatprep.subr.mxu0 %v2559
    %2899 = vmatpush1.msra.mxu0 %v2558
    %2900 = vmatprep.subr.mxu0 %v2562
    %2901 = vmatpush1.msra.mxu0 %v2561
    %2902 = vmatprep.subr.mxu0 %v2565
    %2903 = vmatpush1.msra.mxu0 %v2564
    %2904 = vmatprep.subr.mxu0 %v2568
    %2905 = vmatpush1.msra.mxu0 %v2567
    %2906 = vmatprep.subr.mxu0 %v2571
    %2907 = vmatpush1.msra.mxu0 %v2570
    %2908 = vmatprep.subr.mxu0 %v2574
    %2909 = vmatpush1.msra.mxu0 %v2573
    %2910 = vmatprep.subr.mxu0 %v2577
    %2911 = vmatpush1.msra.mxu0 %v2576
    %2912 = vmatprep.subr.mxu0 %v2580
    %2913 = vmatpush1.msra.mxu0 %v2579
    %2914 = vmatprep.subr.mxu0 %v2583
    %2915 = vmatpush1.msra.mxu0 %v2582
    %2916 = vmatprep.subr.mxu0 %v2586
    %2917 = vmatpush1.msra.mxu0 %v2585
    %2918 = vmatprep.subr.mxu0 %v2589
    %2919 = vmatpush1.msra.mxu0 %v2588
    %2920 = vmatprep.subr.mxu0 %v2592
    %2921 = vmatpush1.msra.mxu0 %v2591
    %2922 = vmatprep.subr.mxu0 %v2595
    %2923 = vmatpush1.msra.mxu0 %v2594
    %2924 = vmatprep.subr.mxu0 %v2598
    %2925 = vmatpush1.msra.mxu0 %v2597
    %2926 = vmatprep.subr.mxu0 %v2601
    %2927 = vmatpush1.msra.mxu0 %v2600
    %2928 = vmatprep.subr.mxu0 %v2604
    %2929 = vmatpush1.msra.mxu0 %v2603
    %2930 = vmatprep.subr.mxu0 %v2607
    %2931 = vmatpush1.msra.mxu0 %v2606
    %2932 = vmatprep.subr.mxu0 %v2610
    %2933 = vmatpush1.msra.mxu0 %v2609
    %2934 = vmatprep.subr.mxu0 %v2613
    %2935 = vmatpush1.msra.mxu0 %v2612
    %2936 = vmatprep.subr.mxu0 %v2616
    %2937 = vmatpush1.msra.mxu0 %v2615
    %2938 = vmatprep.subr.mxu0 %v2619
    %2939 = vmatpush1.msra.mxu0 %v2618
    %2940 = vmatprep.mubr.f32.mxu0 %v2330
    %2941 = vmatmul.mubr.f32.gmra.mrb[0].mxu0 %v2329
    %v2942 = vpop.f32.mrb[0].mxu0
    %v2943 = vadd.f32 %v2872, %v2942
    %v2944 = vpop.f32.mrb[0].mxu0
    %v2945 = vadd.f32 %v2874, %v2944
    %2946 = vdwg.mxu0
    %2947 = vmatprep.subr.mxu0 %v2622
    %2948 = vmatpush1.msra.mxu0 %v2621
    %2949 = vmatprep.subr.mxu0 %v2625
    %2950 = vmatpush1.msra.mxu0 %v2624
    %2951 = vmatprep.subr.mxu0 %v2628
    %2952 = vmatpush1.msra.mxu0 %v2627
    %2953 = vmatprep.subr.mxu0 %v2631
    %2954 = vmatpush1.msra.mxu0 %v2630
    %2955 = vmatprep.subr.mxu0 %v2634
    %2956 = vmatpush1.msra.mxu0 %v2633
    %2957 = vmatprep.subr.mxu0 %v2637
    %2958 = vmatpush1.msra.mxu0 %v2636
    %2959 = vmatprep.subr.mxu0 %v2640
    %2960 = vmatpush1.msra.mxu0 %v2639
    %2961 = vmatprep.subr.mxu0 %v2643
    %2962 = vmatpush1.msra.mxu0 %v2642
    %2963 = vmatprep.subr.mxu0 %v2646
    %2964 = vmatpush1.msra.mxu0 %v2645
    %2965 = vmatprep.subr.mxu0 %v2649
    %2966 = vmatpush1.msra.mxu0 %v2648
    %2967 = vmatprep.subr.mxu0 %v2652
    %2968 = vmatpush1.msra.mxu0 %v2651
    %2969 = vmatprep.subr.mxu0 %v2655
    %2970 = vmatpush1.msra.mxu0 %v2654
    %2971 = vmatprep.subr.mxu0 %v2658
    %2972 = vmatpush1.msra.mxu0 %v2657
    %2973 = vmatprep.subr.mxu0 %v2661
    %2974 = vmatpush1.msra.mxu0 %v2660
    %2975 = vmatprep.subr.mxu0 %v2664
    %2976 = vmatpush1.msra.mxu0 %v2663
    %2977 = vmatprep.subr.mxu0 %v2667
    %2978 = vmatpush1.msra.mxu0 %v2666
    %2979 = vmatprep.subr.mxu0 %v2670
    %2980 = vmatpush1.msra.mxu0 %v2669
    %2981 = vmatprep.subr.mxu0 %v2673
    %2982 = vmatpush1.msra.mxu0 %v2672
    %2983 = vmatprep.subr.mxu0 %v2676
    %2984 = vmatpush1.msra.mxu0 %v2675
    %2985 = vmatprep.subr.mxu0 %v2679
    %2986 = vmatpush1.msra.mxu0 %v2678
    %2987 = vmatprep.subr.mxu0 %v2682
    %2988 = vmatpush1.msra.mxu0 %v2681
    %2989 = vmatprep.subr.mxu0 %v2685
    %2990 = vmatpush1.msra.mxu0 %v2684
    %2991 = vmatprep.subr.mxu0 %v2688
    %2992 = vmatpush1.msra.mxu0 %v2687
    %2993 = vmatprep.subr.mxu0 %v2691
    %2994 = vmatpush1.msra.mxu0 %v2690
    %2995 = vmatprep.subr.mxu0 %v2694
    %2996 = vmatpush1.msra.mxu0 %v2693
    %2997 = vmatprep.subr.mxu0 %v2697
    %2998 = vmatpush1.msra.mxu0 %v2696
    %2999 = vmatprep.subr.mxu0 %v2700
    %3000 = vmatpush1.msra.mxu0 %v2699
    %3001 = vmatprep.subr.mxu0 %v2703
    %3002 = vmatpush1.msra.mxu0 %v2702
    %3003 = vmatprep.subr.mxu0 %v2706
    %3004 = vmatpush1.msra.mxu0 %v2705
    %3005 = vmatprep.subr.mxu0 %v2709
    %3006 = vmatpush1.msra.mxu0 %v2708
    %3007 = vmatprep.subr.mxu0 %v2712
    %3008 = vmatpush1.msra.mxu0 %v2711
    %3009 = vmatprep.subr.mxu0 %v2715
    %3010 = vmatpush1.msra.mxu0 %v2714
    %3011 = vmatprep.mubr.f32.mxu0 %v2332
    %3012 = vmatmul.mubr.f32.gmra.mrb[0].mxu0 %v2331
    %v3013 = vpop.f32.mrb[0].mxu0
    %v3014 = vadd.f32 %v2943, %v3013
    %v3015 = vpop.f32.mrb[0].mxu0
    %v3016 = vadd.f32 %v2945, %v3015
    %3017 = vdwg.mxu0
    %3018 = vmatprep.subr.mxu0 0.0
    %3019 = vmatpush1.msra.mxu0 %v2335
    %3020 = vmatprep.subr.mxu0 0.0
    %3021 = vmatpush1.msra.mxu0 %v2338
    %3022 = vmatprep.subr.mxu0 0.0
    %3023 = vmatpush1.msra.mxu0 %v2341
    %3024 = vmatprep.subr.mxu0 0.0
    %3025 = vmatpush1.msra.mxu0 %v2344
    %3026 = vmatprep.subr.mxu0 0.0
    %3027 = vmatpush1.msra.mxu0 %v2347
    %3028 = vmatprep.subr.mxu0 0.0
    %3029 = vmatpush1.msra.mxu0 %v2350
    %3030 = vmatprep.subr.mxu0 0.0
    %3031 = vmatpush1.msra.mxu0 %v2353
    %3032 = vmatprep.subr.mxu0 0.0
    %3033 = vmatpush1.msra.mxu0 %v2356
    %3034 = vmatprep.subr.mxu0 0.0
    %3035 = vmatpush1.msra.mxu0 %v2359
    %3036 = vmatprep.subr.mxu0 0.0
    %3037 = vmatpush1.msra.mxu0 %v2362
    %3038 = vmatprep.subr.mxu0 0.0
    %3039 = vmatpush1.msra.mxu0 %v2365
    %3040 = vmatprep.subr.mxu0 0.0
    %3041 = vmatpush1.msra.mxu0 %v2368
    %3042 = vmatprep.subr.mxu0 0.0
    %3043 = vmatpush1.msra.mxu0 %v2371
    %3044 = vmatprep.subr.mxu0 0.0
    %3045 = vmatpush1.msra.mxu0 %v2374
    %3046 = vmatprep.subr.mxu0 0.0
    %3047 = vmatpush1.msra.mxu0 %v2377
    %3048 = vmatprep.subr.mxu0 0.0
    %3049 = vmatpush1.msra.mxu0 %v2380
    %3050 = vmatprep.subr.mxu0 0.0
    %3051 = vmatpush1.msra.mxu0 %v2383
    %3052 = vmatprep.subr.mxu0 0.0
    %3053 = vmatpush1.msra.mxu0 %v2386
    %3054 = vmatprep.subr.mxu0 0.0
    %3055 = vmatpush1.msra.mxu0 %v2389
    %3056 = vmatprep.subr.mxu0 0.0
    %3057 = vmatpush1.msra.mxu0 %v2392
    %3058 = vmatprep.subr.mxu0 0.0
    %3059 = vmatpush1.msra.mxu0 %v2395
    %3060 = vmatprep.subr.mxu0 0.0
    %3061 = vmatpush1.msra.mxu0 %v2398
    %3062 = vmatprep.subr.mxu0 0.0
    %3063 = vmatpush1.msra.mxu0 %v2401
    %3064 = vmatprep.subr.mxu0 0.0
    %3065 = vmatpush1.msra.mxu0 %v2404
    %3066 = vmatprep.subr.mxu0 0.0
    %3067 = vmatpush1.msra.mxu0 %v2407
    %3068 = vmatprep.subr.mxu0 0.0
    %3069 = vmatpush1.msra.mxu0 %v2410
    %3070 = vmatprep.subr.mxu0 0.0
    %3071 = vmatpush1.msra.mxu0 %v2413
    %3072 = vmatprep.subr.mxu0 0.0
    %3073 = vmatpush1.msra.mxu0 %v2416
    %3074 = vmatprep.subr.mxu0 0.0
    %3075 = vmatpush1.msra.mxu0 %v2419
    %3076 = vmatprep.subr.mxu0 0.0
    %3077 = vmatpush1.msra.mxu0 %v2422
    %3078 = vmatprep.subr.mxu0 0.0
    %3079 = vmatpush1.msra.mxu0 %v2425
    %3080 = vmatprep.subr.mxu0 0.0
    %3081 = vmatpush1.msra.mxu0 %v2428
    %3082 = vmatprep.mubr.f32.mxu0 %v2326
    %3083 = vmatmul.mubr.f32.gmra.mrb[0].mxu0 %v2325
    %v3084 = vpop.f32.mrb[0].mxu0
    %v3085 = vadd.f32 %v2730, %v3084
    %v3086 = vpop.f32.mrb[0].mxu0
    %3087 = vdwg.mxu0
    %3088 = vmatprep.subr.mxu0 0.0
    %3089 = vmatpush1.msra.mxu0 %v2431
    %3090 = vmatprep.subr.mxu0 0.0
    %3091 = vmatpush1.msra.mxu0 %v2434
    %3092 = vmatprep.subr.mxu0 0.0
    %3093 = vmatpush1.msra.mxu0 %v2437
    %3094 = vmatprep.subr.mxu0 0.0
    %3095 = vmatpush1.msra.mxu0 %v2440
    %3096 = vmatprep.subr.mxu0 0.0
    %3097 = vmatpush1.msra.mxu0 %v2443
    %3098 = vmatprep.subr.mxu0 0.0
    %3099 = vmatpush1.msra.mxu0 %v2446
    %3100 = vmatprep.subr.mxu0 0.0
    %3101 = vmatpush1.msra.mxu0 %v2449
    %3102 = vmatprep.subr.mxu0 0.0
    %3103 = vmatpush1.msra.mxu0 %v2452
    %3104 = vmatprep.subr.mxu0 0.0
    %3105 = vmatpush1.msra.mxu0 %v2455
    %3106 = vmatprep.subr.mxu0 0.0
    %3107 = vmatpush1.msra.mxu0 %v2458
    %3108 = vmatprep.subr.mxu0 0.0
    %3109 = vmatpush1.msra.mxu0 %v2461
    %3110 = vmatprep.subr.mxu0 0.0
    %3111 = vmatpush1.msra.mxu0 %v2464
    %3112 = vmatprep.subr.mxu0 0.0
    %3113 = vmatpush1.msra.mxu0 %v2467
    %3114 = vmatprep.subr.mxu0 0.0
    %3115 = vmatpush1.msra.mxu0 %v2470
    %3116 = vmatprep.subr.mxu0 0.0
    %3117 = vmatpush1.msra.mxu0 %v2473
    %3118 = vmatprep.subr.mxu0 0.0
    %3119 = vmatpush1.msra.mxu0 %v2476
    %3120 = vmatprep.subr.mxu0 0.0
    %3121 = vmatpush1.msra.mxu0 %v2479
    %3122 = vmatprep.subr.mxu0 0.0
    %3123 = vmatpush1.msra.mxu0 %v2482
    %3124 = vmatprep.subr.mxu0 0.0
    %3125 = vmatpush1.msra.mxu0 %v2485
    %3126 = vmatprep.subr.mxu0 0.0
    %3127 = vmatpush1.msra.mxu0 %v2488
    %3128 = vmatprep.subr.mxu0 0.0
    %3129 = vmatpush1.msra.mxu0 %v2491
    %3130 = vmatprep.subr.mxu0 0.0
    %3131 = vmatpush1.msra.mxu0 %v2494
    %3132 = vmatprep.subr.mxu0 0.0
    %3133 = vmatpush1.msra.mxu0 %v2497
    %3134 = vmatprep.subr.mxu0 0.0
    %3135 = vmatpush1.msra.mxu0 %v2500
    %3136 = vmatprep.subr.mxu0 0.0
    %3137 = vmatpush1.msra.mxu0 %v2503
    %3138 = vmatprep.subr.mxu0 0.0
    %3139 = vmatpush1.msra.mxu0 %v2506
    %3140 = vmatprep.subr.mxu0 0.0
    %3141 = vmatpush1.msra.mxu0 %v2509
    %3142 = vmatprep.subr.mxu0 0.0
    %3143 = vmatpush1.msra.mxu0 %v2512
    %3144 = vmatprep.subr.mxu0 0.0
    %3145 = vmatpush1.msra.mxu0 %v2515
    %3146 = vmatprep.subr.mxu0 0.0
    %3147 = vmatpush1.msra.mxu0 %v2518
    %3148 = vmatprep.subr.mxu0 0.0
    %3149 = vmatpush1.msra.mxu0 %v2521
    %3150 = vmatprep.subr.mxu0 0.0
    %3151 = vmatpush1.msra.mxu0 %v2524
    %3152 = vmatprep.mubr.f32.mxu0 %v2328
    %3153 = vmatmul.mubr.f32.gmra.mrb[0].mxu0 %v2327
    %v3154 = vpop.f32.mrb[0].mxu0
    %v3155 = vadd.f32 %v3085, %v3154
    %v3156 = vpop.f32.mrb[0].mxu0
    %3157 = vdwg.mxu0
    %3158 = vmatprep.subr.mxu0 0.0
    %3159 = vmatpush1.msra.mxu0 %v2527
    %3160 = vmatprep.subr.mxu0 0.0
    %3161 = vmatpush1.msra.mxu0 %v2530
    %3162 = vmatprep.subr.mxu0 0.0
    %3163 = vmatpush1.msra.mxu0 %v2533
    %3164 = vmatprep.subr.mxu0 0.0
    %3165 = vmatpush1.msra.mxu0 %v2536
    %3166 = vmatprep.subr.mxu0 0.0
    %3167 = vmatpush1.msra.mxu0 %v2539
    %3168 = vmatprep.subr.mxu0 0.0
    %3169 = vmatpush1.msra.mxu0 %v2542
    %3170 = vmatprep.subr.mxu0 0.0
    %3171 = vmatpush1.msra.mxu0 %v2545
    %3172 = vmatprep.subr.mxu0 0.0
    %3173 = vmatpush1.msra.mxu0 %v2548
    %3174 = vmatprep.subr.mxu0 0.0
    %3175 = vmatpush1.msra.mxu0 %v2551
    %3176 = vmatprep.subr.mxu0 0.0
    %3177 = vmatpush1.msra.mxu0 %v2554
    %3178 = vmatprep.subr.mxu0 0.0
    %3179 = vmatpush1.msra.mxu0 %v2557
    %3180 = vmatprep.subr.mxu0 0.0
    %3181 = vmatpush1.msra.mxu0 %v2560
    %3182 = vmatprep.subr.mxu0 0.0
    %3183 = vmatpush1.msra.mxu0 %v2563
    %3184 = vmatprep.subr.mxu0 0.0
    %3185 = vmatpush1.msra.mxu0 %v2566
    %3186 = vmatprep.subr.mxu0 0.0
    %3187 = vmatpush1.msra.mxu0 %v2569
    %3188 = vmatprep.subr.mxu0 0.0
    %3189 = vmatpush1.msra.mxu0 %v2572
    %3190 = vmatprep.subr.mxu0 0.0
    %3191 = vmatpush1.msra.mxu0 %v2575
    %3192 = vmatprep.subr.mxu0 0.0
    %3193 = vmatpush1.msra.mxu0 %v2578
    %3194 = vmatprep.subr.mxu0 0.0
    %3195 = vmatpush1.msra.mxu0 %v2581
    %3196 = vmatprep.subr.mxu0 0.0
    %3197 = vmatpush1.msra.mxu0 %v2584
    %3198 = vmatprep.subr.mxu0 0.0
    %3199 = vmatpush1.msra.mxu0 %v2587
    %3200 = vmatprep.subr.mxu0 0.0
    %3201 = vmatpush1.msra.mxu0 %v2590
    %3202 = vmatprep.subr.mxu0 0.0
    %3203 = vmatpush1.msra.mxu0 %v2593
    %3204 = vmatprep.subr.mxu0 0.0
    %3205 = vmatpush1.msra.mxu0 %v2596
    %3206 = vmatprep.subr.mxu0 0.0
    %3207 = vmatpush1.msra.mxu0 %v2599
    %3208 = vmatprep.subr.mxu0 0.0
    %3209 = vmatpush1.msra.mxu0 %v2602
    %3210 = vmatprep.subr.mxu0 0.0
    %3211 = vmatpush1.msra.mxu0 %v2605
    %3212 = vmatprep.subr.mxu0 0.0
    %3213 = vmatpush1.msra.mxu0 %v2608
    %3214 = vmatprep.subr.mxu0 0.0
    %3215 = vmatpush1.msra.mxu0 %v2611
    %3216 = vmatprep.subr.mxu0 0.0
    %3217 = vmatpush1.msra.mxu0 %v2614
    %3218 = vmatprep.subr.mxu0 0.0
    %3219 = vmatpush1.msra.mxu0 %v2617
    %3220 = vmatprep.subr.mxu0 0.0
    %3221 = vmatpush1.msra.mxu0 %v2620
    %3222 = vmatprep.mubr.f32.mxu0 %v2330
    %3223 = vmatmul.mubr.f32.gmra.mrb[0].mxu0 %v2329
    %v3224 = vpop.f32.mrb[0].mxu0
    %v3225 = vadd.f32 %v3155, %v3224
    %v3226 = vpop.f32.mrb[0].mxu0
    %3227 = vdwg.mxu0
    %3228 = vmatprep.subr.mxu0 0.0
    %3229 = vmatpush1.msra.mxu0 %v2623
    %3230 = vmatprep.subr.mxu0 0.0
    %3231 = vmatpush1.msra.mxu0 %v2626
    %3232 = vmatprep.subr.mxu0 0.0
    %3233 = vmatpush1.msra.mxu0 %v2629
    %3234 = vmatprep.subr.mxu0 0.0
    %3235 = vmatpush1.msra.mxu0 %v2632
    %3236 = vmatprep.subr.mxu0 0.0
    %3237 = vmatpush1.msra.mxu0 %v2635
    %3238 = vmatprep.subr.mxu0 0.0
    %3239 = vmatpush1.msra.mxu0 %v2638
    %3240 = vmatprep.subr.mxu0 0.0
    %3241 = vmatpush1.msra.mxu0 %v2641
    %3242 = vmatprep.subr.mxu0 0.0
    %3243 = vmatpush1.msra.mxu0 %v2644
    %3244 = vmatprep.subr.mxu0 0.0
    %3245 = vmatpush1.msra.mxu0 %v2647
    %3246 = vmatprep.subr.mxu0 0.0
    %3247 = vmatpush1.msra.mxu0 %v2650
    %3248 = vmatprep.subr.mxu0 0.0
    %3249 = vmatpush1.msra.mxu0 %v2653
    %3250 = vmatprep.subr.mxu0 0.0
    %3251 = vmatpush1.msra.mxu0 %v2656
    %3252 = vmatprep.subr.mxu0 0.0
    %3253 = vmatpush1.msra.mxu0 %v2659
    %3254 = vmatprep.subr.mxu0 0.0
    %3255 = vmatpush1.msra.mxu0 %v2662
    %3256 = vmatprep.subr.mxu0 0.0
    %3257 = vmatpush1.msra.mxu0 %v2665
    %3258 = vmatprep.subr.mxu0 0.0
    %3259 = vmatpush1.msra.mxu0 %v2668
    %3260 = vmatprep.subr.mxu0 0.0
    %3261 = vmatpush1.msra.mxu0 %v2671
    %3262 = vmatprep.subr.mxu0 0.0
    %3263 = vmatpush1.msra.mxu0 %v2674
    %3264 = vmatprep.subr.mxu0 0.0
    %3265 = vmatpush1.msra.mxu0 %v2677
    %3266 = vmatprep.subr.mxu0 0.0
    %3267 = vmatpush1.msra.mxu0 %v2680
    %3268 = vmatprep.subr.mxu0 0.0
    %3269 = vmatpush1.msra.mxu0 %v2683
    %3270 = vmatprep.subr.mxu0 0.0
    %3271 = vmatpush1.msra.mxu0 %v2686
    %3272 = vmatprep.subr.mxu0 0.0
    %3273 = vmatpush1.msra.mxu0 %v2689
    %3274 = vmatprep.subr.mxu0 0.0
    %3275 = vmatpush1.msra.mxu0 %v2692
    %3276 = vmatprep.subr.mxu0 0.0
    %3277 = vmatpush1.msra.mxu0 %v2695
    %3278 = vmatprep.subr.mxu0 0.0
    %3279 = vmatpush1.msra.mxu0 %v2698
    %3280 = vmatprep.subr.mxu0 0.0
    %3281 = vmatpush1.msra.mxu0 %v2701
    %3282 = vmatprep.subr.mxu0 0.0
    %3283 = vmatpush1.msra.mxu0 %v2704
    %3284 = vmatprep.subr.mxu0 0.0
    %3285 = vmatpush1.msra.mxu0 %v2707
    %3286 = vmatprep.subr.mxu0 0.0
    %3287 = vmatpush1.msra.mxu0 %v2710
    %3288 = vmatprep.subr.mxu0 0.0
    %3289 = vmatpush1.msra.mxu0 %v2713
    %3290 = vmatprep.subr.mxu0 0.0
    %3291 = vmatpush1.msra.mxu0 %v2716
    %3292 = vmatprep.mubr.f32.mxu0 %v2332
    %3293 = vmatmul.mubr.f32.gmra.mrb[0].mxu0 %v2331
    %v3294 = vpop.f32.mrb[0].mxu0
    %v3295 = vadd.f32 %v3225, %v3294
    %v3296 = vpop.f32.mrb[0].mxu0
    %3297 = vdwg.mxu0
    %vm3298 = vcmp.gt.f32.partialorder %v3014, 0.0
    %vm3299 = vcmp.gt.f32.partialorder %v3016, 0.0
    %vm3300 = vcmp.gt.f32.partialorder %v3295, 0.0
    %v3301 = vmin.f32 %v3014, 0.0
    %v3302 = vmin.f32 %v3016, 0.0
    %v3303 = vmin.f32 %v3295, 0.0
    %v3304 = vmul.f32 %v3301, 1.442695
    %v3305 = vpow.pop %v3304
    %v3306 = vmul.f32 %v3302, 1.442695
    %v3307 = vpow.pop %v3306
    %v3308 = vmul.f32 %v3303, 1.442695
    %v3309 = vpow.pop %v3308
    %v3310 = vsub.f32 %v3305, 1.0
    %v3311 = vsub.f32 %v3307, 1.0
    %v3312 = vsub.f32 %v3309, 1.0
    %v3313 = vsel %vm3298, %v3014, %v3310
    %v3314 = vsel %vm3299, %v3016, %v3311
    %v3315 = vsel %vm3300, %v3295, %v3312
    %v3316 = vld [vmem:[%s5] sm:$0xff]
    %v3317 = vld [vmem:[%s5 + $0x8] sm:$0xff]
    %v3318 = vld [vmem:[%s5 + $0x10] sm:$0xff]
    %v3319 = vld [vmem:[%s5 + $0x18] sm:$0xff]
    %v3320 = vld [vmem:[%s5 + $0x20] sm:$0xff]
    %v3321 = vld [vmem:[%s5 + $0x28] sm:$0xff]
    %v3322 = vld [vmem:[%s5 + $0x30] sm:$0xff]
    %v3323 = vld [vmem:[%s5 + $0x38] sm:$0xff]
    %v3324 = vld [vmem:[%s5 + $0x40] sm:$0xff]
    %v3325 = vld [vmem:[%s5 + $0x48] sm:$0xff]
    %v3326 = vld [vmem:[%s5 + $0x50] sm:$0xff]
    %v3327 = vld [vmem:[%s5 + $0x58] sm:$0xff]
    %v3328 = vld [vmem:[%s5 + $0x60] sm:$0xff]
    %v3329 = vld [vmem:[%s5 + $0x68] sm:$0xff]
    %v3330 = vld [vmem:[%s5 + $0x70] sm:$0xff]
    %v3331 = vld [vmem:[%s5 + $0x78] sm:$0xff]
    %v3332 = vld [vmem:[%s5 + $0x80] sm:$0xff]
    %v3333 = vld [vmem:[%s5 + $0x88] sm:$0xff]
    %v3334 = vld [vmem:[%s5 + $0x90] sm:$0xff]
    %v3335 = vld [vmem:[%s5 + $0x98] sm:$0xff]
    %v3336 = vld [vmem:[%s5 + $0xa0] sm:$0xff]
    %v3337 = vld [vmem:[%s5 + $0xa8] sm:$0xff]
    %v3338 = vld [vmem:[%s5 + $0xb0] sm:$0xff]
    %v3339 = vld [vmem:[%s5 + $0xb8] sm:$0xff]
    %v3340 = vld [vmem:[%s5 + $0xc0] sm:$0xff]
    %v3341 = vld [vmem:[%s5 + $0xc8] sm:$0xff]
    %v3342 = vld [vmem:[%s5 + $0xd0] sm:$0xff]
    %v3343 = vld [vmem:[%s5 + $0xd8] sm:$0xff]
    %v3344 = vld [vmem:[%s5 + $0xe0] sm:$0xff]
    %v3345 = vld [vmem:[%s5 + $0xe8] sm:$0xff]
    %v3346 = vld [vmem:[%s5 + $0xf0] sm:$0xff]
    %v3347 = vld [vmem:[%s5 + $0xf8] sm:$0xff]
    %v3348 = vld [vmem:[%s5 + $0x100] sm:$0xff]
    %vm3349 = vcmask 64512
    %v3351 = vsel %vm3349, %v3315, 0
    %3353 = vmatprep.subr.mxu0 0.0
    %3354 = vmatpush1.msra.mxu0 %v3316
    %3355 = vmatprep.subr.mxu0 0.0
    %3356 = vmatpush1.msra.mxu0 %v3317
    %3357 = vmatprep.subr.mxu0 0.0
    %3358 = vmatpush1.msra.mxu0 %v3318
    %3359 = vmatprep.subr.mxu0 0.0
    %3360 = vmatpush1.msra.mxu0 %v3319
    %3361 = vmatprep.subr.mxu0 0.0
    %3362 = vmatpush1.msra.mxu0 %v3320
    %3363 = vmatprep.subr.mxu0 0.0
    %3364 = vmatpush1.msra.mxu0 %v3321
    %3365 = vmatprep.subr.mxu0 0.0
    %3366 = vmatpush1.msra.mxu0 %v3322
    %3367 = vmatprep.subr.mxu0 0.0
    %3368 = vmatpush1.msra.mxu0 %v3323
    %3369 = vmatprep.subr.mxu0 0.0
    %3370 = vmatpush1.msra.mxu0 %v3324
    %3371 = vmatprep.subr.mxu0 0.0
    %3372 = vmatpush1.msra.mxu0 %v3325
    %3373 = vmatprep.subr.mxu0 0.0
    %3374 = vmatpush1.msra.mxu0 %v3326
    %3375 = vmatprep.subr.mxu0 0.0
    %3376 = vmatpush1.msra.mxu0 %v3327
    %3377 = vmatprep.subr.mxu0 0.0
    %3378 = vmatpush1.msra.mxu0 %v3328
    %3379 = vmatprep.subr.mxu0 0.0
    %3380 = vmatpush1.msra.mxu0 %v3329
    %3381 = vmatprep.subr.mxu0 0.0
    %3382 = vmatpush1.msra.mxu0 %v3330
    %3383 = vmatprep.subr.mxu0 0.0
    %3384 = vmatpush1.msra.mxu0 %v3331
    %3385 = vmatprep.subr.mxu0 0.0
    %3386 = vmatpush1.msra.mxu0 %v3332
    %3387 = vmatprep.subr.mxu0 0.0
    %3388 = vmatpush1.msra.mxu0 %v3333
    %3389 = vmatprep.subr.mxu0 0.0
    %3390 = vmatpush1.msra.mxu0 %v3334
    %3391 = vmatprep.subr.mxu0 0.0
    %3392 = vmatpush1.msra.mxu0 %v3335
    %3393 = vmatprep.subr.mxu0 0.0
    %3394 = vmatpush1.msra.mxu0 %v3336
    %3395 = vmatprep.subr.mxu0 0.0
    %3396 = vmatpush1.msra.mxu0 %v3337
    %3397 = vmatprep.subr.mxu0 0.0
    %3398 = vmatpush1.msra.mxu0 %v3338
    %3399 = vmatprep.subr.mxu0 0.0
    %3400 = vmatpush1.msra.mxu0 %v3339
    %3401 = vmatprep.subr.mxu0 0.0
    %3402 = vmatpush1.msra.mxu0 %v3340
    %3403 = vmatprep.subr.mxu0 0.0
    %3404 = vmatpush1.msra.mxu0 %v3341
    %3405 = vmatprep.subr.mxu0 0.0
    %3406 = vmatpush1.msra.mxu0 %v3342
    %3407 = vmatprep.subr.mxu0 0.0
    %3408 = vmatpush1.msra.mxu0 %v3343
    %3409 = vmatprep.subr.mxu0 0.0
    %3410 = vmatpush1.msra.mxu0 %v3344
    %3411 = vmatprep.subr.mxu0 0.0
    %3412 = vmatpush1.msra.mxu0 %v3345
    %3413 = vmatprep.subr.mxu0 0.0
    %3414 = vmatpush1.msra.mxu0 %v3346
    %3415 = vmatprep.subr.mxu0 0.0
    %3416 = vmatpush1.msra.mxu0 %v3347
    %3417 = vmatprep.mubr.f32.mxu0 %v3314
    %3418 = vmatmul.mubr.f32.gmra.mrb[0].mxu0 %v3313
    %v3419 = vpop.f32.mrb[0].mxu0
    %v3420 = vadd.f32 0.0, %v3419
    %v3421 = vpop.f32.mrb[0].mxu0
    %3422 = vdwg.mxu0
    %3423 = vmatprep.subr.mxu0 0.0
    %3424 = vmatpush1.msra.mxu0 %v3348
    %3425 = vmatprep.subr.mxu0 0.0
    %3426 = vmatpush1.msra.mxu0 0.0
    %3427 = vmatprep.subr.mxu0 0.0
    %3428 = vmatpush1.msra.mxu0 0.0
    %3429 = vmatprep.subr.mxu0 0.0
    %3430 = vmatpush1.msra.mxu0 0.0
    %3431 = vmatprep.subr.mxu0 0.0
    %3432 = vmatpush1.msra.mxu0 0.0
    %3433 = vmatprep.subr.mxu0 0.0
    %3434 = vmatpush1.msra.mxu0 0.0
    %3435 = vmatprep.subr.mxu0 0.0
    %3436 = vmatpush1.msra.mxu0 0.0
    %3437 = vmatprep.subr.mxu0 0.0
    %3438 = vmatpush1.msra.mxu0 0.0
    %3439 = vmatprep.subr.mxu0 0.0
    %3440 = vmatpush1.msra.mxu0 0.0
    %3441 = vmatprep.subr.mxu0 0.0
    %3442 = vmatpush1.msra.mxu0 0.0
    %3443 = vmatprep.subr.mxu0 0.0
    %3444 = vmatpush1.msra.mxu0 0.0
    %3445 = vmatprep.subr.mxu0 0.0
    %3446 = vmatpush1.msra.mxu0 0.0
    %3447 = vmatprep.subr.mxu0 0.0
    %3448 = vmatpush1.msra.mxu0 0.0
    %3449 = vmatprep.subr.mxu0 0.0
    %3450 = vmatpush1.msra.mxu0 0.0
    %3451 = vmatprep.subr.mxu0 0.0
    %3452 = vmatpush1.msra.mxu0 0.0
    %3453 = vmatprep.subr.mxu0 0.0
    %3454 = vmatpush1.msra.mxu0 0.0
    %3455 = vmatprep.subr.mxu0 0.0
    %3456 = vmatpush1.msra.mxu0 0.0
    %3457 = vmatprep.subr.mxu0 0.0
    %3458 = vmatpush1.msra.mxu0 0.0
    %3459 = vmatprep.subr.mxu0 0.0
    %3460 = vmatpush1.msra.mxu0 0.0
    %3461 = vmatprep.subr.mxu0 0.0
    %3462 = vmatpush1.msra.mxu0 0.0
    %3463 = vmatprep.subr.mxu0 0.0
    %3464 = vmatpush1.msra.mxu0 0.0
    %3465 = vmatprep.subr.mxu0 0.0
    %3466 = vmatpush1.msra.mxu0 0.0
    %3467 = vmatprep.subr.mxu0 0.0
    %3468 = vmatpush1.msra.mxu0 0.0
    %3469 = vmatprep.subr.mxu0 0.0
    %3470 = vmatpush1.msra.mxu0 0.0
    %3471 = vmatprep.subr.mxu0 0.0
    %3472 = vmatpush1.msra.mxu0 0.0
    %3473 = vmatprep.subr.mxu0 0.0
    %3474 = vmatpush1.msra.mxu0 0.0
    %3475 = vmatprep.subr.mxu0 0.0
    %3476 = vmatpush1.msra.mxu0 0.0
    %3477 = vmatprep.subr.mxu0 0.0
    %3478 = vmatpush1.msra.mxu0 0.0
    %3479 = vmatprep.subr.mxu0 0.0
    %3480 = vmatpush1.msra.mxu0 0.0
    %3481 = vmatprep.subr.mxu0 0.0
    %3482 = vmatpush1.msra.mxu0 0.0
    %3483 = vmatprep.subr.mxu0 0.0
    %3484 = vmatpush1.msra.mxu0 0.0
    %3485 = vmatprep.subr.mxu0 0.0
    %3486 = vmatpush1.msra.mxu0 0.0
    %3487 = vmatprep.mubr.f32.mxu0 0.0
    %3488 = vmatmul.mubr.f32.gmra.mrb[0].mxu0 %v3351
    %v3489 = vpop.f32.mrb[0].mxu0
    %v3490 = vadd.f32 %v3420, %v3489
    %v3491 = vpop.f32.mrb[0].mxu0
    %3492 = vdwg.mxu0
    %vm3493 = vcmask 1024
    %3494 = vst.msk [vmem:[%s6] sm:$0x3] %vm3493, %v3490
    // Predicated region
    $region30: #{tpu_custom_call.1} parent=1 // pred_check
      _
    $region31: #{tpu_custom_call.1} parent=1 // pred_check_branch
      %3496 = sbr.rel (0) target = $region33
    $region32: #{tpu_custom_call.1} parent=1 // pred_region
      _
    $region33: #{tpu_custom_call.1} parent=1 // pred_fallthru
      _
    // Predicated region
    $region34: #{tpu_custom_call.1} parent=1 // pred_check
      _
    $region35: #{tpu_custom_call.1} parent=1 // pred_check_branch
      %3498 = sbr.rel (0) target = $region37
    $region36: #{tpu_custom_call.1} parent=1 // pred_region
      _
    $region37: #{tpu_custom_call.1} parent=1 // pred_fallthru
      _
    %3499 = vsyncpa [#allocation3], 1

</llo_original>
